<compile_context>
chip_gen: v6e
topology: v6e:2x2x1
jax: 0.10.0
libtpu: 0.0.40
codegen_flags: <defaults>
</compile_context>

<pallas_src>
import functools

import numpy as np
import jax
import jax.numpy as jnp
from jax import lax
from jax.experimental import pallas as pl
from jax.experimental.pallas import tpu as pltpu


def _layernorm(x, gamma, beta, eps=1e-5):
    """LayerNorm over the last axis (torch defaults: eps=1e-5, biased variance)."""
    mu = jnp.mean(x, axis=-1, keepdims=True)
    xc = x - mu
    var = jnp.mean(xc * xc, axis=-1, keepdims=True)
    return xc * lax.rsqrt(var + eps) * gamma + beta


def _transformer_block_kernel(
    x_ref,                      # (Bb, N, D) f32  activations (one batch tile per grid step)
    wq_ref, wk_ref, wv_ref,     # (H, D, Dh) bf16 head-major weight stacks
    wo_ref,                     # (H, Dh, D) bf16 head-major output projection
    w1_ref,                     # (D, Dff)   bf16
    w2_ref,                     # (Dff, D)   bf16
    bb1_ref,                    # (1, Dff)   f32
    vec_ref,                    # (8, D)     f32  rows = [bo, g1, b1, bb2, g2, b2, pad, pad]
    o_ref,                      # (Bb, N, D)
    *, heads: int, dim_head: int,
):
    Bb, N, D = x_ref.shape
    M = Bb * N
    scale = dim_head ** -0.5

    # Unpack the packed bias/gamma/beta vectors (static sublane slices, free).
    bo = vec_ref[0:1, :]
    g1 = vec_ref[1:2, :]
    b1 = vec_ref[2:3, :]
    bb2 = vec_ref[3:4, :]
    g2 = vec_ref[4:5, :]
    b2 = vec_ref[5:6, :]

    # Flatten batch x sequence into the M dimension (layout-preserving, last dim stays 128).
    x_flat = x_ref[...].astype(jnp.float32).reshape(M, D)
    x_bf = x_flat.astype(jnp.bfloat16)

    # ---- multi-head self-attention (head-major stacks; no lane slicing) --------------
    # TODO(synk): optional boolean attention `mask` path not fused (mask=None case only).
    attn_proj = jnp.zeros((M, D), jnp.float32)
    for h in range(heads):                       # static unroll; heads is small (4)
        q = jnp.dot(x_bf, wq_ref[h], preferred_element_type=jnp.float32)   # (M, Dh)
        k = jnp.dot(x_bf, wk_ref[h], preferred_element_type=jnp.float32)
        v = jnp.dot(x_bf, wv_ref[h], preferred_element_type=jnp.float32)
        q3 = q.reshape(Bb, N, dim_head).astype(jnp.bfloat16)
        k3 = k.reshape(Bb, N, dim_head).astype(jnp.bfloat16)
        v3 = v.reshape(Bb, N, dim_head).astype(jnp.bfloat16)

        dots = jnp.einsum("bid,bjd->bij", q3, k3,
                          preferred_element_type=jnp.float32) * scale      # (Bb, N, N) f32
        dots = dots - jnp.max(dots, axis=-1, keepdims=True)
        p = jnp.exp(dots)
        p = p * pl.reciprocal(jnp.sum(p, axis=-1, keepdims=True), approx=True)

        out_h = jnp.einsum("bij,bjd->bid", p.astype(jnp.bfloat16), v3,
                           preferred_element_type=jnp.float32)             # (Bb, N, Dh)
        # Fold output projection: concat over heads @ Wo == sum_h out_h @ Wo[h]
        attn_proj = attn_proj + jnp.dot(
            out_h.reshape(M, dim_head).astype(jnp.bfloat16), wo_ref[h],
            preferred_element_type=jnp.float32)                            # (M, D)
    attn_proj = attn_proj + bo

    # ---- residual + LayerNorm 1 (dropout == identity at inference) -------------------
    y = _layernorm(attn_proj + x_flat, g1, b1)                             # (M, D) f32

    # ---- MLP: Linear -> ReLU -> Linear ------------------------------------------------
    h1 = jnp.maximum(
        jnp.dot(y.astype(jnp.bfloat16), w1_ref[...],
                preferred_element_type=jnp.float32) + bb1_ref[...], 0.0)    # (M, Dff) f32
    mlp = jnp.dot(h1.astype(jnp.bfloat16), w2_ref[...],
                  preferred_element_type=jnp.float32) + bb2                 # (M, D) f32

    # ---- residual + LayerNorm 2 --------------------------------------------------------
    o_ref[...] = _layernorm(mlp + y, g2, b2).reshape(Bb, N, D).astype(o_ref.dtype)


def _pick_batch_tile(B, N, max_rows=2048):
    """Largest divisor Bb of B with Bb*N <= max_rows (fills the MXU M dim, bounds VMEM)."""
    best = 1
    for d in range(1, B + 1):
        if B % d == 0 and d * N <= max_rows:
            best = d
    return best


def transformer_block(x, params, *, heads: int, dim_head: int):
    """x: (B, N, D) float32; params: (wq, wk, wv, wo, bo, g1, b1, w1, bb1, w2, bb2, g2, b2)."""
    B, N, D = x.shape
    (wq, wk, wv, wo, bo, g1, b1, w1, bb1, w2, bb2, g2, b2) = params

    # Host-side, one-time weight re-layout: head-major stacks + bf16 MXU operands.
    wq_s = wq.reshape(D, heads, dim_head).transpose(1, 0, 2).astype(jnp.bfloat16)   # (H, D, Dh)
    wk_s = wk.reshape(D, heads, dim_head).transpose(1, 0, 2).astype(jnp.bfloat16)
    wv_s = wv.reshape(D, heads, dim_head).transpose(1, 0, 2).astype(jnp.bfloat16)
    wo_s = wo.reshape(heads, dim_head, D).astype(jnp.bfloat16)                       # (H, Dh, D)
    w1_b = w1.astype(jnp.bfloat16)
    w2_b = w2.astype(jnp.bfloat16)
    # Pack the six (1, D) vectors into a single (8, D) operand (rows 6,7 are padding).
    vec = jnp.concatenate([bo, g1, b1, bb2, g2, b2, jnp.zeros((2, D), jnp.float32)], axis=0)

    Bb = _pick_batch_tile(B, N)          # B=2, N=8  ->  Bb=2, grid=(1,): whole problem per step
    grid = (B // Bb,)

    kernel = functools.partial(_transformer_block_kernel, heads=heads, dim_head=dim_head)
    resident3 = lambda b: (0, 0, 0)      # weights: same block every step -> stay in VMEM
    resident2 = lambda b: (0, 0)

    return pl.pallas_call(
        kernel,
        out_shape=jax.ShapeDtypeStruct((B, N, D), x.dtype),
        grid=grid,
        in_specs=[
            pl.BlockSpec((Bb, N, D), lambda b: (b, 0, 0)),   # activations: one batch tile / step
            pl.BlockSpec(wq_s.shape, resident3),
            pl.BlockSpec(wk_s.shape, resident3),
            pl.BlockSpec(wv_s.shape, resident3),
            pl.BlockSpec(wo_s.shape, resident3),
            pl.BlockSpec(w1_b.shape, resident2),
            pl.BlockSpec(w2_b.shape, resident2),
            pl.BlockSpec(bb1.shape, resident2),
            pl.BlockSpec(vec.shape, resident2),
        ],
        out_specs=pl.BlockSpec((Bb, N, D), lambda b: (b, 0, 0)),
        compiler_params=pltpu.CompilerParams(
            dimension_semantics=("parallel",),   # batch tiles are independent (megacore on v7x)
        ),
    )(x, wq_s, wk_s, wv_s, wo_s, w1_b, w2_b, bb1, vec)


# ----------------------------- pure-JAX f32 reference -----------------------------------
def transformer_block_ref(x, params, *, heads: int, dim_head: int):
    (wq, wk, wv, wo, bo, g1, b1, w1, bb1, w2, bb2, g2, b2) = params
    B, N, D = x.shape
    hp = jax.lax.Precision.HIGHEST
    scale = dim_head ** -0.5

    q = jnp.dot(x, wq, precision=hp).reshape(B, N, heads, dim_head).transpose(0, 2, 1, 3)
    k = jnp.dot(x, wk, precision=hp).reshape(B, N, heads, dim_head).transpose(0, 2, 1, 3)
    v = jnp.dot(x, wv, precision=hp).reshape(B, N, heads, dim_head).transpose(0, 2, 1, 3)
    dots = jnp.einsum("bhid,bhjd->bhij", q, k, precision=hp) * scale
    attn = jax.nn.softmax(dots, axis=-1)
    out = jnp.einsum("bhij,bhjd->bhid", attn, v, precision=hp)
    out = out.transpose(0, 2, 1, 3).reshape(B, N, heads * dim_head)
    attn_proj = jnp.dot(out, wo, precision=hp) + bo

    y = _layernorm(attn_proj + x, g1, b1)
    h1 = jax.nn.relu(jnp.dot(y, w1, precision=hp) + bb1)
    mlp = jnp.dot(h1, w2, precision=hp) + bb2
    return _layernorm(mlp + y, g2, b2)


if __name__ == "__main__":
    # Small shapes consistent with the module; D and Dff kept multiples of 128 for lane density.
    B, N, D = 2, 8, 128
    heads, dim_head = 4, 32
    inner = heads * dim_head          # 128
    Dff = 256

    key = jax.random.PRNGKey(0)
    ks = jax.random.split(key, 14)
    s = 0.05
    f32 = jnp.float32

    wq = s * jax.random.normal(ks[0], (D, inner), f32)
    wk = s * jax.random.normal(ks[1], (D, inner), f32)
    wv = s * jax.random.normal(ks[2], (D, inner), f32)
    wo = s * jax.random.normal(ks[3], (inner, D), f32)
    bo = s * jax.random.normal(ks[4], (1, D), f32)
    g1 = 1.0 + 0.1 * jax.random.normal(ks[5], (1, D), f32)
    b1 = 0.1 * jax.random.normal(ks[6], (1, D), f32)
    w1 = s * jax.random.normal(ks[7], (D, Dff), f32)
    bb1 = s * jax.random.normal(ks[8], (1, Dff), f32)
    w2 = s * jax.random.normal(ks[9], (Dff, D), f32)
    bb2 = s * jax.random.normal(ks[10], (1, D), f32)
    g2 = 1.0 + 0.1 * jax.random.normal(ks[11], (1, D), f32)
    b2 = 0.1 * jax.random.normal(ks[12], (1, D), f32)
    x = jax.random.normal(ks[13], (B, N, D), f32)

    params = (wq, wk, wv, wo, bo, g1, b1, w1, bb1, w2, bb2, g2, b2)

    out = jax.block_until_ready(transformer_block(x, params, heads=heads, dim_head=dim_head))
    ref = transformer_block_ref(x, params, heads=heads, dim_head=dim_head)

    assert out.shape == (B, N, D), out.shape
    # Kernel uses bf16 MXU operands with f32 accumulation (review item #3/#4); the reference
    # is pure f32, so the tolerance is widened slightly relative to an all-f32 comparison.
    np.testing.assert_allclose(np.asarray(out), np.asarray(ref), rtol=2e-2, atol=2e-2)

    print("KERNEL_OK")
</pallas_src>

<mosaic_0001>
module attributes {stable_mosaic.version = 11 : i64} {
  func.func @_transformer_block_kernel(%arg0: i32, %arg1: memref<2x8x128xf32, #tpu.memory_space<vmem>>, %arg2: memref<4x128x32xbf16, #tpu.memory_space<vmem>>, %arg3: memref<4x128x32xbf16, #tpu.memory_space<vmem>>, %arg4: memref<4x128x32xbf16, #tpu.memory_space<vmem>>, %arg5: memref<4x32x128xbf16, #tpu.memory_space<vmem>>, %arg6: memref<128x256xbf16, #tpu.memory_space<vmem>>, %arg7: memref<256x128xbf16, #tpu.memory_space<vmem>>, %arg8: memref<1x256xf32, #tpu.memory_space<vmem>>, %arg9: memref<8x128xf32, #tpu.memory_space<vmem>>, %arg10: memref<2x8x128xf32, #tpu.memory_space<vmem>>) attributes {dimension_semantics = [#tpu.dimension_semantics<parallel>], iteration_bounds = array<i64: 1>, scalar_prefetch = 0 : i64, scratch_operands = 0 : i64, tpu.core_type = #tpu.core_type<tc>, window_params = [{transform_indices = @transform_0, window_bounds = array<i64: 2, 8, 128>}, {pipeline_mode = #tpu.pipeline_mode<synchronous>, transform_indices = @transform_1, window_bounds = array<i64: 4, 128, 32>}, {pipeline_mode = #tpu.pipeline_mode<synchronous>, transform_indices = @transform_2, window_bounds = array<i64: 4, 128, 32>}, {pipeline_mode = #tpu.pipeline_mode<synchronous>, transform_indices = @transform_3, window_bounds = array<i64: 4, 128, 32>}, {pipeline_mode = #tpu.pipeline_mode<synchronous>, transform_indices = @transform_4, window_bounds = array<i64: 4, 32, 128>}, {pipeline_mode = #tpu.pipeline_mode<synchronous>, transform_indices = @transform_5, window_bounds = array<i64: 128, 256>}, {pipeline_mode = #tpu.pipeline_mode<synchronous>, transform_indices = @transform_6, window_bounds = array<i64: 256, 128>}, {pipeline_mode = #tpu.pipeline_mode<synchronous>, transform_indices = @transform_7, window_bounds = array<i64: 1, 256>}, {pipeline_mode = #tpu.pipeline_mode<synchronous>, transform_indices = @transform_8, window_bounds = array<i64: 8, 128>}, {transform_indices = @transform_9, window_bounds = array<i64: 2, 8, 128>}]} {
    %c0 = arith.constant 0 : index
    %c0_0 = arith.constant 0 : index
    %0 = vector.load %arg9[%c0, %c0_0] : memref<8x128xf32, #tpu.memory_space<vmem>>, vector<1x128xf32>
    %c1 = arith.constant 1 : index
    %c0_1 = arith.constant 0 : index
    %1 = vector.load %arg9[%c1, %c0_1] : memref<8x128xf32, #tpu.memory_space<vmem>>, vector<1x128xf32>
    %c2 = arith.constant 2 : index
    %c0_2 = arith.constant 0 : index
    %2 = vector.load %arg9[%c2, %c0_2] : memref<8x128xf32, #tpu.memory_space<vmem>>, vector<1x128xf32>
    %c3 = arith.constant 3 : index
    %c0_3 = arith.constant 0 : index
    %3 = vector.load %arg9[%c3, %c0_3] : memref<8x128xf32, #tpu.memory_space<vmem>>, vector<1x128xf32>
    %c4 = arith.constant 4 : index
    %c0_4 = arith.constant 0 : index
    %4 = vector.load %arg9[%c4, %c0_4] : memref<8x128xf32, #tpu.memory_space<vmem>>, vector<1x128xf32>
    %c5 = arith.constant 5 : index
    %c0_5 = arith.constant 0 : index
    %5 = vector.load %arg9[%c5, %c0_5] : memref<8x128xf32, #tpu.memory_space<vmem>>, vector<1x128xf32>
    %c0_6 = arith.constant 0 : index
    %c0_7 = arith.constant 0 : index
    %c0_8 = arith.constant 0 : index
    %6 = vector.load %arg1[%c0_6, %c0_7, %c0_8] : memref<2x8x128xf32, #tpu.memory_space<vmem>>, vector<2x8x128xf32>
    %7 = vector.shape_cast %6 : vector<2x8x128xf32> to vector<16x128xf32>
    %8 = arith.truncf %7 : vector<16x128xf32> to vector<16x128xbf16>
    %cst = arith.constant 0.000000e+00 : f32
    %9 = vector.broadcast %cst : f32 to vector<16x128xf32>
    %c0_9 = arith.constant 0 : index
    %c0_10 = arith.constant 0 : index
    %c0_11 = arith.constant 0 : index
    %10 = vector.load %arg2[%c0_9, %c0_10, %c0_11] : memref<4x128x32xbf16, #tpu.memory_space<vmem>>, vector<1x128x32xbf16>
    %11 = vector.shape_cast %10 : vector<1x128x32xbf16> to vector<128x32xbf16>
    %cst_12 = arith.constant dense<0.000000e+00> : vector<16x32xf32>
    %12 = tpu.matmul %8, %11, %cst_12 {dimension_numbers = #tpu.dot_dimension_numbers<[1], [0], [0], [1], [0, 0, 1, 1], [], []>} : vector<16x128xbf16>, vector<128x32xbf16>, vector<16x32xf32> -> vector<16x32xf32>
    %c0_13 = arith.constant 0 : index
    %c0_14 = arith.constant 0 : index
    %c0_15 = arith.constant 0 : index
    %13 = vector.load %arg3[%c0_13, %c0_14, %c0_15] : memref<4x128x32xbf16, #tpu.memory_space<vmem>>, vector<1x128x32xbf16>
    %14 = vector.shape_cast %13 : vector<1x128x32xbf16> to vector<128x32xbf16>
    %cst_16 = arith.constant dense<0.000000e+00> : vector<16x32xf32>
    %15 = tpu.matmul %8, %14, %cst_16 {dimension_numbers = #tpu.dot_dimension_numbers<[1], [0], [0], [1], [0, 0, 1, 1], [], []>} : vector<16x128xbf16>, vector<128x32xbf16>, vector<16x32xf32> -> vector<16x32xf32>
    %c0_17 = arith.constant 0 : index
    %c0_18 = arith.constant 0 : index
    %c0_19 = arith.constant 0 : index
    %16 = vector.load %arg4[%c0_17, %c0_18, %c0_19] : memref<4x128x32xbf16, #tpu.memory_space<vmem>>, vector<1x128x32xbf16>
    %17 = vector.shape_cast %16 : vector<1x128x32xbf16> to vector<128x32xbf16>
    %cst_20 = arith.constant dense<0.000000e+00> : vector<16x32xf32>
    %18 = tpu.matmul %8, %17, %cst_20 {dimension_numbers = #tpu.dot_dimension_numbers<[1], [0], [0], [1], [0, 0, 1, 1], [], []>} : vector<16x128xbf16>, vector<128x32xbf16>, vector<16x32xf32> -> vector<16x32xf32>
    %19 = vector.shape_cast %12 : vector<16x32xf32> to vector<2x8x32xf32>
    %20 = arith.truncf %19 : vector<2x8x32xf32> to vector<2x8x32xbf16>
    %21 = vector.shape_cast %15 : vector<16x32xf32> to vector<2x8x32xf32>
    %22 = arith.truncf %21 : vector<2x8x32xf32> to vector<2x8x32xbf16>
    %23 = vector.shape_cast %18 : vector<16x32xf32> to vector<2x8x32xf32>
    %24 = arith.truncf %23 : vector<2x8x32xf32> to vector<2x8x32xbf16>
    "tpu.trace_start"() <{level = 10 : i32, message = "bid,bjd->bij"}> : () -> ()
    %cst_21 = arith.constant dense<0.000000e+00> : vector<2x8x8xf32>
    %25 = tpu.matmul %20, %22, %cst_21 {dimension_numbers = #tpu.dot_dimension_numbers<[2], [2], [1], [1], [0, 0, 0, 1, 1, 1], [0], [0]>} : vector<2x8x32xbf16>, vector<2x8x32xbf16>, vector<2x8x8xf32> -> vector<2x8x8xf32>
    "tpu.trace_stop"() : () -> ()
    %cst_22 = arith.constant 0.176776692 : f32
    %26 = vector.broadcast %cst_22 : f32 to vector<2x8x8xf32>
    %27 = arith.mulf %25, %26 : vector<2x8x8xf32>
    %cst_23 = arith.constant dense<0xFF800000> : vector<2x8xf32>
    %28 = vector.multi_reduction <maximumf>, %27, %cst_23 [2] : vector<2x8x8xf32> to vector<2x8xf32>
    %29 = vector.shape_cast %28 : vector<2x8xf32> to vector<2x8x1xf32>
    %30 = vector.broadcast %29 : vector<2x8x1xf32> to vector<2x8x8xf32>
    %31 = arith.subf %27, %30 : vector<2x8x8xf32>
    %32 = math.exp %31 : vector<2x8x8xf32>
    %cst_24 = arith.constant dense<0.000000e+00> : vector<2x8xf32>
    %33 = vector.multi_reduction <add>, %32, %cst_24 [2] : vector<2x8x8xf32> to vector<2x8xf32>
    %34 = vector.shape_cast %33 : vector<2x8xf32> to vector<2x8x1xf32>
    %35 = tpu.reciprocal %34 {approx = true} : vector<2x8x1xf32> -> vector<2x8x1xf32>
    %36 = vector.broadcast %35 : vector<2x8x1xf32> to vector<2x8x8xf32>
    %37 = arith.mulf %32, %36 : vector<2x8x8xf32>
    %38 = arith.truncf %37 : vector<2x8x8xf32> to vector<2x8x8xbf16>
    "tpu.trace_start"() <{level = 10 : i32, message = "bij,bjd->bid"}> : () -> ()
    %cst_25 = arith.constant dense<0.000000e+00> : vector<2x8x32xf32>
    %39 = tpu.matmul %38, %24, %cst_25 {dimension_numbers = #tpu.dot_dimension_numbers<[2], [1], [1], [2], [0, 0, 0, 1, 1, 2], [0], [0]>} : vector<2x8x8xbf16>, vector<2x8x32xbf16>, vector<2x8x32xf32> -> vector<2x8x32xf32>
    "tpu.trace_stop"() : () -> ()
    %40 = vector.shape_cast %39 : vector<2x8x32xf32> to vector<16x32xf32>
    %41 = arith.truncf %40 : vector<16x32xf32> to vector<16x32xbf16>
    %c0_26 = arith.constant 0 : index
    %c0_27 = arith.constant 0 : index
    %c0_28 = arith.constant 0 : index
    %42 = vector.load %arg5[%c0_26, %c0_27, %c0_28] : memref<4x32x128xbf16, #tpu.memory_space<vmem>>, vector<1x32x128xbf16>
    %43 = vector.shape_cast %42 : vector<1x32x128xbf16> to vector<32x128xbf16>
    %cst_29 = arith.constant dense<0.000000e+00> : vector<16x128xf32>
    %44 = tpu.matmul %41, %43, %cst_29 {dimension_numbers = #tpu.dot_dimension_numbers<[1], [0], [0], [1], [0, 0, 1, 1], [], []>} : vector<16x32xbf16>, vector<32x128xbf16>, vector<16x128xf32> -> vector<16x128xf32>
    %45 = arith.addf %9, %44 : vector<16x128xf32>
    %c1_30 = arith.constant 1 : index
    %c0_31 = arith.constant 0 : index
    %c0_32 = arith.constant 0 : index
    %46 = vector.load %arg2[%c1_30, %c0_31, %c0_32] : memref<4x128x32xbf16, #tpu.memory_space<vmem>>, vector<1x128x32xbf16>
    %47 = vector.shape_cast %46 : vector<1x128x32xbf16> to vector<128x32xbf16>
    %cst_33 = arith.constant dense<0.000000e+00> : vector<16x32xf32>
    %48 = tpu.matmul %8, %47, %cst_33 {dimension_numbers = #tpu.dot_dimension_numbers<[1], [0], [0], [1], [0, 0, 1, 1], [], []>} : vector<16x128xbf16>, vector<128x32xbf16>, vector<16x32xf32> -> vector<16x32xf32>
    %c1_34 = arith.constant 1 : index
    %c0_35 = arith.constant 0 : index
    %c0_36 = arith.constant 0 : index
    %49 = vector.load %arg3[%c1_34, %c0_35, %c0_36] : memref<4x128x32xbf16, #tpu.memory_space<vmem>>, vector<1x128x32xbf16>
    %50 = vector.shape_cast %49 : vector<1x128x32xbf16> to vector<128x32xbf16>
    %cst_37 = arith.constant dense<0.000000e+00> : vector<16x32xf32>
    %51 = tpu.matmul %8, %50, %cst_37 {dimension_numbers = #tpu.dot_dimension_numbers<[1], [0], [0], [1], [0, 0, 1, 1], [], []>} : vector<16x128xbf16>, vector<128x32xbf16>, vector<16x32xf32> -> vector<16x32xf32>
    %c1_38 = arith.constant 1 : index
    %c0_39 = arith.constant 0 : index
    %c0_40 = arith.constant 0 : index
    %52 = vector.load %arg4[%c1_38, %c0_39, %c0_40] : memref<4x128x32xbf16, #tpu.memory_space<vmem>>, vector<1x128x32xbf16>
    %53 = vector.shape_cast %52 : vector<1x128x32xbf16> to vector<128x32xbf16>
    %cst_41 = arith.constant dense<0.000000e+00> : vector<16x32xf32>
    %54 = tpu.matmul %8, %53, %cst_41 {dimension_numbers = #tpu.dot_dimension_numbers<[1], [0], [0], [1], [0, 0, 1, 1], [], []>} : vector<16x128xbf16>, vector<128x32xbf16>, vector<16x32xf32> -> vector<16x32xf32>
    %55 = vector.shape_cast %48 : vector<16x32xf32> to vector<2x8x32xf32>
    %56 = arith.truncf %55 : vector<2x8x32xf32> to vector<2x8x32xbf16>
    %57 = vector.shape_cast %51 : vector<16x32xf32> to vector<2x8x32xf32>
    %58 = arith.truncf %57 : vector<2x8x32xf32> to vector<2x8x32xbf16>
    %59 = vector.shape_cast %54 : vector<16x32xf32> to vector<2x8x32xf32>
    %60 = arith.truncf %59 : vector<2x8x32xf32> to vector<2x8x32xbf16>
    "tpu.trace_start"() <{level = 10 : i32, message = "bid,bjd->bij"}> : () -> ()
    %cst_42 = arith.constant dense<0.000000e+00> : vector<2x8x8xf32>
    %61 = tpu.matmul %56, %58, %cst_42 {dimension_numbers = #tpu.dot_dimension_numbers<[2], [2], [1], [1], [0, 0, 0, 1, 1, 1], [0], [0]>} : vector<2x8x32xbf16>, vector<2x8x32xbf16>, vector<2x8x8xf32> -> vector<2x8x8xf32>
    "tpu.trace_stop"() : () -> ()
    %cst_43 = arith.constant 0.176776692 : f32
    %62 = vector.broadcast %cst_43 : f32 to vector<2x8x8xf32>
    %63 = arith.mulf %61, %62 : vector<2x8x8xf32>
    %cst_44 = arith.constant dense<0xFF800000> : vector<2x8xf32>
    %64 = vector.multi_reduction <maximumf>, %63, %cst_44 [2] : vector<2x8x8xf32> to vector<2x8xf32>
    %65 = vector.shape_cast %64 : vector<2x8xf32> to vector<2x8x1xf32>
    %66 = vector.broadcast %65 : vector<2x8x1xf32> to vector<2x8x8xf32>
    %67 = arith.subf %63, %66 : vector<2x8x8xf32>
    %68 = math.exp %67 : vector<2x8x8xf32>
    %cst_45 = arith.constant dense<0.000000e+00> : vector<2x8xf32>
    %69 = vector.multi_reduction <add>, %68, %cst_45 [2] : vector<2x8x8xf32> to vector<2x8xf32>
    %70 = vector.shape_cast %69 : vector<2x8xf32> to vector<2x8x1xf32>
    %71 = tpu.reciprocal %70 {approx = true} : vector<2x8x1xf32> -> vector<2x8x1xf32>
    %72 = vector.broadcast %71 : vector<2x8x1xf32> to vector<2x8x8xf32>
    %73 = arith.mulf %68, %72 : vector<2x8x8xf32>
    %74 = arith.truncf %73 : vector<2x8x8xf32> to vector<2x8x8xbf16>
    "tpu.trace_start"() <{level = 10 : i32, message = "bij,bjd->bid"}> : () -> ()
    %cst_46 = arith.constant dense<0.000000e+00> : vector<2x8x32xf32>
    %75 = tpu.matmul %74, %60, %cst_46 {dimension_numbers = #tpu.dot_dimension_numbers<[2], [1], [1], [2], [0, 0, 0, 1, 1, 2], [0], [0]>} : vector<2x8x8xbf16>, vector<2x8x32xbf16>, vector<2x8x32xf32> -> vector<2x8x32xf32>
    "tpu.trace_stop"() : () -> ()
    %76 = vector.shape_cast %75 : vector<2x8x32xf32> to vector<16x32xf32>
    %77 = arith.truncf %76 : vector<16x32xf32> to vector<16x32xbf16>
    %c1_47 = arith.constant 1 : index
    %c0_48 = arith.constant 0 : index
    %c0_49 = arith.constant 0 : index
    %78 = vector.load %arg5[%c1_47, %c0_48, %c0_49] : memref<4x32x128xbf16, #tpu.memory_space<vmem>>, vector<1x32x128xbf16>
    %79 = vector.shape_cast %78 : vector<1x32x128xbf16> to vector<32x128xbf16>
    %cst_50 = arith.constant dense<0.000000e+00> : vector<16x128xf32>
    %80 = tpu.matmul %77, %79, %cst_50 {dimension_numbers = #tpu.dot_dimension_numbers<[1], [0], [0], [1], [0, 0, 1, 1], [], []>} : vector<16x32xbf16>, vector<32x128xbf16>, vector<16x128xf32> -> vector<16x128xf32>
    %81 = arith.addf %45, %80 : vector<16x128xf32>
    %c2_51 = arith.constant 2 : index
    %c0_52 = arith.constant 0 : index
    %c0_53 = arith.constant 0 : index
    %82 = vector.load %arg2[%c2_51, %c0_52, %c0_53] : memref<4x128x32xbf16, #tpu.memory_space<vmem>>, vector<1x128x32xbf16>
    %83 = vector.shape_cast %82 : vector<1x128x32xbf16> to vector<128x32xbf16>
    %cst_54 = arith.constant dense<0.000000e+00> : vector<16x32xf32>
    %84 = tpu.matmul %8, %83, %cst_54 {dimension_numbers = #tpu.dot_dimension_numbers<[1], [0], [0], [1], [0, 0, 1, 1], [], []>} : vector<16x128xbf16>, vector<128x32xbf16>, vector<16x32xf32> -> vector<16x32xf32>
    %c2_55 = arith.constant 2 : index
    %c0_56 = arith.constant 0 : index
    %c0_57 = arith.constant 0 : index
    %85 = vector.load %arg3[%c2_55, %c0_56, %c0_57] : memref<4x128x32xbf16, #tpu.memory_space<vmem>>, vector<1x128x32xbf16>
    %86 = vector.shape_cast %85 : vector<1x128x32xbf16> to vector<128x32xbf16>
    %cst_58 = arith.constant dense<0.000000e+00> : vector<16x32xf32>
    %87 = tpu.matmul %8, %86, %cst_58 {dimension_numbers = #tpu.dot_dimension_numbers<[1], [0], [0], [1], [0, 0, 1, 1], [], []>} : vector<16x128xbf16>, vector<128x32xbf16>, vector<16x32xf32> -> vector<16x32xf32>
    %c2_59 = arith.constant 2 : index
    %c0_60 = arith.constant 0 : index
    %c0_61 = arith.constant 0 : index
    %88 = vector.load %arg4[%c2_59, %c0_60, %c0_61] : memref<4x128x32xbf16, #tpu.memory_space<vmem>>, vector<1x128x32xbf16>
    %89 = vector.shape_cast %88 : vector<1x128x32xbf16> to vector<128x32xbf16>
    %cst_62 = arith.constant dense<0.000000e+00> : vector<16x32xf32>
    %90 = tpu.matmul %8, %89, %cst_62 {dimension_numbers = #tpu.dot_dimension_numbers<[1], [0], [0], [1], [0, 0, 1, 1], [], []>} : vector<16x128xbf16>, vector<128x32xbf16>, vector<16x32xf32> -> vector<16x32xf32>
    %91 = vector.shape_cast %84 : vector<16x32xf32> to vector<2x8x32xf32>
    %92 = arith.truncf %91 : vector<2x8x32xf32> to vector<2x8x32xbf16>
    %93 = vector.shape_cast %87 : vector<16x32xf32> to vector<2x8x32xf32>
    %94 = arith.truncf %93 : vector<2x8x32xf32> to vector<2x8x32xbf16>
    %95 = vector.shape_cast %90 : vector<16x32xf32> to vector<2x8x32xf32>
    %96 = arith.truncf %95 : vector<2x8x32xf32> to vector<2x8x32xbf16>
    "tpu.trace_start"() <{level = 10 : i32, message = "bid,bjd->bij"}> : () -> ()
    %cst_63 = arith.constant dense<0.000000e+00> : vector<2x8x8xf32>
    %97 = tpu.matmul %92, %94, %cst_63 {dimension_numbers = #tpu.dot_dimension_numbers<[2], [2], [1], [1], [0, 0, 0, 1, 1, 1], [0], [0]>} : vector<2x8x32xbf16>, vector<2x8x32xbf16>, vector<2x8x8xf32> -> vector<2x8x8xf32>
    "tpu.trace_stop"() : () -> ()
    %cst_64 = arith.constant 0.176776692 : f32
    %98 = vector.broadcast %cst_64 : f32 to vector<2x8x8xf32>
    %99 = arith.mulf %97, %98 : vector<2x8x8xf32>
    %cst_65 = arith.constant dense<0xFF800000> : vector<2x8xf32>
    %100 = vector.multi_reduction <maximumf>, %99, %cst_65 [2] : vector<2x8x8xf32> to vector<2x8xf32>
    %101 = vector.shape_cast %100 : vector<2x8xf32> to vector<2x8x1xf32>
    %102 = vector.broadcast %101 : vector<2x8x1xf32> to vector<2x8x8xf32>
    %103 = arith.subf %99, %102 : vector<2x8x8xf32>
    %104 = math.exp %103 : vector<2x8x8xf32>
    %cst_66 = arith.constant dense<0.000000e+00> : vector<2x8xf32>
    %105 = vector.multi_reduction <add>, %104, %cst_66 [2] : vector<2x8x8xf32> to vector<2x8xf32>
    %106 = vector.shape_cast %105 : vector<2x8xf32> to vector<2x8x1xf32>
    %107 = tpu.reciprocal %106 {approx = true} : vector<2x8x1xf32> -> vector<2x8x1xf32>
    %108 = vector.broadcast %107 : vector<2x8x1xf32> to vector<2x8x8xf32>
    %109 = arith.mulf %104, %108 : vector<2x8x8xf32>
    %110 = arith.truncf %109 : vector<2x8x8xf32> to vector<2x8x8xbf16>
    "tpu.trace_start"() <{level = 10 : i32, message = "bij,bjd->bid"}> : () -> ()
    %cst_67 = arith.constant dense<0.000000e+00> : vector<2x8x32xf32>
    %111 = tpu.matmul %110, %96, %cst_67 {dimension_numbers = #tpu.dot_dimension_numbers<[2], [1], [1], [2], [0, 0, 0, 1, 1, 2], [0], [0]>} : vector<2x8x8xbf16>, vector<2x8x32xbf16>, vector<2x8x32xf32> -> vector<2x8x32xf32>
    "tpu.trace_stop"() : () -> ()
    %112 = vector.shape_cast %111 : vector<2x8x32xf32> to vector<16x32xf32>
    %113 = arith.truncf %112 : vector<16x32xf32> to vector<16x32xbf16>
    %c2_68 = arith.constant 2 : index
    %c0_69 = arith.constant 0 : index
    %c0_70 = arith.constant 0 : index
    %114 = vector.load %arg5[%c2_68, %c0_69, %c0_70] : memref<4x32x128xbf16, #tpu.memory_space<vmem>>, vector<1x32x128xbf16>
    %115 = vector.shape_cast %114 : vector<1x32x128xbf16> to vector<32x128xbf16>
    %cst_71 = arith.constant dense<0.000000e+00> : vector<16x128xf32>
    %116 = tpu.matmul %113, %115, %cst_71 {dimension_numbers = #tpu.dot_dimension_numbers<[1], [0], [0], [1], [0, 0, 1, 1], [], []>} : vector<16x32xbf16>, vector<32x128xbf16>, vector<16x128xf32> -> vector<16x128xf32>
    %117 = arith.addf %81, %116 : vector<16x128xf32>
    %c3_72 = arith.constant 3 : index
    %c0_73 = arith.constant 0 : index
    %c0_74 = arith.constant 0 : index
    %118 = vector.load %arg2[%c3_72, %c0_73, %c0_74] : memref<4x128x32xbf16, #tpu.memory_space<vmem>>, vector<1x128x32xbf16>
    %119 = vector.shape_cast %118 : vector<1x128x32xbf16> to vector<128x32xbf16>
    %cst_75 = arith.constant dense<0.000000e+00> : vector<16x32xf32>
    %120 = tpu.matmul %8, %119, %cst_75 {dimension_numbers = #tpu.dot_dimension_numbers<[1], [0], [0], [1], [0, 0, 1, 1], [], []>} : vector<16x128xbf16>, vector<128x32xbf16>, vector<16x32xf32> -> vector<16x32xf32>
    %c3_76 = arith.constant 3 : index
    %c0_77 = arith.constant 0 : index
    %c0_78 = arith.constant 0 : index
    %121 = vector.load %arg3[%c3_76, %c0_77, %c0_78] : memref<4x128x32xbf16, #tpu.memory_space<vmem>>, vector<1x128x32xbf16>
    %122 = vector.shape_cast %121 : vector<1x128x32xbf16> to vector<128x32xbf16>
    %cst_79 = arith.constant dense<0.000000e+00> : vector<16x32xf32>
    %123 = tpu.matmul %8, %122, %cst_79 {dimension_numbers = #tpu.dot_dimension_numbers<[1], [0], [0], [1], [0, 0, 1, 1], [], []>} : vector<16x128xbf16>, vector<128x32xbf16>, vector<16x32xf32> -> vector<16x32xf32>
    %c3_80 = arith.constant 3 : index
    %c0_81 = arith.constant 0 : index
    %c0_82 = arith.constant 0 : index
    %124 = vector.load %arg4[%c3_80, %c0_81, %c0_82] : memref<4x128x32xbf16, #tpu.memory_space<vmem>>, vector<1x128x32xbf16>
    %125 = vector.shape_cast %124 : vector<1x128x32xbf16> to vector<128x32xbf16>
    %cst_83 = arith.constant dense<0.000000e+00> : vector<16x32xf32>
    %126 = tpu.matmul %8, %125, %cst_83 {dimension_numbers = #tpu.dot_dimension_numbers<[1], [0], [0], [1], [0, 0, 1, 1], [], []>} : vector<16x128xbf16>, vector<128x32xbf16>, vector<16x32xf32> -> vector<16x32xf32>
    %127 = vector.shape_cast %120 : vector<16x32xf32> to vector<2x8x32xf32>
    %128 = arith.truncf %127 : vector<2x8x32xf32> to vector<2x8x32xbf16>
    %129 = vector.shape_cast %123 : vector<16x32xf32> to vector<2x8x32xf32>
    %130 = arith.truncf %129 : vector<2x8x32xf32> to vector<2x8x32xbf16>
    %131 = vector.shape_cast %126 : vector<16x32xf32> to vector<2x8x32xf32>
    %132 = arith.truncf %131 : vector<2x8x32xf32> to vector<2x8x32xbf16>
    "tpu.trace_start"() <{level = 10 : i32, message = "bid,bjd->bij"}> : () -> ()
    %cst_84 = arith.constant dense<0.000000e+00> : vector<2x8x8xf32>
    %133 = tpu.matmul %128, %130, %cst_84 {dimension_numbers = #tpu.dot_dimension_numbers<[2], [2], [1], [1], [0, 0, 0, 1, 1, 1], [0], [0]>} : vector<2x8x32xbf16>, vector<2x8x32xbf16>, vector<2x8x8xf32> -> vector<2x8x8xf32>
    "tpu.trace_stop"() : () -> ()
    %cst_85 = arith.constant 0.176776692 : f32
    %134 = vector.broadcast %cst_85 : f32 to vector<2x8x8xf32>
    %135 = arith.mulf %133, %134 : vector<2x8x8xf32>
    %cst_86 = arith.constant dense<0xFF800000> : vector<2x8xf32>
    %136 = vector.multi_reduction <maximumf>, %135, %cst_86 [2] : vector<2x8x8xf32> to vector<2x8xf32>
    %137 = vector.shape_cast %136 : vector<2x8xf32> to vector<2x8x1xf32>
    %138 = vector.broadcast %137 : vector<2x8x1xf32> to vector<2x8x8xf32>
    %139 = arith.subf %135, %138 : vector<2x8x8xf32>
    %140 = math.exp %139 : vector<2x8x8xf32>
    %cst_87 = arith.constant dense<0.000000e+00> : vector<2x8xf32>
    %141 = vector.multi_reduction <add>, %140, %cst_87 [2] : vector<2x8x8xf32> to vector<2x8xf32>
    %142 = vector.shape_cast %141 : vector<2x8xf32> to vector<2x8x1xf32>
    %143 = tpu.reciprocal %142 {approx = true} : vector<2x8x1xf32> -> vector<2x8x1xf32>
    %144 = vector.broadcast %143 : vector<2x8x1xf32> to vector<2x8x8xf32>
    %145 = arith.mulf %140, %144 : vector<2x8x8xf32>
    %146 = arith.truncf %145 : vector<2x8x8xf32> to vector<2x8x8xbf16>
    "tpu.trace_start"() <{level = 10 : i32, message = "bij,bjd->bid"}> : () -> ()
    %cst_88 = arith.constant dense<0.000000e+00> : vector<2x8x32xf32>
    %147 = tpu.matmul %146, %132, %cst_88 {dimension_numbers = #tpu.dot_dimension_numbers<[2], [1], [1], [2], [0, 0, 0, 1, 1, 2], [0], [0]>} : vector<2x8x8xbf16>, vector<2x8x32xbf16>, vector<2x8x32xf32> -> vector<2x8x32xf32>
    "tpu.trace_stop"() : () -> ()
    %148 = vector.shape_cast %147 : vector<2x8x32xf32> to vector<16x32xf32>
    %149 = arith.truncf %148 : vector<16x32xf32> to vector<16x32xbf16>
    %c3_89 = arith.constant 3 : index
    %c0_90 = arith.constant 0 : index
    %c0_91 = arith.constant 0 : index
    %150 = vector.load %arg5[%c3_89, %c0_90, %c0_91] : memref<4x32x128xbf16, #tpu.memory_space<vmem>>, vector<1x32x128xbf16>
    %151 = vector.shape_cast %150 : vector<1x32x128xbf16> to vector<32x128xbf16>
    %cst_92 = arith.constant dense<0.000000e+00> : vector<16x128xf32>
    %152 = tpu.matmul %149, %151, %cst_92 {dimension_numbers = #tpu.dot_dimension_numbers<[1], [0], [0], [1], [0, 0, 1, 1], [], []>} : vector<16x32xbf16>, vector<32x128xbf16>, vector<16x128xf32> -> vector<16x128xf32>
    %153 = arith.addf %117, %152 : vector<16x128xf32>
    %154 = vector.broadcast %0 : vector<1x128xf32> to vector<16x128xf32>
    %155 = arith.addf %153, %154 : vector<16x128xf32>
    %156 = arith.addf %155, %7 : vector<16x128xf32>
    %cst_93 = arith.constant dense<0.000000e+00> : vector<16xf32>
    %157 = vector.multi_reduction <add>, %156, %cst_93 [1] : vector<16x128xf32> to vector<16xf32>
    %158 = vector.shape_cast %157 : vector<16xf32> to vector<16x1xf32>
    %cst_94 = arith.constant 1.280000e+02 : f32
    %159 = vector.broadcast %cst_94 : f32 to vector<16x1xf32>
    %160 = arith.divf %158, %159 : vector<16x1xf32>
    %161 = vector.broadcast %160 : vector<16x1xf32> to vector<16x128xf32>
    %162 = arith.subf %156, %161 : vector<16x128xf32>
    %163 = arith.mulf %162, %162 : vector<16x128xf32>
    %cst_95 = arith.constant dense<0.000000e+00> : vector<16xf32>
    %164 = vector.multi_reduction <add>, %163, %cst_95 [1] : vector<16x128xf32> to vector<16xf32>
    %165 = vector.shape_cast %164 : vector<16xf32> to vector<16x1xf32>
    %cst_96 = arith.constant 1.280000e+02 : f32
    %166 = vector.broadcast %cst_96 : f32 to vector<16x1xf32>
    %167 = arith.divf %165, %166 : vector<16x1xf32>
    %cst_97 = arith.constant 9.99999974E-6 : f32
    %168 = vector.broadcast %cst_97 : f32 to vector<16x1xf32>
    %169 = arith.addf %167, %168 : vector<16x1xf32>
    %170 = math.rsqrt %169 : vector<16x1xf32>
    %171 = vector.broadcast %170 : vector<16x1xf32> to vector<16x128xf32>
    %172 = arith.mulf %162, %171 : vector<16x128xf32>
    %173 = vector.broadcast %1 : vector<1x128xf32> to vector<16x128xf32>
    %174 = arith.mulf %172, %173 : vector<16x128xf32>
    %175 = vector.broadcast %2 : vector<1x128xf32> to vector<16x128xf32>
    %176 = arith.addf %174, %175 : vector<16x128xf32>
    %177 = arith.truncf %176 : vector<16x128xf32> to vector<16x128xbf16>
    %c0_98 = arith.constant 0 : index
    %c0_99 = arith.constant 0 : index
    %178 = vector.load %arg6[%c0_98, %c0_99] : memref<128x256xbf16, #tpu.memory_space<vmem>>, vector<128x256xbf16>
    %cst_100 = arith.constant dense<0.000000e+00> : vector<16x256xf32>
    %179 = tpu.matmul %177, %178, %cst_100 {dimension_numbers = #tpu.dot_dimension_numbers<[1], [0], [0], [1], [0, 0, 1, 1], [], []>} : vector<16x128xbf16>, vector<128x256xbf16>, vector<16x256xf32> -> vector<16x256xf32>
    %c0_101 = arith.constant 0 : index
    %c0_102 = arith.constant 0 : index
    %180 = vector.load %arg8[%c0_101, %c0_102] : memref<1x256xf32, #tpu.memory_space<vmem>>, vector<1x256xf32>
    %181 = vector.broadcast %180 : vector<1x256xf32> to vector<16x256xf32>
    %182 = arith.addf %179, %181 : vector<16x256xf32>
    %cst_103 = arith.constant 0.000000e+00 : f32
    %183 = vector.broadcast %cst_103 : f32 to vector<16x256xf32>
    %184 = arith.maximumf %182, %183 : vector<16x256xf32>
    %185 = arith.truncf %184 : vector<16x256xf32> to vector<16x256xbf16>
    %c0_104 = arith.constant 0 : index
    %c0_105 = arith.constant 0 : index
    %186 = vector.load %arg7[%c0_104, %c0_105] : memref<256x128xbf16, #tpu.memory_space<vmem>>, vector<256x128xbf16>
    %cst_106 = arith.constant dense<0.000000e+00> : vector<16x128xf32>
    %187 = tpu.matmul %185, %186, %cst_106 {dimension_numbers = #tpu.dot_dimension_numbers<[1], [0], [0], [1], [0, 0, 1, 1], [], []>} : vector<16x256xbf16>, vector<256x128xbf16>, vector<16x128xf32> -> vector<16x128xf32>
    %188 = vector.broadcast %3 : vector<1x128xf32> to vector<16x128xf32>
    %189 = arith.addf %187, %188 : vector<16x128xf32>
    %190 = arith.addf %189, %176 : vector<16x128xf32>
    %cst_107 = arith.constant dense<0.000000e+00> : vector<16xf32>
    %191 = vector.multi_reduction <add>, %190, %cst_107 [1] : vector<16x128xf32> to vector<16xf32>
    %192 = vector.shape_cast %191 : vector<16xf32> to vector<16x1xf32>
    %cst_108 = arith.constant 1.280000e+02 : f32
    %193 = vector.broadcast %cst_108 : f32 to vector<16x1xf32>
    %194 = arith.divf %192, %193 : vector<16x1xf32>
    %195 = vector.broadcast %194 : vector<16x1xf32> to vector<16x128xf32>
    %196 = arith.subf %190, %195 : vector<16x128xf32>
    %197 = arith.mulf %196, %196 : vector<16x128xf32>
    %cst_109 = arith.constant dense<0.000000e+00> : vector<16xf32>
    %198 = vector.multi_reduction <add>, %197, %cst_109 [1] : vector<16x128xf32> to vector<16xf32>
    %199 = vector.shape_cast %198 : vector<16xf32> to vector<16x1xf32>
    %cst_110 = arith.constant 1.280000e+02 : f32
    %200 = vector.broadcast %cst_110 : f32 to vector<16x1xf32>
    %201 = arith.divf %199, %200 : vector<16x1xf32>
    %cst_111 = arith.constant 9.99999974E-6 : f32
    %202 = vector.broadcast %cst_111 : f32 to vector<16x1xf32>
    %203 = arith.addf %201, %202 : vector<16x1xf32>
    %204 = math.rsqrt %203 : vector<16x1xf32>
    %205 = vector.broadcast %204 : vector<16x1xf32> to vector<16x128xf32>
    %206 = arith.mulf %196, %205 : vector<16x128xf32>
    %207 = vector.broadcast %4 : vector<1x128xf32> to vector<16x128xf32>
    %208 = arith.mulf %206, %207 : vector<16x128xf32>
    %209 = vector.broadcast %5 : vector<1x128xf32> to vector<16x128xf32>
    %210 = arith.addf %208, %209 : vector<16x128xf32>
    %211 = vector.shape_cast %210 : vector<16x128xf32> to vector<2x8x128xf32>
    %c0_112 = arith.constant 0 : index
    %c0_113 = arith.constant 0 : index
    %c0_114 = arith.constant 0 : index
    %212 = vector.load %arg10[%c0_112, %c0_113, %c0_114] : memref<2x8x128xf32, #tpu.memory_space<vmem>>, vector<2x8x128xf32>
    tpu.vector_store %arg10[%c0_112, %c0_113, %c0_114], %211 {strides = array<i32>} : memref<2x8x128xf32, #tpu.memory_space<vmem>>, vector<2x8x128xf32>,
    return
  }
  func.func @transform_0(%arg0: i32) -> (i32, i32, i32) {
    %c0_i32 = arith.constant 0 : i32
    %c0_i32_0 = arith.constant 0 : i32
    %c0_i32_1 = arith.constant 0 : i32
    return %arg0, %c0_i32, %c0_i32_0 : i32, i32, i32
  }
  func.func @transform_1(%arg0: i32) -> (i32, i32, i32) {
    %c0_i32 = arith.constant 0 : i32
    %c0_i32_0 = arith.constant 0 : i32
    %c0_i32_1 = arith.constant 0 : i32
    %c0_i32_2 = arith.constant 0 : i32
    return %c0_i32, %c0_i32_0, %c0_i32_1 : i32, i32, i32
  }
  func.func @transform_2(%arg0: i32) -> (i32, i32, i32) {
    %c0_i32 = arith.constant 0 : i32
    %c0_i32_0 = arith.constant 0 : i32
    %c0_i32_1 = arith.constant 0 : i32
    %c0_i32_2 = arith.constant 0 : i32
    return %c0_i32, %c0_i32_0, %c0_i32_1 : i32, i32, i32
  }
  func.func @transform_3(%arg0: i32) -> (i32, i32, i32) {
    %c0_i32 = arith.constant 0 : i32
    %c0_i32_0 = arith.constant 0 : i32
    %c0_i32_1 = arith.constant 0 : i32
    %c0_i32_2 = arith.constant 0 : i32
    return %c0_i32, %c0_i32_0, %c0_i32_1 : i32, i32, i32
  }
  func.func @transform_4(%arg0: i32) -> (i32, i32, i32) {
    %c0_i32 = arith.constant 0 : i32
    %c0_i32_0 = arith.constant 0 : i32
    %c0_i32_1 = arith.constant 0 : i32
    %c0_i32_2 = arith.constant 0 : i32
    return %c0_i32, %c0_i32_0, %c0_i32_1 : i32, i32, i32
  }
  func.func @transform_5(%arg0: i32) -> (i32, i32) {
    %c0_i32 = arith.constant 0 : i32
    %c0_i32_0 = arith.constant 0 : i32
    %c0_i32_1 = arith.constant 0 : i32
    return %c0_i32, %c0_i32_0 : i32, i32
  }
  func.func @transform_6(%arg0: i32) -> (i32, i32) {
    %c0_i32 = arith.constant 0 : i32
    %c0_i32_0 = arith.constant 0 : i32
    %c0_i32_1 = arith.constant 0 : i32
    return %c0_i32, %c0_i32_0 : i32, i32
  }
  func.func @transform_7(%arg0: i32) -> (i32, i32) {
    %c0_i32 = arith.constant 0 : i32
    %c0_i32_0 = arith.constant 0 : i32
    %c0_i32_1 = arith.constant 0 : i32
    return %c0_i32, %c0_i32_0 : i32, i32
  }
  func.func @transform_8(%arg0: i32) -> (i32, i32) {
    %c0_i32 = arith.constant 0 : i32
    %c0_i32_0 = arith.constant 0 : i32
    %c0_i32_1 = arith.constant 0 : i32
    return %c0_i32, %c0_i32_0 : i32, i32
  }
  func.func @transform_9(%arg0: i32) -> (i32, i32, i32) {
    %c0_i32 = arith.constant 0 : i32
    %c0_i32_0 = arith.constant 0 : i32
    %c0_i32_1 = arith.constant 0 : i32
    return %arg0, %c0_i32, %c0_i32_0 : i32, i32, i32
  }
}

</mosaic_0001>

<llo_original>
// kernel: tpu_custom_call.1
$region0: #{tpu_custom_call.1}
  #allocation0 [shape = 'u32[]', space=smem, size = 0x4, offset = 0x4, fixed_abs, tag = 'smem constant byte address 0x4 - core index']
  #allocation1 [shape = 'u32[144,128]{1,0:T(1,128)}', space=vmem, size = 0x12000, scoped, tag = 'internal scratch']
  %s0 = inlined_call_operand.vmem [shape: f32[2,8,128], index: 0, kind: input, shape index: {}]
  %s1 = inlined_call_operand.vmem [shape: bf16[4,128,32], index: 1, kind: input, shape index: {}]
  %s2 = inlined_call_operand.vmem [shape: bf16[4,128,32], index: 2, kind: input, shape index: {}]
  %s3 = inlined_call_operand.vmem [shape: bf16[4,128,32], index: 3, kind: input, shape index: {}]
  %s4 = inlined_call_operand.vmem [shape: bf16[4,32,128], index: 4, kind: input, shape index: {}]
  %s5 = inlined_call_operand.vmem [shape: bf16[128,256], index: 5, kind: input, shape index: {}]
  %s6 = inlined_call_operand.vmem [shape: bf16[256,128], index: 6, kind: input, shape index: {}]
  %s7 = inlined_call_operand.vmem [shape: f32[1,256], index: 7, kind: input, shape index: {}]
  %s8 = inlined_call_operand.vmem [shape: f32[8,128], index: 8, kind: input, shape index: {}]
  %s9 = inlined_call_operand.hbm [shape: f32[2,8,128], index: 9, kind: output, shape index: {}]
  %s10 = sld [smem:[#allocation0]]
  $region46: #{tpu_custom_call.1} parent=0
    _
  %s12 = ssub.s32 1, %s10
  %s13 = scalar_select 0, %s12, %s10
  $region1: #{tpu_custom_call.1} parent=0
    #allocation2 [shape = 'u8[8192]{0}', space=vmem, size = 0x2000, scoped, tag = 'output window, operand 0, single buffered']
    #allocation3 [shape = 's32[1]{0}', space=sflag, size = 0x4, scoped, tag = 'scoped memory for tpu_custom_call.1']
    %14 = vsyncpa [#allocation3], 0
    // Predicated region
    $region2: #{tpu_custom_call.1} parent=1 // pred_check
      _
    $region3: #{tpu_custom_call.1} parent=1 // pred_check_branch
      %16 = sbr.rel (0) target = $region5
    $region4: #{tpu_custom_call.1} parent=1 // pred_region
      _
    $region5: #{tpu_custom_call.1} parent=1 // pred_fallthru
      _
    // Predicated region
    $region6: #{tpu_custom_call.1} parent=1 // pred_check
      _
    $region7: #{tpu_custom_call.1} parent=1 // pred_check_branch
      %18 = sbr.rel (0) target = $region9
    $region8: #{tpu_custom_call.1} parent=1 // pred_region
      _
    $region9: #{tpu_custom_call.1} parent=1 // pred_fallthru
      _
    // Predicated region
    $region10: #{tpu_custom_call.1} parent=1 // pred_check
      _
    $region11: #{tpu_custom_call.1} parent=1 // pred_check_branch
      %20 = sbr.rel (0) target = $region13
    $region12: #{tpu_custom_call.1} parent=1 // pred_region
      _
    $region13: #{tpu_custom_call.1} parent=1 // pred_fallthru
      _
    // Predicated region
    $region14: #{tpu_custom_call.1} parent=1 // pred_check
      _
    $region15: #{tpu_custom_call.1} parent=1 // pred_check_branch
      %22 = sbr.rel (0) target = $region17
    $region16: #{tpu_custom_call.1} parent=1 // pred_region
      _
    $region17: #{tpu_custom_call.1} parent=1 // pred_fallthru
      _
    // Predicated region
    $region18: #{tpu_custom_call.1} parent=1 // pred_check
      _
    $region19: #{tpu_custom_call.1} parent=1 // pred_check_branch
      %24 = sbr.rel (0) target = $region21
    $region20: #{tpu_custom_call.1} parent=1 // pred_region
      _
    $region21: #{tpu_custom_call.1} parent=1 // pred_fallthru
      _
    // Predicated region
    $region22: #{tpu_custom_call.1} parent=1 // pred_check
      _
    $region23: #{tpu_custom_call.1} parent=1 // pred_check_branch
      %26 = sbr.rel (0) target = $region25
    $region24: #{tpu_custom_call.1} parent=1 // pred_region
      _
    $region25: #{tpu_custom_call.1} parent=1 // pred_fallthru
      _
    // Predicated region
    $region26: #{tpu_custom_call.1} parent=1 // pred_check
      _
    $region27: #{tpu_custom_call.1} parent=1 // pred_check_branch
      %28 = sbr.rel (0) target = $region29
    $region28: #{tpu_custom_call.1} parent=1 // pred_region
      _
    $region29: #{tpu_custom_call.1} parent=1 // pred_fallthru
      _
    // Predicated region
    $region30: #{tpu_custom_call.1} parent=1 // pred_check
      _
    $region31: #{tpu_custom_call.1} parent=1 // pred_check_branch
      %30 = sbr.rel (0) target = $region33
    $region32: #{tpu_custom_call.1} parent=1 // pred_region
      _
    $region33: #{tpu_custom_call.1} parent=1 // pred_fallthru
      _
    // Predicated region
    $region34: #{tpu_custom_call.1} parent=1 // pred_check
      _
    $region35: #{tpu_custom_call.1} parent=1 // pred_check_branch
      %32 = sbr.rel (0) target = $region37
    $region36: #{tpu_custom_call.1} parent=1 // pred_region
      _
    $region37: #{tpu_custom_call.1} parent=1 // pred_fallthru
      _
    %v34 = vld [vmem:[%s8] sm:$0x1]
    %v35 = vld [vmem:[%s8 + $0x1] sm:$0x1]
    %v36 = vld [vmem:[%s8 + $0x2] sm:$0x1]
    %v37 = vld [vmem:[%s8 + $0x3] sm:$0x1]
    %v38 = vld [vmem:[%s8 + $0x4] sm:$0x1]
    %v39 = vld [vmem:[%s8 + $0x5] sm:$0x1]
    %v40 = vld [vmem:[%s0] sm:$0xff]
    %v41 = vld [vmem:[%s0 + $0x8] sm:$0xff]
    %v42 = vpack.c.bf16 %v41, %v40
    %v43 = vld [vmem:[%s1] sm:$0xf]
    %v44 = vld [vmem:[%s1 + $0x4] sm:$0xf]
    %v45 = vld [vmem:[%s1 + $0x8] sm:$0xf]
    %v46 = vld [vmem:[%s1 + $0xc] sm:$0xf]
    %v47 = vld [vmem:[%s1 + $0x10] sm:$0xf]
    %v48 = vld [vmem:[%s1 + $0x14] sm:$0xf]
    %v49 = vld [vmem:[%s1 + $0x18] sm:$0xf]
    %v50 = vld [vmem:[%s1 + $0x1c] sm:$0xf]
    %v51 = vld [vmem:[%s1 + $0x20] sm:$0xf]
    %v52 = vld [vmem:[%s1 + $0x24] sm:$0xf]
    %v53 = vld [vmem:[%s1 + $0x28] sm:$0xf]
    %v54 = vld [vmem:[%s1 + $0x2c] sm:$0xf]
    %v55 = vld [vmem:[%s1 + $0x30] sm:$0xf]
    %v56 = vld [vmem:[%s1 + $0x34] sm:$0xf]
    %v57 = vld [vmem:[%s1 + $0x38] sm:$0xf]
    %v58 = vld [vmem:[%s1 + $0x3c] sm:$0xf]
    %v75 = vunpack.c.l.b16 %v43
    %v76 = vunpack.c.l.b16 %v44
    %v77 = vunpack.c.l.b16 %v45
    %v78 = vunpack.c.l.b16 %v46
    %v79 = vunpack.c.l.b16 %v47
    %v80 = vunpack.c.l.b16 %v48
    %v81 = vunpack.c.l.b16 %v49
    %v82 = vunpack.c.l.b16 %v50
    %v83 = vunpack.c.l.b16 %v51
    %v84 = vunpack.c.l.b16 %v52
    %v85 = vunpack.c.l.b16 %v53
    %v86 = vunpack.c.l.b16 %v54
    %v87 = vunpack.c.l.b16 %v55
    %v88 = vunpack.c.l.b16 %v56
    %v89 = vunpack.c.l.b16 %v57
    %v90 = vunpack.c.l.b16 %v58
    %v91 = vpack.c.b16 %v76, %v75
    %v92 = vpack.c.b16 %v78, %v77
    %v93 = vpack.c.b16 %v80, %v79
    %v94 = vpack.c.b16 %v82, %v81
    %v95 = vpack.c.b16 %v84, %v83
    %v96 = vpack.c.b16 %v86, %v85
    %v97 = vpack.c.b16 %v88, %v87
    %v98 = vpack.c.b16 %v90, %v89
    %107 = vmatprep.subr.bf16.mxu0 0
    %108 = vmatpush1.bf16.msra.mxu0 %v98
    %109 = vmatprep.subr.bf16.mxu0 0
    %110 = vmatpush1.bf16.msra.mxu0 %v97
    %111 = vmatprep.subr.bf16.mxu0 0
    %112 = vmatpush1.bf16.msra.mxu0 %v96
    %113 = vmatprep.subr.bf16.mxu0 0
    %114 = vmatpush1.bf16.msra.mxu0 %v95
    %115 = vmatprep.subr.bf16.mxu0 0
    %116 = vmatpush1.bf16.msra.mxu0 %v94
    %117 = vmatprep.subr.bf16.mxu0 0
    %118 = vmatpush1.bf16.msra.mxu0 %v93
    %119 = vmatprep.subr.bf16.mxu0 0
    %120 = vmatpush1.bf16.msra.mxu0 %v92
    %121 = vmatprep.subr.bf16.mxu0 0
    %122 = vmatpush1.bf16.msra.mxu0 %v91
    %123 = vmatprep.subr.bf16.mxu0 0
    %124 = vmatpush2.bf16.msra.mxu0 0
    %125 = vmatprep.subr.bf16.mxu0 0
    %126 = vmatpush2.bf16.msra.mxu0 0
    %127 = vmatprep.subr.bf16.mxu0 0
    %128 = vmatpush2.bf16.msra.mxu0 0
    %129 = vmatprep.subr.bf16.mxu0 0
    %130 = vmatpush2.bf16.msra.mxu0 0
    %131 = vmatprep.subr.bf16.mxu0 0
    %132 = vmatpush2.bf16.msra.mxu0 0
    %133 = vmatprep.subr.bf16.mxu0 0
    %134 = vmatpush2.bf16.msra.mxu0 0
    %135 = vmatprep.subr.bf16.mxu0 0
    %136 = vmatpush2.bf16.msra.mxu0 0
    %137 = vmatprep.subr.bf16.mxu0 0
    %138 = vmatpush2.bf16.msra.mxu0 0
    %139 = vmatprep.mubr.bf16.mxu0 0
    %140 = vmatmul.mubr.bf16.gmra.mxu0 %v42
    %v141 = vpop.f32.mrf.mxu0
    %v142 = vadd.f32 0.0, %v141
    %v143 = vpop.f32.mrf.mxu0
    %v144 = vpop.f32.mrf.mxu0
    %v145 = vadd.f32 0.0, %v144
    %v146 = vpop.f32.mrf.mxu0
    %147 = vdwg.mxu0
    %v148 = vld [vmem:[%s2] sm:$0xf]
    %v149 = vld [vmem:[%s2 + $0x4] sm:$0xf]
    %v150 = vld [vmem:[%s2 + $0x8] sm:$0xf]
    %v151 = vld [vmem:[%s2 + $0xc] sm:$0xf]
    %v152 = vld [vmem:[%s2 + $0x10] sm:$0xf]
    %v153 = vld [vmem:[%s2 + $0x14] sm:$0xf]
    %v154 = vld [vmem:[%s2 + $0x18] sm:$0xf]
    %v155 = vld [vmem:[%s2 + $0x1c] sm:$0xf]
    %v156 = vld [vmem:[%s2 + $0x20] sm:$0xf]
    %v157 = vld [vmem:[%s2 + $0x24] sm:$0xf]
    %v158 = vld [vmem:[%s2 + $0x28] sm:$0xf]
    %v159 = vld [vmem:[%s2 + $0x2c] sm:$0xf]
    %v160 = vld [vmem:[%s2 + $0x30] sm:$0xf]
    %v161 = vld [vmem:[%s2 + $0x34] sm:$0xf]
    %v162 = vld [vmem:[%s2 + $0x38] sm:$0xf]
    %v163 = vld [vmem:[%s2 + $0x3c] sm:$0xf]
    %v180 = vunpack.c.l.b16 %v148
    %v181 = vunpack.c.l.b16 %v149
    %v182 = vunpack.c.l.b16 %v150
    %v183 = vunpack.c.l.b16 %v151
    %v184 = vunpack.c.l.b16 %v152
    %v185 = vunpack.c.l.b16 %v153
    %v186 = vunpack.c.l.b16 %v154
    %v187 = vunpack.c.l.b16 %v155
    %v188 = vunpack.c.l.b16 %v156
    %v189 = vunpack.c.l.b16 %v157
    %v190 = vunpack.c.l.b16 %v158
    %v191 = vunpack.c.l.b16 %v159
    %v192 = vunpack.c.l.b16 %v160
    %v193 = vunpack.c.l.b16 %v161
    %v194 = vunpack.c.l.b16 %v162
    %v195 = vunpack.c.l.b16 %v163
    %v196 = vpack.c.b16 %v181, %v180
    %v197 = vpack.c.b16 %v183, %v182
    %v198 = vpack.c.b16 %v185, %v184
    %v199 = vpack.c.b16 %v187, %v186
    %v200 = vpack.c.b16 %v189, %v188
    %v201 = vpack.c.b16 %v191, %v190
    %v202 = vpack.c.b16 %v193, %v192
    %v203 = vpack.c.b16 %v195, %v194
    %212 = vmatprep.subr.bf16.mxu0 0
    %213 = vmatpush1.bf16.msra.mxu0 %v203
    %214 = vmatprep.subr.bf16.mxu0 0
    %215 = vmatpush1.bf16.msra.mxu0 %v202
    %216 = vmatprep.subr.bf16.mxu0 0
    %217 = vmatpush1.bf16.msra.mxu0 %v201
    %218 = vmatprep.subr.bf16.mxu0 0
    %219 = vmatpush1.bf16.msra.mxu0 %v200
    %220 = vmatprep.subr.bf16.mxu0 0
    %221 = vmatpush1.bf16.msra.mxu0 %v199
    %222 = vmatprep.subr.bf16.mxu0 0
    %223 = vmatpush1.bf16.msra.mxu0 %v198
    %224 = vmatprep.subr.bf16.mxu0 0
    %225 = vmatpush1.bf16.msra.mxu0 %v197
    %226 = vmatprep.subr.bf16.mxu0 0
    %227 = vmatpush1.bf16.msra.mxu0 %v196
    %228 = vmatprep.subr.bf16.mxu0 0
    %229 = vmatpush2.bf16.msra.mxu0 0
    %230 = vmatprep.subr.bf16.mxu0 0
    %231 = vmatpush2.bf16.msra.mxu0 0
    %232 = vmatprep.subr.bf16.mxu0 0
    %233 = vmatpush2.bf16.msra.mxu0 0
    %234 = vmatprep.subr.bf16.mxu0 0
    %235 = vmatpush2.bf16.msra.mxu0 0
    %236 = vmatprep.subr.bf16.mxu0 0
    %237 = vmatpush2.bf16.msra.mxu0 0
    %238 = vmatprep.subr.bf16.mxu0 0
    %239 = vmatpush2.bf16.msra.mxu0 0
    %240 = vmatprep.subr.bf16.mxu0 0
    %241 = vmatpush2.bf16.msra.mxu0 0
    %242 = vmatprep.subr.bf16.mxu0 0
    %243 = vmatpush2.bf16.msra.mxu0 0
    %244 = vmatprep.mubr.bf16.mxu0 0
    %245 = vmatmul.mubr.bf16.gmra.mxu0 %v42
    %v246 = vpop.f32.mrf.mxu0
    %v247 = vadd.f32 0.0, %v246
    %v248 = vpop.f32.mrf.mxu0
    %v249 = vpop.f32.mrf.mxu0
    %v250 = vadd.f32 0.0, %v249
    %v251 = vpop.f32.mrf.mxu0
    %252 = vdwg.mxu0
    %v253 = vld [vmem:[%s3] sm:$0xf]
    %v254 = vld [vmem:[%s3 + $0x4] sm:$0xf]
    %v255 = vld [vmem:[%s3 + $0x8] sm:$0xf]
    %v256 = vld [vmem:[%s3 + $0xc] sm:$0xf]
    %v257 = vld [vmem:[%s3 + $0x10] sm:$0xf]
    %v258 = vld [vmem:[%s3 + $0x14] sm:$0xf]
    %v259 = vld [vmem:[%s3 + $0x18] sm:$0xf]
    %v260 = vld [vmem:[%s3 + $0x1c] sm:$0xf]
    %v261 = vld [vmem:[%s3 + $0x20] sm:$0xf]
    %v262 = vld [vmem:[%s3 + $0x24] sm:$0xf]
    %v263 = vld [vmem:[%s3 + $0x28] sm:$0xf]
    %v264 = vld [vmem:[%s3 + $0x2c] sm:$0xf]
    %v265 = vld [vmem:[%s3 + $0x30] sm:$0xf]
    %v266 = vld [vmem:[%s3 + $0x34] sm:$0xf]
    %v267 = vld [vmem:[%s3 + $0x38] sm:$0xf]
    %v268 = vld [vmem:[%s3 + $0x3c] sm:$0xf]
    %v285 = vunpack.c.l.b16 %v253
    %v286 = vunpack.c.l.b16 %v254
    %v287 = vunpack.c.l.b16 %v255
    %v288 = vunpack.c.l.b16 %v256
    %v289 = vunpack.c.l.b16 %v257
    %v290 = vunpack.c.l.b16 %v258
    %v291 = vunpack.c.l.b16 %v259
    %v292 = vunpack.c.l.b16 %v260
    %v293 = vunpack.c.l.b16 %v261
    %v294 = vunpack.c.l.b16 %v262
    %v295 = vunpack.c.l.b16 %v263
    %v296 = vunpack.c.l.b16 %v264
    %v297 = vunpack.c.l.b16 %v265
    %v298 = vunpack.c.l.b16 %v266
    %v299 = vunpack.c.l.b16 %v267
    %v300 = vunpack.c.l.b16 %v268
    %v301 = vpack.c.b16 %v286, %v285
    %v302 = vpack.c.b16 %v288, %v287
    %v303 = vpack.c.b16 %v290, %v289
    %v304 = vpack.c.b16 %v292, %v291
    %v305 = vpack.c.b16 %v294, %v293
    %v306 = vpack.c.b16 %v296, %v295
    %v307 = vpack.c.b16 %v298, %v297
    %v308 = vpack.c.b16 %v300, %v299
    %317 = vmatprep.subr.bf16.mxu0 0
    %318 = vmatpush1.bf16.msra.mxu0 %v308
    %319 = vmatprep.subr.bf16.mxu0 0
    %320 = vmatpush1.bf16.msra.mxu0 %v307
    %321 = vmatprep.subr.bf16.mxu0 0
    %322 = vmatpush1.bf16.msra.mxu0 %v306
    %323 = vmatprep.subr.bf16.mxu0 0
    %324 = vmatpush1.bf16.msra.mxu0 %v305
    %325 = vmatprep.subr.bf16.mxu0 0
    %326 = vmatpush1.bf16.msra.mxu0 %v304
    %327 = vmatprep.subr.bf16.mxu0 0
    %328 = vmatpush1.bf16.msra.mxu0 %v303
    %329 = vmatprep.subr.bf16.mxu0 0
    %330 = vmatpush1.bf16.msra.mxu0 %v302
    %331 = vmatprep.subr.bf16.mxu0 0
    %332 = vmatpush1.bf16.msra.mxu0 %v301
    %333 = vmatprep.subr.bf16.mxu0 0
    %334 = vmatpush2.bf16.msra.mxu0 0
    %335 = vmatprep.subr.bf16.mxu0 0
    %336 = vmatpush2.bf16.msra.mxu0 0
    %337 = vmatprep.subr.bf16.mxu0 0
    %338 = vmatpush2.bf16.msra.mxu0 0
    %339 = vmatprep.subr.bf16.mxu0 0
    %340 = vmatpush2.bf16.msra.mxu0 0
    %341 = vmatprep.subr.bf16.mxu0 0
    %342 = vmatpush2.bf16.msra.mxu0 0
    %343 = vmatprep.subr.bf16.mxu0 0
    %344 = vmatpush2.bf16.msra.mxu0 0
    %345 = vmatprep.subr.bf16.mxu0 0
    %346 = vmatpush2.bf16.msra.mxu0 0
    %347 = vmatprep.subr.bf16.mxu0 0
    %348 = vmatpush2.bf16.msra.mxu0 0
    %349 = vmatprep.mubr.bf16.mxu0 0
    %350 = vmatmul.mubr.bf16.gmra.mxu0 %v42
    %v351 = vpop.f32.mrf.mxu0
    %v352 = vadd.f32 0.0, %v351
    %v353 = vpop.f32.mrf.mxu0
    %v354 = vpop.f32.mrf.mxu0
    %v355 = vadd.f32 0.0, %v354
    %v356 = vpop.f32.mrf.mxu0
    %357 = vdwg.mxu0
    %v358 = vpack.c.bf16 %v142, %v142
    %v359 = vpack.c.bf16 %v145, %v145
    %v360 = vpack.c.bf16 %v247, %v247
    %v361 = vpack.c.bf16 %v250, %v250
    %v362 = vpack.c.bf16 %v352, %v352
    %v363 = vpack.c.bf16 %v355, %v355
    %vm364 = vcmask 261120
    %v366 = vsel %vm364, %v358, 0
    %v369 = vsel %vm364, %v360, 0
    %371 = vmatprep.subr.bf16.mxu0 0
    %372 = vmatpush1.bf16.xpose.msra.mxu0 0
    %373 = vmatprep.subr.bf16.mxu0 0
    %374 = vmatpush1.bf16.xpose.msra.mxu0 0
    %375 = vmatprep.subr.bf16.mxu0 0
    %376 = vmatpush1.bf16.xpose.msra.mxu0 0
    %377 = vmatprep.subr.bf16.mxu0 0
    %378 = vmatpush1.bf16.xpose.msra.mxu0 0
    %379 = vmatprep.subr.bf16.mxu0 0
    %380 = vmatpush1.bf16.xpose.msra.mxu0 0
    %381 = vmatprep.subr.bf16.mxu0 0
    %382 = vmatpush1.bf16.xpose.msra.mxu0 0
    %383 = vmatprep.subr.bf16.mxu0 0
    %384 = vmatpush1.bf16.xpose.msra.mxu0 0
    %385 = vmatprep.subr.bf16.mxu0 0
    %386 = vmatpush1.bf16.xpose.msra.mxu0 %v369
    %387 = vmatprep.subr.bf16.mxu0 0
    %388 = vmatpush2.bf16.xpose.msra.mxu0 0
    %389 = vmatprep.subr.bf16.mxu0 0
    %390 = vmatpush2.bf16.xpose.msra.mxu0 0
    %391 = vmatprep.subr.bf16.mxu0 0
    %392 = vmatpush2.bf16.xpose.msra.mxu0 0
    %393 = vmatprep.subr.bf16.mxu0 0
    %394 = vmatpush2.bf16.xpose.msra.mxu0 0
    %395 = vmatprep.subr.bf16.mxu0 0
    %396 = vmatpush2.bf16.xpose.msra.mxu0 0
    %397 = vmatprep.subr.bf16.mxu0 0
    %398 = vmatpush2.bf16.xpose.msra.mxu0 0
    %399 = vmatprep.subr.bf16.mxu0 0
    %400 = vmatpush2.bf16.xpose.msra.mxu0 0
    %401 = vmatprep.subr.bf16.mxu0 0
    %402 = vmatpush2.bf16.xpose.msra.mxu0 0
    %403 = vmatprep.mubr.bf16.mxu0 0
    %404 = vmatmul.mubr.bf16.gmra.mxu0 %v366
    %v405 = vpop.f32.mrf.mxu0
    %v406 = vadd.f32 0.0, %v405
    %v407 = vpop.f32.mrf.mxu0
    %v408 = vpop.f32.mrf.mxu0
    %v409 = vpop.f32.mrf.mxu0
    %410 = vdwg.mxu0
    %v412 = vsel %vm364, %v359, 0
    %v415 = vsel %vm364, %v361, 0
    %417 = vmatprep.subr.bf16.mxu0 0
    %418 = vmatpush1.bf16.xpose.msra.mxu0 0
    %419 = vmatprep.subr.bf16.mxu0 0
    %420 = vmatpush1.bf16.xpose.msra.mxu0 0
    %421 = vmatprep.subr.bf16.mxu0 0
    %422 = vmatpush1.bf16.xpose.msra.mxu0 0
    %423 = vmatprep.subr.bf16.mxu0 0
    %424 = vmatpush1.bf16.xpose.msra.mxu0 0
    %425 = vmatprep.subr.bf16.mxu0 0
    %426 = vmatpush1.bf16.xpose.msra.mxu0 0
    %427 = vmatprep.subr.bf16.mxu0 0
    %428 = vmatpush1.bf16.xpose.msra.mxu0 0
    %429 = vmatprep.subr.bf16.mxu0 0
    %430 = vmatpush1.bf16.xpose.msra.mxu0 0
    %431 = vmatprep.subr.bf16.mxu0 0
    %432 = vmatpush1.bf16.xpose.msra.mxu0 %v415
    %433 = vmatprep.subr.bf16.mxu0 0
    %434 = vmatpush2.bf16.xpose.msra.mxu0 0
    %435 = vmatprep.subr.bf16.mxu0 0
    %436 = vmatpush2.bf16.xpose.msra.mxu0 0
    %437 = vmatprep.subr.bf16.mxu0 0
    %438 = vmatpush2.bf16.xpose.msra.mxu0 0
    %439 = vmatprep.subr.bf16.mxu0 0
    %440 = vmatpush2.bf16.xpose.msra.mxu0 0
    %441 = vmatprep.subr.bf16.mxu0 0
    %442 = vmatpush2.bf16.xpose.msra.mxu0 0
    %443 = vmatprep.subr.bf16.mxu0 0
    %444 = vmatpush2.bf16.xpose.msra.mxu0 0
    %445 = vmatprep.subr.bf16.mxu0 0
    %446 = vmatpush2.bf16.xpose.msra.mxu0 0
    %447 = vmatprep.subr.bf16.mxu0 0
    %448 = vmatpush2.bf16.xpose.msra.mxu0 0
    %449 = vmatprep.mubr.bf16.mxu0 0
    %450 = vmatmul.mubr.bf16.gmra.mxu0 %v412
    %v451 = vpop.f32.mrf.mxu0
    %v452 = vadd.f32 0.0, %v451
    %v453 = vpop.f32.mrf.mxu0
    %v454 = vpop.f32.mrf.mxu0
    %v455 = vpop.f32.mrf.mxu0
    %456 = vdwg.mxu0
    %v457 = vmul.f32 %v406, 0.17677669
    %v458 = vmul.f32 %v452, 0.17677669
    %vm459 = vcmask 64512
    %v460 = vsel %vm459, %v457, -inf
    %461 = vmax.xlane.f32.xlu0 %v460
    %v462 = vpop.xlane.xlu0 %461
    %v463 = vsel %vm459, %v458, -inf
    %464 = vmax.xlane.f32.xlu0 %v463
    %v465 = vpop.xlane.xlu0 %464
    %v466 = vsub.f32 %v457, %v462
    %v467 = vsub.f32 %v458, %v465
    %v468 = vmul.f32 %v466, 1.442695
    %v469 = vpow.pop %v468
    %v470 = vmul.f32 %v467, 1.442695
    %v471 = vpow.pop %v470
    %v472 = vsel %vm459, %v469, 0.0
    %473 = vadd.xlane.f32.xlu0 %v472
    %v474 = vpop.xlane.xlu0 %473
    %v475 = vsel %vm459, %v471, 0.0
    %476 = vadd.xlane.f32.xlu0 %v475
    %v477 = vpop.xlane.xlu0 %476
    %v478 = vrcp.pop %v474
    %v479 = vrcp.pop %v477
    %v480 = vmul.f32 %v469, %v478
    %v481 = vmul.f32 %v471, %v479
    %v482 = vpack.c.bf16 %v480, %v480
    %v483 = vpack.c.bf16 %v481, %v481
    %v485 = vsel %vm459, %v482, 0
    %vm487 = vcmask 1043456
    %v489 = vsel %vm487, %v362, 0
    %491 = vmatprep.subr.bf16.mxu0 0
    %492 = vmatpush1.bf16.msra.mxu0 0
    %493 = vmatprep.subr.bf16.mxu0 0
    %494 = vmatpush1.bf16.msra.mxu0 0
    %495 = vmatprep.subr.bf16.mxu0 0
    %496 = vmatpush1.bf16.msra.mxu0 0
    %497 = vmatprep.subr.bf16.mxu0 0
    %498 = vmatpush1.bf16.msra.mxu0 0
    %499 = vmatprep.subr.bf16.mxu0 0
    %500 = vmatpush1.bf16.msra.mxu0 0
    %501 = vmatprep.subr.bf16.mxu0 0
    %502 = vmatpush1.bf16.msra.mxu0 0
    %503 = vmatprep.subr.bf16.mxu0 0
    %504 = vmatpush1.bf16.msra.mxu0 0
    %505 = vmatprep.subr.bf16.mxu0 0
    %506 = vmatpush1.bf16.msra.mxu0 %v489
    %507 = vmatprep.subr.bf16.mxu0 0
    %508 = vmatpush2.bf16.msra.mxu0 0
    %509 = vmatprep.subr.bf16.mxu0 0
    %510 = vmatpush2.bf16.msra.mxu0 0
    %511 = vmatprep.subr.bf16.mxu0 0
    %512 = vmatpush2.bf16.msra.mxu0 0
    %513 = vmatprep.subr.bf16.mxu0 0
    %514 = vmatpush2.bf16.msra.mxu0 0
    %515 = vmatprep.subr.bf16.mxu0 0
    %516 = vmatpush2.bf16.msra.mxu0 0
    %517 = vmatprep.subr.bf16.mxu0 0
    %518 = vmatpush2.bf16.msra.mxu0 0
    %519 = vmatprep.subr.bf16.mxu0 0
    %520 = vmatpush2.bf16.msra.mxu0 0
    %521 = vmatprep.subr.bf16.mxu0 0
    %522 = vmatpush2.bf16.msra.mxu0 0
    %523 = vmatprep.mubr.bf16.mxu0 0
    %524 = vmatmul.mubr.bf16.gmra.mxu0 %v485
    %v525 = vpop.f32.mrf.mxu0
    %v526 = vadd.f32 0.0, %v525
    %v527 = vpop.f32.mrf.mxu0
    %v528 = vpop.f32.mrf.mxu0
    %v529 = vpop.f32.mrf.mxu0
    %530 = vdwg.mxu0
    %v532 = vsel %vm459, %v483, 0
    %v535 = vsel %vm487, %v363, 0
    %537 = vmatprep.subr.bf16.mxu0 0
    %538 = vmatpush1.bf16.msra.mxu0 0
    %539 = vmatprep.subr.bf16.mxu0 0
    %540 = vmatpush1.bf16.msra.mxu0 0
    %541 = vmatprep.subr.bf16.mxu0 0
    %542 = vmatpush1.bf16.msra.mxu0 0
    %543 = vmatprep.subr.bf16.mxu0 0
    %544 = vmatpush1.bf16.msra.mxu0 0
    %545 = vmatprep.subr.bf16.mxu0 0
    %546 = vmatpush1.bf16.msra.mxu0 0
    %547 = vmatprep.subr.bf16.mxu0 0
    %548 = vmatpush1.bf16.msra.mxu0 0
    %549 = vmatprep.subr.bf16.mxu0 0
    %550 = vmatpush1.bf16.msra.mxu0 0
    %551 = vmatprep.subr.bf16.mxu0 0
    %552 = vmatpush1.bf16.msra.mxu0 %v535
    %553 = vmatprep.subr.bf16.mxu0 0
    %554 = vmatpush2.bf16.msra.mxu0 0
    %555 = vmatprep.subr.bf16.mxu0 0
    %556 = vmatpush2.bf16.msra.mxu0 0
    %557 = vmatprep.subr.bf16.mxu0 0
    %558 = vmatpush2.bf16.msra.mxu0 0
    %559 = vmatprep.subr.bf16.mxu0 0
    %560 = vmatpush2.bf16.msra.mxu0 0
    %561 = vmatprep.subr.bf16.mxu0 0
    %562 = vmatpush2.bf16.msra.mxu0 0
    %563 = vmatprep.subr.bf16.mxu0 0
    %564 = vmatpush2.bf16.msra.mxu0 0
    %565 = vmatprep.subr.bf16.mxu0 0
    %566 = vmatpush2.bf16.msra.mxu0 0
    %567 = vmatprep.subr.bf16.mxu0 0
    %568 = vmatpush2.bf16.msra.mxu0 0
    %569 = vmatprep.mubr.bf16.mxu0 0
    %570 = vmatmul.mubr.bf16.gmra.mxu0 %v532
    %v571 = vpop.f32.mrf.mxu0
    %v572 = vadd.f32 0.0, %v571
    %v573 = vpop.f32.mrf.mxu0
    %v574 = vpop.f32.mrf.mxu0
    %v575 = vpop.f32.mrf.mxu0
    %576 = vdwg.mxu0
    %v577 = vpack.c.bf16 %v572, %v526
    %v578 = vld [vmem:[%s4] sm:$0xf]
    %v579 = vld [vmem:[%s4 + $0x4] sm:$0xf]
    %v580 = vld [vmem:[%s4 + $0x8] sm:$0xf]
    %v581 = vld [vmem:[%s4 + $0xc] sm:$0xf]
    %s582 = scalar_lea.vmem %s1, 64
    %v583 = vld [vmem:[%s582] sm:$0xf]
    %v584 = vld [vmem:[%s582 + $0x4] sm:$0xf]
    %v585 = vld [vmem:[%s582 + $0x8] sm:$0xf]
    %v586 = vld [vmem:[%s582 + $0xc] sm:$0xf]
    %v587 = vld [vmem:[%s582 + $0x10] sm:$0xf]
    %v588 = vld [vmem:[%s582 + $0x14] sm:$0xf]
    %v589 = vld [vmem:[%s582 + $0x18] sm:$0xf]
    %v590 = vld [vmem:[%s582 + $0x1c] sm:$0xf]
    %v591 = vld [vmem:[%s582 + $0x20] sm:$0xf]
    %v592 = vld [vmem:[%s582 + $0x24] sm:$0xf]
    %v593 = vld [vmem:[%s582 + $0x28] sm:$0xf]
    %v594 = vld [vmem:[%s582 + $0x2c] sm:$0xf]
    %v595 = vld [vmem:[%s582 + $0x30] sm:$0xf]
    %v596 = vld [vmem:[%s582 + $0x34] sm:$0xf]
    %v597 = vld [vmem:[%s582 + $0x38] sm:$0xf]
    %v598 = vld [vmem:[%s582 + $0x3c] sm:$0xf]
    %v615 = vunpack.c.l.b16 %v583
    %v616 = vunpack.c.l.b16 %v584
    %v617 = vunpack.c.l.b16 %v585
    %v618 = vunpack.c.l.b16 %v586
    %v619 = vunpack.c.l.b16 %v587
    %v620 = vunpack.c.l.b16 %v588
    %v621 = vunpack.c.l.b16 %v589
    %v622 = vunpack.c.l.b16 %v590
    %v623 = vunpack.c.l.b16 %v591
    %v624 = vunpack.c.l.b16 %v592
    %v625 = vunpack.c.l.b16 %v593
    %v626 = vunpack.c.l.b16 %v594
    %v627 = vunpack.c.l.b16 %v595
    %v628 = vunpack.c.l.b16 %v596
    %v629 = vunpack.c.l.b16 %v597
    %v630 = vunpack.c.l.b16 %v598
    %v631 = vpack.c.b16 %v616, %v615
    %v632 = vpack.c.b16 %v618, %v617
    %v633 = vpack.c.b16 %v620, %v619
    %v634 = vpack.c.b16 %v622, %v621
    %v635 = vpack.c.b16 %v624, %v623
    %v636 = vpack.c.b16 %v626, %v625
    %v637 = vpack.c.b16 %v628, %v627
    %v638 = vpack.c.b16 %v630, %v629
    %647 = vmatprep.subr.bf16.mxu0 0
    %648 = vmatpush1.bf16.msra.mxu0 %v638
    %649 = vmatprep.subr.bf16.mxu0 0
    %650 = vmatpush1.bf16.msra.mxu0 %v637
    %651 = vmatprep.subr.bf16.mxu0 0
    %652 = vmatpush1.bf16.msra.mxu0 %v636
    %653 = vmatprep.subr.bf16.mxu0 0
    %654 = vmatpush1.bf16.msra.mxu0 %v635
    %655 = vmatprep.subr.bf16.mxu0 0
    %656 = vmatpush1.bf16.msra.mxu0 %v634
    %657 = vmatprep.subr.bf16.mxu0 0
    %658 = vmatpush1.bf16.msra.mxu0 %v633
    %659 = vmatprep.subr.bf16.mxu0 0
    %660 = vmatpush1.bf16.msra.mxu0 %v632
    %661 = vmatprep.subr.bf16.mxu0 0
    %662 = vmatpush1.bf16.msra.mxu0 %v631
    %663 = vmatprep.subr.bf16.mxu0 0
    %664 = vmatpush2.bf16.msra.mxu0 0
    %665 = vmatprep.subr.bf16.mxu0 0
    %666 = vmatpush2.bf16.msra.mxu0 0
    %667 = vmatprep.subr.bf16.mxu0 0
    %668 = vmatpush2.bf16.msra.mxu0 0
    %669 = vmatprep.subr.bf16.mxu0 0
    %670 = vmatpush2.bf16.msra.mxu0 0
    %671 = vmatprep.subr.bf16.mxu0 0
    %672 = vmatpush2.bf16.msra.mxu0 0
    %673 = vmatprep.subr.bf16.mxu0 0
    %674 = vmatpush2.bf16.msra.mxu0 0
    %675 = vmatprep.subr.bf16.mxu0 0
    %676 = vmatpush2.bf16.msra.mxu0 0
    %677 = vmatprep.subr.bf16.mxu0 0
    %678 = vmatpush2.bf16.msra.mxu0 0
    %679 = vmatprep.mubr.bf16.mxu0 0
    %680 = vmatmul.mubr.bf16.gmra.mxu0 %v42
    %v681 = vpop.f32.mrf.mxu0
    %v682 = vadd.f32 0.0, %v681
    %v683 = vpop.f32.mrf.mxu0
    %v684 = vpop.f32.mrf.mxu0
    %v685 = vadd.f32 0.0, %v684
    %v686 = vpop.f32.mrf.mxu0
    %687 = vdwg.mxu0
    %s688 = scalar_lea.vmem %s2, 64
    %v689 = vld [vmem:[%s688] sm:$0xf]
    %v690 = vld [vmem:[%s688 + $0x4] sm:$0xf]
    %v691 = vld [vmem:[%s688 + $0x8] sm:$0xf]
    %v692 = vld [vmem:[%s688 + $0xc] sm:$0xf]
    %v693 = vld [vmem:[%s688 + $0x10] sm:$0xf]
    %v694 = vld [vmem:[%s688 + $0x14] sm:$0xf]
    %v695 = vld [vmem:[%s688 + $0x18] sm:$0xf]
    %v696 = vld [vmem:[%s688 + $0x1c] sm:$0xf]
    %v697 = vld [vmem:[%s688 + $0x20] sm:$0xf]
    %v698 = vld [vmem:[%s688 + $0x24] sm:$0xf]
    %v699 = vld [vmem:[%s688 + $0x28] sm:$0xf]
    %v700 = vld [vmem:[%s688 + $0x2c] sm:$0xf]
    %v701 = vld [vmem:[%s688 + $0x30] sm:$0xf]
    %v702 = vld [vmem:[%s688 + $0x34] sm:$0xf]
    %v703 = vld [vmem:[%s688 + $0x38] sm:$0xf]
    %v704 = vld [vmem:[%s688 + $0x3c] sm:$0xf]
    %v721 = vunpack.c.l.b16 %v689
    %v722 = vunpack.c.l.b16 %v690
    %v723 = vunpack.c.l.b16 %v691
    %v724 = vunpack.c.l.b16 %v692
    %v725 = vunpack.c.l.b16 %v693
    %v726 = vunpack.c.l.b16 %v694
    %v727 = vunpack.c.l.b16 %v695
    %v728 = vunpack.c.l.b16 %v696
    %v729 = vunpack.c.l.b16 %v697
    %v730 = vunpack.c.l.b16 %v698
    %v731 = vunpack.c.l.b16 %v699
    %v732 = vunpack.c.l.b16 %v700
    %v733 = vunpack.c.l.b16 %v701
    %v734 = vunpack.c.l.b16 %v702
    %v735 = vunpack.c.l.b16 %v703
    %v736 = vunpack.c.l.b16 %v704
    %v737 = vpack.c.b16 %v722, %v721
    %v738 = vpack.c.b16 %v724, %v723
    %v739 = vpack.c.b16 %v726, %v725
    %v740 = vpack.c.b16 %v728, %v727
    %v741 = vpack.c.b16 %v730, %v729
    %v742 = vpack.c.b16 %v732, %v731
    %v743 = vpack.c.b16 %v734, %v733
    %v744 = vpack.c.b16 %v736, %v735
    %753 = vmatprep.subr.bf16.mxu0 0
    %754 = vmatpush1.bf16.msra.mxu0 %v744
    %755 = vmatprep.subr.bf16.mxu0 0
    %756 = vmatpush1.bf16.msra.mxu0 %v743
    %757 = vmatprep.subr.bf16.mxu0 0
    %758 = vmatpush1.bf16.msra.mxu0 %v742
    %759 = vmatprep.subr.bf16.mxu0 0
    %760 = vmatpush1.bf16.msra.mxu0 %v741
    %761 = vmatprep.subr.bf16.mxu0 0
    %762 = vmatpush1.bf16.msra.mxu0 %v740
    %763 = vmatprep.subr.bf16.mxu0 0
    %764 = vmatpush1.bf16.msra.mxu0 %v739
    %765 = vmatprep.subr.bf16.mxu0 0
    %766 = vmatpush1.bf16.msra.mxu0 %v738
    %767 = vmatprep.subr.bf16.mxu0 0
    %768 = vmatpush1.bf16.msra.mxu0 %v737
    %769 = vmatprep.subr.bf16.mxu0 0
    %770 = vmatpush2.bf16.msra.mxu0 0
    %771 = vmatprep.subr.bf16.mxu0 0
    %772 = vmatpush2.bf16.msra.mxu0 0
    %773 = vmatprep.subr.bf16.mxu0 0
    %774 = vmatpush2.bf16.msra.mxu0 0
    %775 = vmatprep.subr.bf16.mxu0 0
    %776 = vmatpush2.bf16.msra.mxu0 0
    %777 = vmatprep.subr.bf16.mxu0 0
    %778 = vmatpush2.bf16.msra.mxu0 0
    %779 = vmatprep.subr.bf16.mxu0 0
    %780 = vmatpush2.bf16.msra.mxu0 0
    %781 = vmatprep.subr.bf16.mxu0 0
    %782 = vmatpush2.bf16.msra.mxu0 0
    %783 = vmatprep.subr.bf16.mxu0 0
    %784 = vmatpush2.bf16.msra.mxu0 0
    %785 = vmatprep.mubr.bf16.mxu0 0
    %786 = vmatmul.mubr.bf16.gmra.mxu0 %v42
    %v787 = vpop.f32.mrf.mxu0
    %v788 = vadd.f32 0.0, %v787
    %v789 = vpop.f32.mrf.mxu0
    %v790 = vpop.f32.mrf.mxu0
    %v791 = vadd.f32 0.0, %v790
    %v792 = vpop.f32.mrf.mxu0
    %793 = vdwg.mxu0
    %s794 = scalar_lea.vmem %s3, 64
    %v795 = vld [vmem:[%s794] sm:$0xf]
    %v796 = vld [vmem:[%s794 + $0x4] sm:$0xf]
    %v797 = vld [vmem:[%s794 + $0x8] sm:$0xf]
    %v798 = vld [vmem:[%s794 + $0xc] sm:$0xf]
    %v799 = vld [vmem:[%s794 + $0x10] sm:$0xf]
    %v800 = vld [vmem:[%s794 + $0x14] sm:$0xf]
    %v801 = vld [vmem:[%s794 + $0x18] sm:$0xf]
    %v802 = vld [vmem:[%s794 + $0x1c] sm:$0xf]
    %v803 = vld [vmem:[%s794 + $0x20] sm:$0xf]
    %v804 = vld [vmem:[%s794 + $0x24] sm:$0xf]
    %v805 = vld [vmem:[%s794 + $0x28] sm:$0xf]
    %v806 = vld [vmem:[%s794 + $0x2c] sm:$0xf]
    %v807 = vld [vmem:[%s794 + $0x30] sm:$0xf]
    %v808 = vld [vmem:[%s794 + $0x34] sm:$0xf]
    %v809 = vld [vmem:[%s794 + $0x38] sm:$0xf]
    %v810 = vld [vmem:[%s794 + $0x3c] sm:$0xf]
    %v827 = vunpack.c.l.b16 %v795
    %v828 = vunpack.c.l.b16 %v796
    %v829 = vunpack.c.l.b16 %v797
    %v830 = vunpack.c.l.b16 %v798
    %v831 = vunpack.c.l.b16 %v799
    %v832 = vunpack.c.l.b16 %v800
    %v833 = vunpack.c.l.b16 %v801
    %v834 = vunpack.c.l.b16 %v802
    %v835 = vunpack.c.l.b16 %v803
    %v836 = vunpack.c.l.b16 %v804
    %v837 = vunpack.c.l.b16 %v805
    %v838 = vunpack.c.l.b16 %v806
    %v839 = vunpack.c.l.b16 %v807
    %v840 = vunpack.c.l.b16 %v808
    %v841 = vunpack.c.l.b16 %v809
    %v842 = vunpack.c.l.b16 %v810
    %v843 = vpack.c.b16 %v828, %v827
    %v844 = vpack.c.b16 %v830, %v829
    %v845 = vpack.c.b16 %v832, %v831
    %v846 = vpack.c.b16 %v834, %v833
    %v847 = vpack.c.b16 %v836, %v835
    %v848 = vpack.c.b16 %v838, %v837
    %v849 = vpack.c.b16 %v840, %v839
    %v850 = vpack.c.b16 %v842, %v841
    %859 = vmatprep.subr.bf16.mxu0 0
    %860 = vmatpush1.bf16.msra.mxu0 %v850
    %861 = vmatprep.subr.bf16.mxu0 0
    %862 = vmatpush1.bf16.msra.mxu0 %v849
    %863 = vmatprep.subr.bf16.mxu0 0
    %864 = vmatpush1.bf16.msra.mxu0 %v848
    %865 = vmatprep.subr.bf16.mxu0 0
    %866 = vmatpush1.bf16.msra.mxu0 %v847
    %867 = vmatprep.subr.bf16.mxu0 0
    %868 = vmatpush1.bf16.msra.mxu0 %v846
    %869 = vmatprep.subr.bf16.mxu0 0
    %870 = vmatpush1.bf16.msra.mxu0 %v845
    %871 = vmatprep.subr.bf16.mxu0 0
    %872 = vmatpush1.bf16.msra.mxu0 %v844
    %873 = vmatprep.subr.bf16.mxu0 0
    %874 = vmatpush1.bf16.msra.mxu0 %v843
    %875 = vmatprep.subr.bf16.mxu0 0
    %876 = vmatpush2.bf16.msra.mxu0 0
    %877 = vmatprep.subr.bf16.mxu0 0
    %878 = vmatpush2.bf16.msra.mxu0 0
    %879 = vmatprep.subr.bf16.mxu0 0
    %880 = vmatpush2.bf16.msra.mxu0 0
    %881 = vmatprep.subr.bf16.mxu0 0
    %882 = vmatpush2.bf16.msra.mxu0 0
    %883 = vmatprep.subr.bf16.mxu0 0
    %884 = vmatpush2.bf16.msra.mxu0 0
    %885 = vmatprep.subr.bf16.mxu0 0
    %886 = vmatpush2.bf16.msra.mxu0 0
    %887 = vmatprep.subr.bf16.mxu0 0
    %888 = vmatpush2.bf16.msra.mxu0 0
    %889 = vmatprep.subr.bf16.mxu0 0
    %890 = vmatpush2.bf16.msra.mxu0 0
    %891 = vmatprep.mubr.bf16.mxu0 0
    %892 = vmatmul.mubr.bf16.gmra.mxu0 %v42
    %v893 = vpop.f32.mrf.mxu0
    %v894 = vadd.f32 0.0, %v893
    %v895 = vpop.f32.mrf.mxu0
    %v896 = vpop.f32.mrf.mxu0
    %v897 = vadd.f32 0.0, %v896
    %v898 = vpop.f32.mrf.mxu0
    %899 = vdwg.mxu0
    %v900 = vpack.c.bf16 %v682, %v682
    %v901 = vpack.c.bf16 %v685, %v685
    %v902 = vpack.c.bf16 %v788, %v788
    %v903 = vpack.c.bf16 %v791, %v791
    %v904 = vpack.c.bf16 %v894, %v894
    %v905 = vpack.c.bf16 %v897, %v897
    %v907 = vsel %vm364, %v900, 0
    %v910 = vsel %vm364, %v902, 0
    %912 = vmatprep.subr.bf16.mxu0 0
    %913 = vmatpush1.bf16.xpose.msra.mxu0 0
    %914 = vmatprep.subr.bf16.mxu0 0
    %915 = vmatpush1.bf16.xpose.msra.mxu0 0
    %916 = vmatprep.subr.bf16.mxu0 0
    %917 = vmatpush1.bf16.xpose.msra.mxu0 0
    %918 = vmatprep.subr.bf16.mxu0 0
    %919 = vmatpush1.bf16.xpose.msra.mxu0 0
    %920 = vmatprep.subr.bf16.mxu0 0
    %921 = vmatpush1.bf16.xpose.msra.mxu0 0
    %922 = vmatprep.subr.bf16.mxu0 0
    %923 = vmatpush1.bf16.xpose.msra.mxu0 0
    %924 = vmatprep.subr.bf16.mxu0 0
    %925 = vmatpush1.bf16.xpose.msra.mxu0 0
    %926 = vmatprep.subr.bf16.mxu0 0
    %927 = vmatpush1.bf16.xpose.msra.mxu0 %v910
    %928 = vmatprep.subr.bf16.mxu0 0
    %929 = vmatpush2.bf16.xpose.msra.mxu0 0
    %930 = vmatprep.subr.bf16.mxu0 0
    %931 = vmatpush2.bf16.xpose.msra.mxu0 0
    %932 = vmatprep.subr.bf16.mxu0 0
    %933 = vmatpush2.bf16.xpose.msra.mxu0 0
    %934 = vmatprep.subr.bf16.mxu0 0
    %935 = vmatpush2.bf16.xpose.msra.mxu0 0
    %936 = vmatprep.subr.bf16.mxu0 0
    %937 = vmatpush2.bf16.xpose.msra.mxu0 0
    %938 = vmatprep.subr.bf16.mxu0 0
    %939 = vmatpush2.bf16.xpose.msra.mxu0 0
    %940 = vmatprep.subr.bf16.mxu0 0
    %941 = vmatpush2.bf16.xpose.msra.mxu0 0
    %942 = vmatprep.subr.bf16.mxu0 0
    %943 = vmatpush2.bf16.xpose.msra.mxu0 0
    %944 = vmatprep.mubr.bf16.mxu0 0
    %945 = vmatmul.mubr.bf16.gmra.mxu0 %v907
    %v946 = vpop.f32.mrf.mxu0
    %v947 = vadd.f32 0.0, %v946
    %v948 = vpop.f32.mrf.mxu0
    %v949 = vpop.f32.mrf.mxu0
    %v950 = vpop.f32.mrf.mxu0
    %951 = vdwg.mxu0
    %v953 = vsel %vm364, %v901, 0
    %v956 = vsel %vm364, %v903, 0
    %958 = vmatprep.subr.bf16.mxu0 0
    %959 = vmatpush1.bf16.xpose.msra.mxu0 0
    %960 = vmatprep.subr.bf16.mxu0 0
    %961 = vmatpush1.bf16.xpose.msra.mxu0 0
    %962 = vmatprep.subr.bf16.mxu0 0
    %963 = vmatpush1.bf16.xpose.msra.mxu0 0
    %964 = vmatprep.subr.bf16.mxu0 0
    %965 = vmatpush1.bf16.xpose.msra.mxu0 0
    %966 = vmatprep.subr.bf16.mxu0 0
    %967 = vmatpush1.bf16.xpose.msra.mxu0 0
    %968 = vmatprep.subr.bf16.mxu0 0
    %969 = vmatpush1.bf16.xpose.msra.mxu0 0
    %970 = vmatprep.subr.bf16.mxu0 0
    %971 = vmatpush1.bf16.xpose.msra.mxu0 0
    %972 = vmatprep.subr.bf16.mxu0 0
    %973 = vmatpush1.bf16.xpose.msra.mxu0 %v956
    %974 = vmatprep.subr.bf16.mxu0 0
    %975 = vmatpush2.bf16.xpose.msra.mxu0 0
    %976 = vmatprep.subr.bf16.mxu0 0
    %977 = vmatpush2.bf16.xpose.msra.mxu0 0
    %978 = vmatprep.subr.bf16.mxu0 0
    %979 = vmatpush2.bf16.xpose.msra.mxu0 0
    %980 = vmatprep.subr.bf16.mxu0 0
    %981 = vmatpush2.bf16.xpose.msra.mxu0 0
    %982 = vmatprep.subr.bf16.mxu0 0
    %983 = vmatpush2.bf16.xpose.msra.mxu0 0
    %984 = vmatprep.subr.bf16.mxu0 0
    %985 = vmatpush2.bf16.xpose.msra.mxu0 0
    %986 = vmatprep.subr.bf16.mxu0 0
    %987 = vmatpush2.bf16.xpose.msra.mxu0 0
    %988 = vmatprep.subr.bf16.mxu0 0
    %989 = vmatpush2.bf16.xpose.msra.mxu0 0
    %990 = vmatprep.mubr.bf16.mxu0 0
    %991 = vmatmul.mubr.bf16.gmra.mxu0 %v953
    %v992 = vpop.f32.mrf.mxu0
    %v993 = vadd.f32 0.0, %v992
    %v994 = vpop.f32.mrf.mxu0
    %v995 = vpop.f32.mrf.mxu0
    %v996 = vpop.f32.mrf.mxu0
    %997 = vdwg.mxu0
    %v998 = vmul.f32 %v947, 0.17677669
    %v999 = vmul.f32 %v993, 0.17677669
    %v1000 = vsel %vm459, %v998, -inf
    %1001 = vmax.xlane.f32.xlu0 %v1000
    %v1002 = vpop.xlane.xlu0 %1001
    %v1003 = vsel %vm459, %v999, -inf
    %1004 = vmax.xlane.f32.xlu0 %v1003
    %v1005 = vpop.xlane.xlu0 %1004
    %v1006 = vsub.f32 %v998, %v1002
    %v1007 = vsub.f32 %v999, %v1005
    %v1008 = vmul.f32 %v1006, 1.442695
    %v1009 = vpow.pop %v1008
    %v1010 = vmul.f32 %v1007, 1.442695
    %v1011 = vpow.pop %v1010
    %v1012 = vsel %vm459, %v1009, 0.0
    %1013 = vadd.xlane.f32.xlu0 %v1012
    %v1014 = vpop.xlane.xlu0 %1013
    %v1015 = vsel %vm459, %v1011, 0.0
    %1016 = vadd.xlane.f32.xlu0 %v1015
    %v1017 = vpop.xlane.xlu0 %1016
    %v1018 = vrcp.pop %v1014
    %v1019 = vrcp.pop %v1017
    %v1020 = vmul.f32 %v1009, %v1018
    %v1021 = vmul.f32 %v1011, %v1019
    %v1022 = vpack.c.bf16 %v1020, %v1020
    %v1023 = vpack.c.bf16 %v1021, %v1021
    %v1025 = vsel %vm459, %v1022, 0
    %v1028 = vsel %vm487, %v904, 0
    %1030 = vmatprep.subr.bf16.mxu0 0
    %1031 = vmatpush1.bf16.msra.mxu0 0
    %1032 = vmatprep.subr.bf16.mxu0 0
    %1033 = vmatpush1.bf16.msra.mxu0 0
    %1034 = vmatprep.subr.bf16.mxu0 0
    %1035 = vmatpush1.bf16.msra.mxu0 0
    %1036 = vmatprep.subr.bf16.mxu0 0
    %1037 = vmatpush1.bf16.msra.mxu0 0
    %1038 = vmatprep.subr.bf16.mxu0 0
    %1039 = vmatpush1.bf16.msra.mxu0 0
    %1040 = vmatprep.subr.bf16.mxu0 0
    %1041 = vmatpush1.bf16.msra.mxu0 0
    %1042 = vmatprep.subr.bf16.mxu0 0
    %1043 = vmatpush1.bf16.msra.mxu0 0
    %1044 = vmatprep.subr.bf16.mxu0 0
    %1045 = vmatpush1.bf16.msra.mxu0 %v1028
    %1046 = vmatprep.subr.bf16.mxu0 0
    %1047 = vmatpush2.bf16.msra.mxu0 0
    %1048 = vmatprep.subr.bf16.mxu0 0
    %1049 = vmatpush2.bf16.msra.mxu0 0
    %1050 = vmatprep.subr.bf16.mxu0 0
    %1051 = vmatpush2.bf16.msra.mxu0 0
    %1052 = vmatprep.subr.bf16.mxu0 0
    %1053 = vmatpush2.bf16.msra.mxu0 0
    %1054 = vmatprep.subr.bf16.mxu0 0
    %1055 = vmatpush2.bf16.msra.mxu0 0
    %1056 = vmatprep.subr.bf16.mxu0 0
    %1057 = vmatpush2.bf16.msra.mxu0 0
    %1058 = vmatprep.subr.bf16.mxu0 0
    %1059 = vmatpush2.bf16.msra.mxu0 0
    %1060 = vmatprep.subr.bf16.mxu0 0
    %1061 = vmatpush2.bf16.msra.mxu0 0
    %1062 = vmatprep.mubr.bf16.mxu0 0
    %1063 = vmatmul.mubr.bf16.gmra.mxu0 %v1025
    %v1064 = vpop.f32.mrf.mxu0
    %v1065 = vadd.f32 0.0, %v1064
    %v1066 = vpop.f32.mrf.mxu0
    %v1067 = vpop.f32.mrf.mxu0
    %v1068 = vpop.f32.mrf.mxu0
    %1069 = vdwg.mxu0
    %v1071 = vsel %vm459, %v1023, 0
    %v1074 = vsel %vm487, %v905, 0
    %1076 = vmatprep.subr.bf16.mxu0 0
    %1077 = vmatpush1.bf16.msra.mxu0 0
    %1078 = vmatprep.subr.bf16.mxu0 0
    %1079 = vmatpush1.bf16.msra.mxu0 0
    %1080 = vmatprep.subr.bf16.mxu0 0
    %1081 = vmatpush1.bf16.msra.mxu0 0
    %1082 = vmatprep.subr.bf16.mxu0 0
    %1083 = vmatpush1.bf16.msra.mxu0 0
    %1084 = vmatprep.subr.bf16.mxu0 0
    %1085 = vmatpush1.bf16.msra.mxu0 0
    %1086 = vmatprep.subr.bf16.mxu0 0
    %1087 = vmatpush1.bf16.msra.mxu0 0
    %1088 = vmatprep.subr.bf16.mxu0 0
    %1089 = vmatpush1.bf16.msra.mxu0 0
    %1090 = vmatprep.subr.bf16.mxu0 0
    %1091 = vmatpush1.bf16.msra.mxu0 %v1074
    %1092 = vmatprep.subr.bf16.mxu0 0
    %1093 = vmatpush2.bf16.msra.mxu0 0
    %1094 = vmatprep.subr.bf16.mxu0 0
    %1095 = vmatpush2.bf16.msra.mxu0 0
    %1096 = vmatprep.subr.bf16.mxu0 0
    %1097 = vmatpush2.bf16.msra.mxu0 0
    %1098 = vmatprep.subr.bf16.mxu0 0
    %1099 = vmatpush2.bf16.msra.mxu0 0
    %1100 = vmatprep.subr.bf16.mxu0 0
    %1101 = vmatpush2.bf16.msra.mxu0 0
    %1102 = vmatprep.subr.bf16.mxu0 0
    %1103 = vmatpush2.bf16.msra.mxu0 0
    %1104 = vmatprep.subr.bf16.mxu0 0
    %1105 = vmatpush2.bf16.msra.mxu0 0
    %1106 = vmatprep.subr.bf16.mxu0 0
    %1107 = vmatpush2.bf16.msra.mxu0 0
    %1108 = vmatprep.mubr.bf16.mxu0 0
    %1109 = vmatmul.mubr.bf16.gmra.mxu0 %v1071
    %v1110 = vpop.f32.mrf.mxu0
    %v1111 = vadd.f32 0.0, %v1110
    %v1112 = vpop.f32.mrf.mxu0
    %v1113 = vpop.f32.mrf.mxu0
    %v1114 = vpop.f32.mrf.mxu0
    %1115 = vdwg.mxu0
    %v1116 = vpack.c.bf16 %v1111, %v1065
    %s1117 = scalar_lea.vmem %s4, 16
    %v1118 = vld [vmem:[%s1117] sm:$0xf]
    %v1119 = vld [vmem:[%s1117 + $0x4] sm:$0xf]
    %v1120 = vld [vmem:[%s1117 + $0x8] sm:$0xf]
    %v1121 = vld [vmem:[%s1117 + $0xc] sm:$0xf]
    %v1126 = vunpack.c.l.b16 %v1118
    %v1127 = vunpack.c.l.b16 %v1119
    %v1128 = vunpack.c.l.b16 %v1120
    %v1129 = vunpack.c.l.b16 %v1121
    %v1130 = vpack.c.b16 %v1127, %v1126
    %v1131 = vpack.c.b16 %v1129, %v1128
    %v1135 = vsel %vm364, %v1116, 0
    %1137 = vmatprep.subr.bf16.mxu0 0
    %1138 = vmatpush1.bf16.msra.mxu0 0
    %1139 = vmatprep.subr.bf16.mxu0 0
    %1140 = vmatpush1.bf16.msra.mxu0 0
    %1141 = vmatprep.subr.bf16.mxu0 0
    %1142 = vmatpush1.bf16.msra.mxu0 0
    %1143 = vmatprep.subr.bf16.mxu0 0
    %1144 = vmatpush1.bf16.msra.mxu0 0
    %1145 = vmatprep.subr.bf16.mxu0 0
    %1146 = vmatpush1.bf16.msra.mxu0 0
    %1147 = vmatprep.subr.bf16.mxu0 0
    %1148 = vmatpush1.bf16.msra.mxu0 0
    %1149 = vmatprep.subr.bf16.mxu0 0
    %1150 = vmatpush1.bf16.msra.mxu0 %v1131
    %1151 = vmatprep.subr.bf16.mxu0 0
    %1152 = vmatpush1.bf16.msra.mxu0 %v1130
    %1153 = vmatprep.subr.bf16.mxu0 0
    %1154 = vmatpush2.bf16.msra.mxu0 0
    %1155 = vmatprep.subr.bf16.mxu0 0
    %1156 = vmatpush2.bf16.msra.mxu0 0
    %1157 = vmatprep.subr.bf16.mxu0 0
    %1158 = vmatpush2.bf16.msra.mxu0 0
    %1159 = vmatprep.subr.bf16.mxu0 0
    %1160 = vmatpush2.bf16.msra.mxu0 0
    %1161 = vmatprep.subr.bf16.mxu0 0
    %1162 = vmatpush2.bf16.msra.mxu0 0
    %1163 = vmatprep.subr.bf16.mxu0 0
    %1164 = vmatpush2.bf16.msra.mxu0 0
    %1165 = vmatprep.subr.bf16.mxu0 0
    %1166 = vmatpush2.bf16.msra.mxu0 0
    %1167 = vmatprep.subr.bf16.mxu0 0
    %1168 = vmatpush2.bf16.msra.mxu0 0
    %1169 = vmatprep.mubr.bf16.mxu0 0
    %1170 = vmatmul.mubr.bf16.gmra.mxu0 %v1135
    %v1171 = vpop.f32.mrf.mxu0
    %v1172 = vadd.f32 0.0, %v1171
    %v1173 = vpop.f32.mrf.mxu0
    %v1174 = vpop.f32.mrf.mxu0
    %v1175 = vadd.f32 0.0, %v1174
    %v1176 = vpop.f32.mrf.mxu0
    %1177 = vdwg.mxu0
    %v1182 = vunpack.c.l.b16 %v578
    %v1183 = vunpack.c.l.b16 %v579
    %v1184 = vunpack.c.l.b16 %v580
    %v1185 = vunpack.c.l.b16 %v581
    %v1186 = vpack.c.b16 %v1183, %v1182
    %v1187 = vpack.c.b16 %v1185, %v1184
    %v1191 = vsel %vm364, %v577, 0
    %1193 = vmatprep.subr.bf16.mxu0 0
    %1194 = vmatpush1.bf16.msra.mxu0 0
    %1195 = vmatprep.subr.bf16.mxu0 0
    %1196 = vmatpush1.bf16.msra.mxu0 0
    %1197 = vmatprep.subr.bf16.mxu0 0
    %1198 = vmatpush1.bf16.msra.mxu0 0
    %1199 = vmatprep.subr.bf16.mxu0 0
    %1200 = vmatpush1.bf16.msra.mxu0 0
    %1201 = vmatprep.subr.bf16.mxu0 0
    %1202 = vmatpush1.bf16.msra.mxu0 0
    %1203 = vmatprep.subr.bf16.mxu0 0
    %1204 = vmatpush1.bf16.msra.mxu0 0
    %1205 = vmatprep.subr.bf16.mxu0 0
    %1206 = vmatpush1.bf16.msra.mxu0 %v1187
    %1207 = vmatprep.subr.bf16.mxu0 0
    %1208 = vmatpush1.bf16.msra.mxu0 %v1186
    %1209 = vmatprep.subr.bf16.mxu0 0
    %1210 = vmatpush2.bf16.msra.mxu0 0
    %1211 = vmatprep.subr.bf16.mxu0 0
    %1212 = vmatpush2.bf16.msra.mxu0 0
    %1213 = vmatprep.subr.bf16.mxu0 0
    %1214 = vmatpush2.bf16.msra.mxu0 0
    %1215 = vmatprep.subr.bf16.mxu0 0
    %1216 = vmatpush2.bf16.msra.mxu0 0
    %1217 = vmatprep.subr.bf16.mxu0 0
    %1218 = vmatpush2.bf16.msra.mxu0 0
    %1219 = vmatprep.subr.bf16.mxu0 0
    %1220 = vmatpush2.bf16.msra.mxu0 0
    %1221 = vmatprep.subr.bf16.mxu0 0
    %1222 = vmatpush2.bf16.msra.mxu0 0
    %1223 = vmatprep.subr.bf16.mxu0 0
    %1224 = vmatpush2.bf16.msra.mxu0 0
    %1225 = vmatprep.mubr.bf16.mxu0 0
    %1226 = vmatmul.mubr.bf16.gmra.mxu0 %v1191
    %v1227 = vpop.f32.mrf.mxu0
    %v1228 = vadd.f32 %v1172, %v1227
    %v1229 = vpop.f32.mrf.mxu0
    %v1230 = vpop.f32.mrf.mxu0
    %v1231 = vadd.f32 %v1175, %v1230
    %v1232 = vpop.f32.mrf.mxu0
    %1233 = vdwg.mxu0
    %s1234 = scalar_lea.vmem %s1, 128
    %v1235 = vld [vmem:[%s1234] sm:$0xf]
    %v1236 = vld [vmem:[%s1234 + $0x4] sm:$0xf]
    %v1237 = vld [vmem:[%s1234 + $0x8] sm:$0xf]
    %v1238 = vld [vmem:[%s1234 + $0xc] sm:$0xf]
    %v1239 = vld [vmem:[%s1234 + $0x10] sm:$0xf]
    %v1240 = vld [vmem:[%s1234 + $0x14] sm:$0xf]
    %v1241 = vld [vmem:[%s1234 + $0x18] sm:$0xf]
    %v1242 = vld [vmem:[%s1234 + $0x1c] sm:$0xf]
    %v1243 = vld [vmem:[%s1234 + $0x20] sm:$0xf]
    %v1244 = vld [vmem:[%s1234 + $0x24] sm:$0xf]
    %v1245 = vld [vmem:[%s1234 + $0x28] sm:$0xf]
    %v1246 = vld [vmem:[%s1234 + $0x2c] sm:$0xf]
    %v1247 = vld [vmem:[%s1234 + $0x30] sm:$0xf]
    %v1248 = vld [vmem:[%s1234 + $0x34] sm:$0xf]
    %v1249 = vld [vmem:[%s1234 + $0x38] sm:$0xf]
    %v1250 = vld [vmem:[%s1234 + $0x3c] sm:$0xf]
    %v1267 = vunpack.c.l.b16 %v1235
    %v1268 = vunpack.c.l.b16 %v1236
    %v1269 = vunpack.c.l.b16 %v1237
    %v1270 = vunpack.c.l.b16 %v1238
    %v1271 = vunpack.c.l.b16 %v1239
    %v1272 = vunpack.c.l.b16 %v1240
    %v1273 = vunpack.c.l.b16 %v1241
    %v1274 = vunpack.c.l.b16 %v1242
    %v1275 = vunpack.c.l.b16 %v1243
    %v1276 = vunpack.c.l.b16 %v1244
    %v1277 = vunpack.c.l.b16 %v1245
    %v1278 = vunpack.c.l.b16 %v1246
    %v1279 = vunpack.c.l.b16 %v1247
    %v1280 = vunpack.c.l.b16 %v1248
    %v1281 = vunpack.c.l.b16 %v1249
    %v1282 = vunpack.c.l.b16 %v1250
    %v1283 = vpack.c.b16 %v1268, %v1267
    %v1284 = vpack.c.b16 %v1270, %v1269
    %v1285 = vpack.c.b16 %v1272, %v1271
    %v1286 = vpack.c.b16 %v1274, %v1273
    %v1287 = vpack.c.b16 %v1276, %v1275
    %v1288 = vpack.c.b16 %v1278, %v1277
    %v1289 = vpack.c.b16 %v1280, %v1279
    %v1290 = vpack.c.b16 %v1282, %v1281
    %1299 = vmatprep.subr.bf16.mxu0 0
    %1300 = vmatpush1.bf16.msra.mxu0 %v1290
    %1301 = vmatprep.subr.bf16.mxu0 0
    %1302 = vmatpush1.bf16.msra.mxu0 %v1289
    %1303 = vmatprep.subr.bf16.mxu0 0
    %1304 = vmatpush1.bf16.msra.mxu0 %v1288
    %1305 = vmatprep.subr.bf16.mxu0 0
    %1306 = vmatpush1.bf16.msra.mxu0 %v1287
    %1307 = vmatprep.subr.bf16.mxu0 0
    %1308 = vmatpush1.bf16.msra.mxu0 %v1286
    %1309 = vmatprep.subr.bf16.mxu0 0
    %1310 = vmatpush1.bf16.msra.mxu0 %v1285
    %1311 = vmatprep.subr.bf16.mxu0 0
    %1312 = vmatpush1.bf16.msra.mxu0 %v1284
    %1313 = vmatprep.subr.bf16.mxu0 0
    %1314 = vmatpush1.bf16.msra.mxu0 %v1283
    %1315 = vmatprep.subr.bf16.mxu0 0
    %1316 = vmatpush2.bf16.msra.mxu0 0
    %1317 = vmatprep.subr.bf16.mxu0 0
    %1318 = vmatpush2.bf16.msra.mxu0 0
    %1319 = vmatprep.subr.bf16.mxu0 0
    %1320 = vmatpush2.bf16.msra.mxu0 0
    %1321 = vmatprep.subr.bf16.mxu0 0
    %1322 = vmatpush2.bf16.msra.mxu0 0
    %1323 = vmatprep.subr.bf16.mxu0 0
    %1324 = vmatpush2.bf16.msra.mxu0 0
    %1325 = vmatprep.subr.bf16.mxu0 0
    %1326 = vmatpush2.bf16.msra.mxu0 0
    %1327 = vmatprep.subr.bf16.mxu0 0
    %1328 = vmatpush2.bf16.msra.mxu0 0
    %1329 = vmatprep.subr.bf16.mxu0 0
    %1330 = vmatpush2.bf16.msra.mxu0 0
    %1331 = vmatprep.mubr.bf16.mxu0 0
    %1332 = vmatmul.mubr.bf16.gmra.mxu0 %v42
    %v1333 = vpop.f32.mrf.mxu0
    %v1334 = vadd.f32 0.0, %v1333
    %v1335 = vpop.f32.mrf.mxu0
    %v1336 = vpop.f32.mrf.mxu0
    %v1337 = vadd.f32 0.0, %v1336
    %v1338 = vpop.f32.mrf.mxu0
    %1339 = vdwg.mxu0
    %s1340 = scalar_lea.vmem %s2, 128
    %v1341 = vld [vmem:[%s1340] sm:$0xf]
    %v1342 = vld [vmem:[%s1340 + $0x4] sm:$0xf]
    %v1343 = vld [vmem:[%s1340 + $0x8] sm:$0xf]
    %v1344 = vld [vmem:[%s1340 + $0xc] sm:$0xf]
    %v1345 = vld [vmem:[%s1340 + $0x10] sm:$0xf]
    %v1346 = vld [vmem:[%s1340 + $0x14] sm:$0xf]
    %v1347 = vld [vmem:[%s1340 + $0x18] sm:$0xf]
    %v1348 = vld [vmem:[%s1340 + $0x1c] sm:$0xf]
    %v1349 = vld [vmem:[%s1340 + $0x20] sm:$0xf]
    %v1350 = vld [vmem:[%s1340 + $0x24] sm:$0xf]
    %v1351 = vld [vmem:[%s1340 + $0x28] sm:$0xf]
    %v1352 = vld [vmem:[%s1340 + $0x2c] sm:$0xf]
    %v1353 = vld [vmem:[%s1340 + $0x30] sm:$0xf]
    %v1354 = vld [vmem:[%s1340 + $0x34] sm:$0xf]
    %v1355 = vld [vmem:[%s1340 + $0x38] sm:$0xf]
    %v1356 = vld [vmem:[%s1340 + $0x3c] sm:$0xf]
    %v1373 = vunpack.c.l.b16 %v1341
    %v1374 = vunpack.c.l.b16 %v1342
    %v1375 = vunpack.c.l.b16 %v1343
    %v1376 = vunpack.c.l.b16 %v1344
    %v1377 = vunpack.c.l.b16 %v1345
    %v1378 = vunpack.c.l.b16 %v1346
    %v1379 = vunpack.c.l.b16 %v1347
    %v1380 = vunpack.c.l.b16 %v1348
    %v1381 = vunpack.c.l.b16 %v1349
    %v1382 = vunpack.c.l.b16 %v1350
    %v1383 = vunpack.c.l.b16 %v1351
    %v1384 = vunpack.c.l.b16 %v1352
    %v1385 = vunpack.c.l.b16 %v1353
    %v1386 = vunpack.c.l.b16 %v1354
    %v1387 = vunpack.c.l.b16 %v1355
    %v1388 = vunpack.c.l.b16 %v1356
    %v1389 = vpack.c.b16 %v1374, %v1373
    %v1390 = vpack.c.b16 %v1376, %v1375
    %v1391 = vpack.c.b16 %v1378, %v1377
    %v1392 = vpack.c.b16 %v1380, %v1379
    %v1393 = vpack.c.b16 %v1382, %v1381
    %v1394 = vpack.c.b16 %v1384, %v1383
    %v1395 = vpack.c.b16 %v1386, %v1385
    %v1396 = vpack.c.b16 %v1388, %v1387
    %1405 = vmatprep.subr.bf16.mxu0 0
    %1406 = vmatpush1.bf16.msra.mxu0 %v1396
    %1407 = vmatprep.subr.bf16.mxu0 0
    %1408 = vmatpush1.bf16.msra.mxu0 %v1395
    %1409 = vmatprep.subr.bf16.mxu0 0
    %1410 = vmatpush1.bf16.msra.mxu0 %v1394
    %1411 = vmatprep.subr.bf16.mxu0 0
    %1412 = vmatpush1.bf16.msra.mxu0 %v1393
    %1413 = vmatprep.subr.bf16.mxu0 0
    %1414 = vmatpush1.bf16.msra.mxu0 %v1392
    %1415 = vmatprep.subr.bf16.mxu0 0
    %1416 = vmatpush1.bf16.msra.mxu0 %v1391
    %1417 = vmatprep.subr.bf16.mxu0 0
    %1418 = vmatpush1.bf16.msra.mxu0 %v1390
    %1419 = vmatprep.subr.bf16.mxu0 0
    %1420 = vmatpush1.bf16.msra.mxu0 %v1389
    %1421 = vmatprep.subr.bf16.mxu0 0
    %1422 = vmatpush2.bf16.msra.mxu0 0
    %1423 = vmatprep.subr.bf16.mxu0 0
    %1424 = vmatpush2.bf16.msra.mxu0 0
    %1425 = vmatprep.subr.bf16.mxu0 0
    %1426 = vmatpush2.bf16.msra.mxu0 0
    %1427 = vmatprep.subr.bf16.mxu0 0
    %1428 = vmatpush2.bf16.msra.mxu0 0
    %1429 = vmatprep.subr.bf16.mxu0 0
    %1430 = vmatpush2.bf16.msra.mxu0 0
    %1431 = vmatprep.subr.bf16.mxu0 0
    %1432 = vmatpush2.bf16.msra.mxu0 0
    %1433 = vmatprep.subr.bf16.mxu0 0
    %1434 = vmatpush2.bf16.msra.mxu0 0
    %1435 = vmatprep.subr.bf16.mxu0 0
    %1436 = vmatpush2.bf16.msra.mxu0 0
    %1437 = vmatprep.mubr.bf16.mxu0 0
    %1438 = vmatmul.mubr.bf16.gmra.mxu0 %v42
    %v1439 = vpop.f32.mrf.mxu0
    %v1440 = vadd.f32 0.0, %v1439
    %v1441 = vpop.f32.mrf.mxu0
    %v1442 = vpop.f32.mrf.mxu0
    %v1443 = vadd.f32 0.0, %v1442
    %v1444 = vpop.f32.mrf.mxu0
    %1445 = vdwg.mxu0
    %s1446 = scalar_lea.vmem %s3, 128
    %v1447 = vld [vmem:[%s1446] sm:$0xf]
    %v1448 = vld [vmem:[%s1446 + $0x4] sm:$0xf]
    %v1449 = vld [vmem:[%s1446 + $0x8] sm:$0xf]
    %v1450 = vld [vmem:[%s1446 + $0xc] sm:$0xf]
    %v1451 = vld [vmem:[%s1446 + $0x10] sm:$0xf]
    %v1452 = vld [vmem:[%s1446 + $0x14] sm:$0xf]
    %v1453 = vld [vmem:[%s1446 + $0x18] sm:$0xf]
    %v1454 = vld [vmem:[%s1446 + $0x1c] sm:$0xf]
    %v1455 = vld [vmem:[%s1446 + $0x20] sm:$0xf]
    %v1456 = vld [vmem:[%s1446 + $0x24] sm:$0xf]
    %v1457 = vld [vmem:[%s1446 + $0x28] sm:$0xf]
    %v1458 = vld [vmem:[%s1446 + $0x2c] sm:$0xf]
    %v1459 = vld [vmem:[%s1446 + $0x30] sm:$0xf]
    %v1460 = vld [vmem:[%s1446 + $0x34] sm:$0xf]
    %v1461 = vld [vmem:[%s1446 + $0x38] sm:$0xf]
    %v1462 = vld [vmem:[%s1446 + $0x3c] sm:$0xf]
    %v1479 = vunpack.c.l.b16 %v1447
    %v1480 = vunpack.c.l.b16 %v1448
    %v1481 = vunpack.c.l.b16 %v1449
    %v1482 = vunpack.c.l.b16 %v1450
    %v1483 = vunpack.c.l.b16 %v1451
    %v1484 = vunpack.c.l.b16 %v1452
    %v1485 = vunpack.c.l.b16 %v1453
    %v1486 = vunpack.c.l.b16 %v1454
    %v1487 = vunpack.c.l.b16 %v1455
    %v1488 = vunpack.c.l.b16 %v1456
    %v1489 = vunpack.c.l.b16 %v1457
    %v1490 = vunpack.c.l.b16 %v1458
    %v1491 = vunpack.c.l.b16 %v1459
    %v1492 = vunpack.c.l.b16 %v1460
    %v1493 = vunpack.c.l.b16 %v1461
    %v1494 = vunpack.c.l.b16 %v1462
    %v1495 = vpack.c.b16 %v1480, %v1479
    %v1496 = vpack.c.b16 %v1482, %v1481
    %v1497 = vpack.c.b16 %v1484, %v1483
    %v1498 = vpack.c.b16 %v1486, %v1485
    %v1499 = vpack.c.b16 %v1488, %v1487
    %v1500 = vpack.c.b16 %v1490, %v1489
    %v1501 = vpack.c.b16 %v1492, %v1491
    %v1502 = vpack.c.b16 %v1494, %v1493
    %1511 = vmatprep.subr.bf16.mxu0 0
    %1512 = vmatpush1.bf16.msra.mxu0 %v1502
    %1513 = vmatprep.subr.bf16.mxu0 0
    %1514 = vmatpush1.bf16.msra.mxu0 %v1501
    %1515 = vmatprep.subr.bf16.mxu0 0
    %1516 = vmatpush1.bf16.msra.mxu0 %v1500
    %1517 = vmatprep.subr.bf16.mxu0 0
    %1518 = vmatpush1.bf16.msra.mxu0 %v1499
    %1519 = vmatprep.subr.bf16.mxu0 0
    %1520 = vmatpush1.bf16.msra.mxu0 %v1498
    %1521 = vmatprep.subr.bf16.mxu0 0
    %1522 = vmatpush1.bf16.msra.mxu0 %v1497
    %1523 = vmatprep.subr.bf16.mxu0 0
    %1524 = vmatpush1.bf16.msra.mxu0 %v1496
    %1525 = vmatprep.subr.bf16.mxu0 0
    %1526 = vmatpush1.bf16.msra.mxu0 %v1495
    %1527 = vmatprep.subr.bf16.mxu0 0
    %1528 = vmatpush2.bf16.msra.mxu0 0
    %1529 = vmatprep.subr.bf16.mxu0 0
    %1530 = vmatpush2.bf16.msra.mxu0 0
    %1531 = vmatprep.subr.bf16.mxu0 0
    %1532 = vmatpush2.bf16.msra.mxu0 0
    %1533 = vmatprep.subr.bf16.mxu0 0
    %1534 = vmatpush2.bf16.msra.mxu0 0
    %1535 = vmatprep.subr.bf16.mxu0 0
    %1536 = vmatpush2.bf16.msra.mxu0 0
    %1537 = vmatprep.subr.bf16.mxu0 0
    %1538 = vmatpush2.bf16.msra.mxu0 0
    %1539 = vmatprep.subr.bf16.mxu0 0
    %1540 = vmatpush2.bf16.msra.mxu0 0
    %1541 = vmatprep.subr.bf16.mxu0 0
    %1542 = vmatpush2.bf16.msra.mxu0 0
    %1543 = vmatprep.mubr.bf16.mxu0 0
    %1544 = vmatmul.mubr.bf16.gmra.mxu0 %v42
    %v1545 = vpop.f32.mrf.mxu0
    %v1546 = vadd.f32 0.0, %v1545
    %v1547 = vpop.f32.mrf.mxu0
    %v1548 = vpop.f32.mrf.mxu0
    %v1549 = vadd.f32 0.0, %v1548
    %v1550 = vpop.f32.mrf.mxu0
    %1551 = vdwg.mxu0
    %v1552 = vpack.c.bf16 %v1334, %v1334
    %v1553 = vpack.c.bf16 %v1337, %v1337
    %v1554 = vpack.c.bf16 %v1440, %v1440
    %v1555 = vpack.c.bf16 %v1443, %v1443
    %v1556 = vpack.c.bf16 %v1546, %v1546
    %v1557 = vpack.c.bf16 %v1549, %v1549
    %v1559 = vsel %vm364, %v1552, 0
    %v1562 = vsel %vm364, %v1554, 0
    %1564 = vmatprep.subr.bf16.mxu0 0
    %1565 = vmatpush1.bf16.xpose.msra.mxu0 0
    %1566 = vmatprep.subr.bf16.mxu0 0
    %1567 = vmatpush1.bf16.xpose.msra.mxu0 0
    %1568 = vmatprep.subr.bf16.mxu0 0
    %1569 = vmatpush1.bf16.xpose.msra.mxu0 0
    %1570 = vmatprep.subr.bf16.mxu0 0
    %1571 = vmatpush1.bf16.xpose.msra.mxu0 0
    %1572 = vmatprep.subr.bf16.mxu0 0
    %1573 = vmatpush1.bf16.xpose.msra.mxu0 0
    %1574 = vmatprep.subr.bf16.mxu0 0
    %1575 = vmatpush1.bf16.xpose.msra.mxu0 0
    %1576 = vmatprep.subr.bf16.mxu0 0
    %1577 = vmatpush1.bf16.xpose.msra.mxu0 0
    %1578 = vmatprep.subr.bf16.mxu0 0
    %1579 = vmatpush1.bf16.xpose.msra.mxu0 %v1562
    %1580 = vmatprep.subr.bf16.mxu0 0
    %1581 = vmatpush2.bf16.xpose.msra.mxu0 0
    %1582 = vmatprep.subr.bf16.mxu0 0
    %1583 = vmatpush2.bf16.xpose.msra.mxu0 0
    %1584 = vmatprep.subr.bf16.mxu0 0
    %1585 = vmatpush2.bf16.xpose.msra.mxu0 0
    %1586 = vmatprep.subr.bf16.mxu0 0
    %1587 = vmatpush2.bf16.xpose.msra.mxu0 0
    %1588 = vmatprep.subr.bf16.mxu0 0
    %1589 = vmatpush2.bf16.xpose.msra.mxu0 0
    %1590 = vmatprep.subr.bf16.mxu0 0
    %1591 = vmatpush2.bf16.xpose.msra.mxu0 0
    %1592 = vmatprep.subr.bf16.mxu0 0
    %1593 = vmatpush2.bf16.xpose.msra.mxu0 0
    %1594 = vmatprep.subr.bf16.mxu0 0
    %1595 = vmatpush2.bf16.xpose.msra.mxu0 0
    %1596 = vmatprep.mubr.bf16.mxu0 0
    %1597 = vmatmul.mubr.bf16.gmra.mxu0 %v1559
    %v1598 = vpop.f32.mrf.mxu0
    %v1599 = vadd.f32 0.0, %v1598
    %v1600 = vpop.f32.mrf.mxu0
    %v1601 = vpop.f32.mrf.mxu0
    %v1602 = vpop.f32.mrf.mxu0
    %1603 = vdwg.mxu0
    %v1605 = vsel %vm364, %v1553, 0
    %v1608 = vsel %vm364, %v1555, 0
    %1610 = vmatprep.subr.bf16.mxu0 0
    %1611 = vmatpush1.bf16.xpose.msra.mxu0 0
    %1612 = vmatprep.subr.bf16.mxu0 0
    %1613 = vmatpush1.bf16.xpose.msra.mxu0 0
    %1614 = vmatprep.subr.bf16.mxu0 0
    %1615 = vmatpush1.bf16.xpose.msra.mxu0 0
    %1616 = vmatprep.subr.bf16.mxu0 0
    %1617 = vmatpush1.bf16.xpose.msra.mxu0 0
    %1618 = vmatprep.subr.bf16.mxu0 0
    %1619 = vmatpush1.bf16.xpose.msra.mxu0 0
    %1620 = vmatprep.subr.bf16.mxu0 0
    %1621 = vmatpush1.bf16.xpose.msra.mxu0 0
    %1622 = vmatprep.subr.bf16.mxu0 0
    %1623 = vmatpush1.bf16.xpose.msra.mxu0 0
    %1624 = vmatprep.subr.bf16.mxu0 0
    %1625 = vmatpush1.bf16.xpose.msra.mxu0 %v1608
    %1626 = vmatprep.subr.bf16.mxu0 0
    %1627 = vmatpush2.bf16.xpose.msra.mxu0 0
    %1628 = vmatprep.subr.bf16.mxu0 0
    %1629 = vmatpush2.bf16.xpose.msra.mxu0 0
    %1630 = vmatprep.subr.bf16.mxu0 0
    %1631 = vmatpush2.bf16.xpose.msra.mxu0 0
    %1632 = vmatprep.subr.bf16.mxu0 0
    %1633 = vmatpush2.bf16.xpose.msra.mxu0 0
    %1634 = vmatprep.subr.bf16.mxu0 0
    %1635 = vmatpush2.bf16.xpose.msra.mxu0 0
    %1636 = vmatprep.subr.bf16.mxu0 0
    %1637 = vmatpush2.bf16.xpose.msra.mxu0 0
    %1638 = vmatprep.subr.bf16.mxu0 0
    %1639 = vmatpush2.bf16.xpose.msra.mxu0 0
    %1640 = vmatprep.subr.bf16.mxu0 0
    %1641 = vmatpush2.bf16.xpose.msra.mxu0 0
    %1642 = vmatprep.mubr.bf16.mxu0 0
    %1643 = vmatmul.mubr.bf16.gmra.mxu0 %v1605
    %v1644 = vpop.f32.mrf.mxu0
    %v1645 = vadd.f32 0.0, %v1644
    %v1646 = vpop.f32.mrf.mxu0
    %v1647 = vpop.f32.mrf.mxu0
    %v1648 = vpop.f32.mrf.mxu0
    %1649 = vdwg.mxu0
    %v1650 = vmul.f32 %v1599, 0.17677669
    %v1651 = vmul.f32 %v1645, 0.17677669
    %v1652 = vsel %vm459, %v1650, -inf
    %1653 = vmax.xlane.f32.xlu0 %v1652
    %v1654 = vpop.xlane.xlu0 %1653
    %v1655 = vsel %vm459, %v1651, -inf
    %1656 = vmax.xlane.f32.xlu0 %v1655
    %v1657 = vpop.xlane.xlu0 %1656
    %v1658 = vsub.f32 %v1650, %v1654
    %v1659 = vsub.f32 %v1651, %v1657
    %v1660 = vmul.f32 %v1658, 1.442695
    %v1661 = vpow.pop %v1660
    %v1662 = vmul.f32 %v1659, 1.442695
    %v1663 = vpow.pop %v1662
    %v1664 = vsel %vm459, %v1661, 0.0
    %1665 = vadd.xlane.f32.xlu0 %v1664
    %v1666 = vpop.xlane.xlu0 %1665
    %v1667 = vsel %vm459, %v1663, 0.0
    %1668 = vadd.xlane.f32.xlu0 %v1667
    %v1669 = vpop.xlane.xlu0 %1668
    %v1670 = vrcp.pop %v1666
    %v1671 = vrcp.pop %v1669
    %v1672 = vmul.f32 %v1661, %v1670
    %v1673 = vmul.f32 %v1663, %v1671
    %v1674 = vpack.c.bf16 %v1672, %v1672
    %v1675 = vpack.c.bf16 %v1673, %v1673
    %v1677 = vsel %vm459, %v1674, 0
    %v1680 = vsel %vm487, %v1556, 0
    %1682 = vmatprep.subr.bf16.mxu0 0
    %1683 = vmatpush1.bf16.msra.mxu0 0
    %1684 = vmatprep.subr.bf16.mxu0 0
    %1685 = vmatpush1.bf16.msra.mxu0 0
    %1686 = vmatprep.subr.bf16.mxu0 0
    %1687 = vmatpush1.bf16.msra.mxu0 0
    %1688 = vmatprep.subr.bf16.mxu0 0
    %1689 = vmatpush1.bf16.msra.mxu0 0
    %1690 = vmatprep.subr.bf16.mxu0 0
    %1691 = vmatpush1.bf16.msra.mxu0 0
    %1692 = vmatprep.subr.bf16.mxu0 0
    %1693 = vmatpush1.bf16.msra.mxu0 0
    %1694 = vmatprep.subr.bf16.mxu0 0
    %1695 = vmatpush1.bf16.msra.mxu0 0
    %1696 = vmatprep.subr.bf16.mxu0 0
    %1697 = vmatpush1.bf16.msra.mxu0 %v1680
    %1698 = vmatprep.subr.bf16.mxu0 0
    %1699 = vmatpush2.bf16.msra.mxu0 0
    %1700 = vmatprep.subr.bf16.mxu0 0
    %1701 = vmatpush2.bf16.msra.mxu0 0
    %1702 = vmatprep.subr.bf16.mxu0 0
    %1703 = vmatpush2.bf16.msra.mxu0 0
    %1704 = vmatprep.subr.bf16.mxu0 0
    %1705 = vmatpush2.bf16.msra.mxu0 0
    %1706 = vmatprep.subr.bf16.mxu0 0
    %1707 = vmatpush2.bf16.msra.mxu0 0
    %1708 = vmatprep.subr.bf16.mxu0 0
    %1709 = vmatpush2.bf16.msra.mxu0 0
    %1710 = vmatprep.subr.bf16.mxu0 0
    %1711 = vmatpush2.bf16.msra.mxu0 0
    %1712 = vmatprep.subr.bf16.mxu0 0
    %1713 = vmatpush2.bf16.msra.mxu0 0
    %1714 = vmatprep.mubr.bf16.mxu0 0
    %1715 = vmatmul.mubr.bf16.gmra.mxu0 %v1677
    %v1716 = vpop.f32.mrf.mxu0
    %v1717 = vadd.f32 0.0, %v1716
    %v1718 = vpop.f32.mrf.mxu0
    %v1719 = vpop.f32.mrf.mxu0
    %v1720 = vpop.f32.mrf.mxu0
    %1721 = vdwg.mxu0
    %v1723 = vsel %vm459, %v1675, 0
    %v1726 = vsel %vm487, %v1557, 0
    %1728 = vmatprep.subr.bf16.mxu0 0
    %1729 = vmatpush1.bf16.msra.mxu0 0
    %1730 = vmatprep.subr.bf16.mxu0 0
    %1731 = vmatpush1.bf16.msra.mxu0 0
    %1732 = vmatprep.subr.bf16.mxu0 0
    %1733 = vmatpush1.bf16.msra.mxu0 0
    %1734 = vmatprep.subr.bf16.mxu0 0
    %1735 = vmatpush1.bf16.msra.mxu0 0
    %1736 = vmatprep.subr.bf16.mxu0 0
    %1737 = vmatpush1.bf16.msra.mxu0 0
    %1738 = vmatprep.subr.bf16.mxu0 0
    %1739 = vmatpush1.bf16.msra.mxu0 0
    %1740 = vmatprep.subr.bf16.mxu0 0
    %1741 = vmatpush1.bf16.msra.mxu0 0
    %1742 = vmatprep.subr.bf16.mxu0 0
    %1743 = vmatpush1.bf16.msra.mxu0 %v1726
    %1744 = vmatprep.subr.bf16.mxu0 0
    %1745 = vmatpush2.bf16.msra.mxu0 0
    %1746 = vmatprep.subr.bf16.mxu0 0
    %1747 = vmatpush2.bf16.msra.mxu0 0
    %1748 = vmatprep.subr.bf16.mxu0 0
    %1749 = vmatpush2.bf16.msra.mxu0 0
    %1750 = vmatprep.subr.bf16.mxu0 0
    %1751 = vmatpush2.bf16.msra.mxu0 0
    %1752 = vmatprep.subr.bf16.mxu0 0
    %1753 = vmatpush2.bf16.msra.mxu0 0
    %1754 = vmatprep.subr.bf16.mxu0 0
    %1755 = vmatpush2.bf16.msra.mxu0 0
    %1756 = vmatprep.subr.bf16.mxu0 0
    %1757 = vmatpush2.bf16.msra.mxu0 0
    %1758 = vmatprep.subr.bf16.mxu0 0
    %1759 = vmatpush2.bf16.msra.mxu0 0
    %1760 = vmatprep.mubr.bf16.mxu0 0
    %1761 = vmatmul.mubr.bf16.gmra.mxu0 %v1723
    %v1762 = vpop.f32.mrf.mxu0
    %v1763 = vadd.f32 0.0, %v1762
    %v1764 = vpop.f32.mrf.mxu0
    %v1765 = vpop.f32.mrf.mxu0
    %v1766 = vpop.f32.mrf.mxu0
    %1767 = vdwg.mxu0
    %v1768 = vpack.c.bf16 %v1763, %v1717
    %s1769 = scalar_lea.vmem %s4, 32
    %v1770 = vld [vmem:[%s1769] sm:$0xf]
    %v1771 = vld [vmem:[%s1769 + $0x4] sm:$0xf]
    %v1772 = vld [vmem:[%s1769 + $0x8] sm:$0xf]
    %v1773 = vld [vmem:[%s1769 + $0xc] sm:$0xf]
    %v1778 = vunpack.c.l.b16 %v1770
    %v1779 = vunpack.c.l.b16 %v1771
    %v1780 = vunpack.c.l.b16 %v1772
    %v1781 = vunpack.c.l.b16 %v1773
    %v1782 = vpack.c.b16 %v1779, %v1778
    %v1783 = vpack.c.b16 %v1781, %v1780
    %v1787 = vsel %vm364, %v1768, 0
    %1789 = vmatprep.subr.bf16.mxu0 0
    %1790 = vmatpush1.bf16.msra.mxu0 0
    %1791 = vmatprep.subr.bf16.mxu0 0
    %1792 = vmatpush1.bf16.msra.mxu0 0
    %1793 = vmatprep.subr.bf16.mxu0 0
    %1794 = vmatpush1.bf16.msra.mxu0 0
    %1795 = vmatprep.subr.bf16.mxu0 0
    %1796 = vmatpush1.bf16.msra.mxu0 0
    %1797 = vmatprep.subr.bf16.mxu0 0
    %1798 = vmatpush1.bf16.msra.mxu0 0
    %1799 = vmatprep.subr.bf16.mxu0 0
    %1800 = vmatpush1.bf16.msra.mxu0 0
    %1801 = vmatprep.subr.bf16.mxu0 0
    %1802 = vmatpush1.bf16.msra.mxu0 %v1783
    %1803 = vmatprep.subr.bf16.mxu0 0
    %1804 = vmatpush1.bf16.msra.mxu0 %v1782
    %1805 = vmatprep.subr.bf16.mxu0 0
    %1806 = vmatpush2.bf16.msra.mxu0 0
    %1807 = vmatprep.subr.bf16.mxu0 0
    %1808 = vmatpush2.bf16.msra.mxu0 0
    %1809 = vmatprep.subr.bf16.mxu0 0
    %1810 = vmatpush2.bf16.msra.mxu0 0
    %1811 = vmatprep.subr.bf16.mxu0 0
    %1812 = vmatpush2.bf16.msra.mxu0 0
    %1813 = vmatprep.subr.bf16.mxu0 0
    %1814 = vmatpush2.bf16.msra.mxu0 0
    %1815 = vmatprep.subr.bf16.mxu0 0
    %1816 = vmatpush2.bf16.msra.mxu0 0
    %1817 = vmatprep.subr.bf16.mxu0 0
    %1818 = vmatpush2.bf16.msra.mxu0 0
    %1819 = vmatprep.subr.bf16.mxu0 0
    %1820 = vmatpush2.bf16.msra.mxu0 0
    %1821 = vmatprep.mubr.bf16.mxu0 0
    %1822 = vmatmul.mubr.bf16.gmra.mxu0 %v1787
    %v1823 = vpop.f32.mrf.mxu0
    %v1824 = vadd.f32 0.0, %v1823
    %v1825 = vpop.f32.mrf.mxu0
    %v1826 = vpop.f32.mrf.mxu0
    %v1827 = vadd.f32 0.0, %v1826
    %v1828 = vpop.f32.mrf.mxu0
    %1829 = vdwg.mxu0
    %v1830 = vadd.f32 %v1228, %v1824
    %v1831 = vadd.f32 %v1231, %v1827
    %s1832 = scalar_lea.vmem %s1, 192
    %v1833 = vld [vmem:[%s1832] sm:$0xf]
    %v1834 = vld [vmem:[%s1832 + $0x4] sm:$0xf]
    %v1835 = vld [vmem:[%s1832 + $0x8] sm:$0xf]
    %v1836 = vld [vmem:[%s1832 + $0xc] sm:$0xf]
    %v1837 = vld [vmem:[%s1832 + $0x10] sm:$0xf]
    %v1838 = vld [vmem:[%s1832 + $0x14] sm:$0xf]
    %v1839 = vld [vmem:[%s1832 + $0x18] sm:$0xf]
    %v1840 = vld [vmem:[%s1832 + $0x1c] sm:$0xf]
    %v1841 = vld [vmem:[%s1832 + $0x20] sm:$0xf]
    %v1842 = vld [vmem:[%s1832 + $0x24] sm:$0xf]
    %v1843 = vld [vmem:[%s1832 + $0x28] sm:$0xf]
    %v1844 = vld [vmem:[%s1832 + $0x2c] sm:$0xf]
    %v1845 = vld [vmem:[%s1832 + $0x30] sm:$0xf]
    %v1846 = vld [vmem:[%s1832 + $0x34] sm:$0xf]
    %v1847 = vld [vmem:[%s1832 + $0x38] sm:$0xf]
    %v1848 = vld [vmem:[%s1832 + $0x3c] sm:$0xf]
    %v1865 = vunpack.c.l.b16 %v1833
    %v1866 = vunpack.c.l.b16 %v1834
    %v1867 = vunpack.c.l.b16 %v1835
    %v1868 = vunpack.c.l.b16 %v1836
    %v1869 = vunpack.c.l.b16 %v1837
    %v1870 = vunpack.c.l.b16 %v1838
    %v1871 = vunpack.c.l.b16 %v1839
    %v1872 = vunpack.c.l.b16 %v1840
    %v1873 = vunpack.c.l.b16 %v1841
    %v1874 = vunpack.c.l.b16 %v1842
    %v1875 = vunpack.c.l.b16 %v1843
    %v1876 = vunpack.c.l.b16 %v1844
    %v1877 = vunpack.c.l.b16 %v1845
    %v1878 = vunpack.c.l.b16 %v1846
    %v1879 = vunpack.c.l.b16 %v1847
    %v1880 = vunpack.c.l.b16 %v1848
    %v1881 = vpack.c.b16 %v1866, %v1865
    %v1882 = vpack.c.b16 %v1868, %v1867
    %v1883 = vpack.c.b16 %v1870, %v1869
    %v1884 = vpack.c.b16 %v1872, %v1871
    %v1885 = vpack.c.b16 %v1874, %v1873
    %v1886 = vpack.c.b16 %v1876, %v1875
    %v1887 = vpack.c.b16 %v1878, %v1877
    %v1888 = vpack.c.b16 %v1880, %v1879
    %1897 = vmatprep.subr.bf16.mxu0 0
    %1898 = vmatpush1.bf16.msra.mxu0 %v1888
    %1899 = vmatprep.subr.bf16.mxu0 0
    %1900 = vmatpush1.bf16.msra.mxu0 %v1887
    %1901 = vmatprep.subr.bf16.mxu0 0
    %1902 = vmatpush1.bf16.msra.mxu0 %v1886
    %1903 = vmatprep.subr.bf16.mxu0 0
    %1904 = vmatpush1.bf16.msra.mxu0 %v1885
    %1905 = vmatprep.subr.bf16.mxu0 0
    %1906 = vmatpush1.bf16.msra.mxu0 %v1884
    %1907 = vmatprep.subr.bf16.mxu0 0
    %1908 = vmatpush1.bf16.msra.mxu0 %v1883
    %1909 = vmatprep.subr.bf16.mxu0 0
    %1910 = vmatpush1.bf16.msra.mxu0 %v1882
    %1911 = vmatprep.subr.bf16.mxu0 0
    %1912 = vmatpush1.bf16.msra.mxu0 %v1881
    %1913 = vmatprep.subr.bf16.mxu0 0
    %1914 = vmatpush2.bf16.msra.mxu0 0
    %1915 = vmatprep.subr.bf16.mxu0 0
    %1916 = vmatpush2.bf16.msra.mxu0 0
    %1917 = vmatprep.subr.bf16.mxu0 0
    %1918 = vmatpush2.bf16.msra.mxu0 0
    %1919 = vmatprep.subr.bf16.mxu0 0
    %1920 = vmatpush2.bf16.msra.mxu0 0
    %1921 = vmatprep.subr.bf16.mxu0 0
    %1922 = vmatpush2.bf16.msra.mxu0 0
    %1923 = vmatprep.subr.bf16.mxu0 0
    %1924 = vmatpush2.bf16.msra.mxu0 0
    %1925 = vmatprep.subr.bf16.mxu0 0
    %1926 = vmatpush2.bf16.msra.mxu0 0
    %1927 = vmatprep.subr.bf16.mxu0 0
    %1928 = vmatpush2.bf16.msra.mxu0 0
    %1929 = vmatprep.mubr.bf16.mxu0 0
    %1930 = vmatmul.mubr.bf16.gmra.mxu0 %v42
    %v1931 = vpop.f32.mrf.mxu0
    %v1932 = vadd.f32 0.0, %v1931
    %v1933 = vpop.f32.mrf.mxu0
    %v1934 = vpop.f32.mrf.mxu0
    %v1935 = vadd.f32 0.0, %v1934
    %v1936 = vpop.f32.mrf.mxu0
    %1937 = vdwg.mxu0
    %s1938 = scalar_lea.vmem %s2, 192
    %v1939 = vld [vmem:[%s1938] sm:$0xf]
    %v1940 = vld [vmem:[%s1938 + $0x4] sm:$0xf]
    %v1941 = vld [vmem:[%s1938 + $0x8] sm:$0xf]
    %v1942 = vld [vmem:[%s1938 + $0xc] sm:$0xf]
    %v1943 = vld [vmem:[%s1938 + $0x10] sm:$0xf]
    %v1944 = vld [vmem:[%s1938 + $0x14] sm:$0xf]
    %v1945 = vld [vmem:[%s1938 + $0x18] sm:$0xf]
    %v1946 = vld [vmem:[%s1938 + $0x1c] sm:$0xf]
    %v1947 = vld [vmem:[%s1938 + $0x20] sm:$0xf]
    %v1948 = vld [vmem:[%s1938 + $0x24] sm:$0xf]
    %v1949 = vld [vmem:[%s1938 + $0x28] sm:$0xf]
    %v1950 = vld [vmem:[%s1938 + $0x2c] sm:$0xf]
    %v1951 = vld [vmem:[%s1938 + $0x30] sm:$0xf]
    %v1952 = vld [vmem:[%s1938 + $0x34] sm:$0xf]
    %v1953 = vld [vmem:[%s1938 + $0x38] sm:$0xf]
    %v1954 = vld [vmem:[%s1938 + $0x3c] sm:$0xf]
    %v1971 = vunpack.c.l.b16 %v1939
    %v1972 = vunpack.c.l.b16 %v1940
    %v1973 = vunpack.c.l.b16 %v1941
    %v1974 = vunpack.c.l.b16 %v1942
    %v1975 = vunpack.c.l.b16 %v1943
    %v1976 = vunpack.c.l.b16 %v1944
    %v1977 = vunpack.c.l.b16 %v1945
    %v1978 = vunpack.c.l.b16 %v1946
    %v1979 = vunpack.c.l.b16 %v1947
    %v1980 = vunpack.c.l.b16 %v1948
    %v1981 = vunpack.c.l.b16 %v1949
    %v1982 = vunpack.c.l.b16 %v1950
    %v1983 = vunpack.c.l.b16 %v1951
    %v1984 = vunpack.c.l.b16 %v1952
    %v1985 = vunpack.c.l.b16 %v1953
    %v1986 = vunpack.c.l.b16 %v1954
    %v1987 = vpack.c.b16 %v1972, %v1971
    %v1988 = vpack.c.b16 %v1974, %v1973
    %v1989 = vpack.c.b16 %v1976, %v1975
    %v1990 = vpack.c.b16 %v1978, %v1977
    %v1991 = vpack.c.b16 %v1980, %v1979
    %v1992 = vpack.c.b16 %v1982, %v1981
    %v1993 = vpack.c.b16 %v1984, %v1983
    %v1994 = vpack.c.b16 %v1986, %v1985
    %2003 = vmatprep.subr.bf16.mxu0 0
    %2004 = vmatpush1.bf16.msra.mxu0 %v1994
    %2005 = vmatprep.subr.bf16.mxu0 0
    %2006 = vmatpush1.bf16.msra.mxu0 %v1993
    %2007 = vmatprep.subr.bf16.mxu0 0
    %2008 = vmatpush1.bf16.msra.mxu0 %v1992
    %2009 = vmatprep.subr.bf16.mxu0 0
    %2010 = vmatpush1.bf16.msra.mxu0 %v1991
    %2011 = vmatprep.subr.bf16.mxu0 0
    %2012 = vmatpush1.bf16.msra.mxu0 %v1990
    %2013 = vmatprep.subr.bf16.mxu0 0
    %2014 = vmatpush1.bf16.msra.mxu0 %v1989
    %2015 = vmatprep.subr.bf16.mxu0 0
    %2016 = vmatpush1.bf16.msra.mxu0 %v1988
    %2017 = vmatprep.subr.bf16.mxu0 0
    %2018 = vmatpush1.bf16.msra.mxu0 %v1987
    %2019 = vmatprep.subr.bf16.mxu0 0
    %2020 = vmatpush2.bf16.msra.mxu0 0
    %2021 = vmatprep.subr.bf16.mxu0 0
    %2022 = vmatpush2.bf16.msra.mxu0 0
    %2023 = vmatprep.subr.bf16.mxu0 0
    %2024 = vmatpush2.bf16.msra.mxu0 0
    %2025 = vmatprep.subr.bf16.mxu0 0
    %2026 = vmatpush2.bf16.msra.mxu0 0
    %2027 = vmatprep.subr.bf16.mxu0 0
    %2028 = vmatpush2.bf16.msra.mxu0 0
    %2029 = vmatprep.subr.bf16.mxu0 0
    %2030 = vmatpush2.bf16.msra.mxu0 0
    %2031 = vmatprep.subr.bf16.mxu0 0
    %2032 = vmatpush2.bf16.msra.mxu0 0
    %2033 = vmatprep.subr.bf16.mxu0 0
    %2034 = vmatpush2.bf16.msra.mxu0 0
    %2035 = vmatprep.mubr.bf16.mxu0 0
    %2036 = vmatmul.mubr.bf16.gmra.mxu0 %v42
    %v2037 = vpop.f32.mrf.mxu0
    %v2038 = vadd.f32 0.0, %v2037
    %v2039 = vpop.f32.mrf.mxu0
    %v2040 = vpop.f32.mrf.mxu0
    %v2041 = vadd.f32 0.0, %v2040
    %v2042 = vpop.f32.mrf.mxu0
    %2043 = vdwg.mxu0
    %s2044 = scalar_lea.vmem %s3, 192
    %v2045 = vld [vmem:[%s2044] sm:$0xf]
    %v2046 = vld [vmem:[%s2044 + $0x4] sm:$0xf]
    %v2047 = vld [vmem:[%s2044 + $0x8] sm:$0xf]
    %v2048 = vld [vmem:[%s2044 + $0xc] sm:$0xf]
    %v2049 = vld [vmem:[%s2044 + $0x10] sm:$0xf]
    %v2050 = vld [vmem:[%s2044 + $0x14] sm:$0xf]
    %v2051 = vld [vmem:[%s2044 + $0x18] sm:$0xf]
    %v2052 = vld [vmem:[%s2044 + $0x1c] sm:$0xf]
    %v2053 = vld [vmem:[%s2044 + $0x20] sm:$0xf]
    %v2054 = vld [vmem:[%s2044 + $0x24] sm:$0xf]
    %v2055 = vld [vmem:[%s2044 + $0x28] sm:$0xf]
    %v2056 = vld [vmem:[%s2044 + $0x2c] sm:$0xf]
    %v2057 = vld [vmem:[%s2044 + $0x30] sm:$0xf]
    %v2058 = vld [vmem:[%s2044 + $0x34] sm:$0xf]
    %v2059 = vld [vmem:[%s2044 + $0x38] sm:$0xf]
    %v2060 = vld [vmem:[%s2044 + $0x3c] sm:$0xf]
    %v2077 = vunpack.c.l.b16 %v2045
    %v2078 = vunpack.c.l.b16 %v2046
    %v2079 = vunpack.c.l.b16 %v2047
    %v2080 = vunpack.c.l.b16 %v2048
    %v2081 = vunpack.c.l.b16 %v2049
    %v2082 = vunpack.c.l.b16 %v2050
    %v2083 = vunpack.c.l.b16 %v2051
    %v2084 = vunpack.c.l.b16 %v2052
    %v2085 = vunpack.c.l.b16 %v2053
    %v2086 = vunpack.c.l.b16 %v2054
    %v2087 = vunpack.c.l.b16 %v2055
    %v2088 = vunpack.c.l.b16 %v2056
    %v2089 = vunpack.c.l.b16 %v2057
    %v2090 = vunpack.c.l.b16 %v2058
    %v2091 = vunpack.c.l.b16 %v2059
    %v2092 = vunpack.c.l.b16 %v2060
    %v2093 = vpack.c.b16 %v2078, %v2077
    %v2094 = vpack.c.b16 %v2080, %v2079
    %v2095 = vpack.c.b16 %v2082, %v2081
    %v2096 = vpack.c.b16 %v2084, %v2083
    %v2097 = vpack.c.b16 %v2086, %v2085
    %v2098 = vpack.c.b16 %v2088, %v2087
    %v2099 = vpack.c.b16 %v2090, %v2089
    %v2100 = vpack.c.b16 %v2092, %v2091
    %2109 = vmatprep.subr.bf16.mxu0 0
    %2110 = vmatpush1.bf16.msra.mxu0 %v2100
    %2111 = vmatprep.subr.bf16.mxu0 0
    %2112 = vmatpush1.bf16.msra.mxu0 %v2099
    %2113 = vmatprep.subr.bf16.mxu0 0
    %2114 = vmatpush1.bf16.msra.mxu0 %v2098
    %2115 = vmatprep.subr.bf16.mxu0 0
    %2116 = vmatpush1.bf16.msra.mxu0 %v2097
    %2117 = vmatprep.subr.bf16.mxu0 0
    %2118 = vmatpush1.bf16.msra.mxu0 %v2096
    %2119 = vmatprep.subr.bf16.mxu0 0
    %2120 = vmatpush1.bf16.msra.mxu0 %v2095
    %2121 = vmatprep.subr.bf16.mxu0 0
    %2122 = vmatpush1.bf16.msra.mxu0 %v2094
    %2123 = vmatprep.subr.bf16.mxu0 0
    %2124 = vmatpush1.bf16.msra.mxu0 %v2093
    %2125 = vmatprep.subr.bf16.mxu0 0
    %2126 = vmatpush2.bf16.msra.mxu0 0
    %2127 = vmatprep.subr.bf16.mxu0 0
    %2128 = vmatpush2.bf16.msra.mxu0 0
    %2129 = vmatprep.subr.bf16.mxu0 0
    %2130 = vmatpush2.bf16.msra.mxu0 0
    %2131 = vmatprep.subr.bf16.mxu0 0
    %2132 = vmatpush2.bf16.msra.mxu0 0
    %2133 = vmatprep.subr.bf16.mxu0 0
    %2134 = vmatpush2.bf16.msra.mxu0 0
    %2135 = vmatprep.subr.bf16.mxu0 0
    %2136 = vmatpush2.bf16.msra.mxu0 0
    %2137 = vmatprep.subr.bf16.mxu0 0
    %2138 = vmatpush2.bf16.msra.mxu0 0
    %2139 = vmatprep.subr.bf16.mxu0 0
    %2140 = vmatpush2.bf16.msra.mxu0 0
    %2141 = vmatprep.mubr.bf16.mxu0 0
    %2142 = vmatmul.mubr.bf16.gmra.mxu0 %v42
    %v2143 = vpop.f32.mrf.mxu0
    %v2144 = vadd.f32 0.0, %v2143
    %v2145 = vpop.f32.mrf.mxu0
    %v2146 = vpop.f32.mrf.mxu0
    %v2147 = vadd.f32 0.0, %v2146
    %v2148 = vpop.f32.mrf.mxu0
    %2149 = vdwg.mxu0
    %v2150 = vpack.c.bf16 %v1932, %v1932
    %v2151 = vpack.c.bf16 %v1935, %v1935
    %v2152 = vpack.c.bf16 %v2038, %v2038
    %v2153 = vpack.c.bf16 %v2041, %v2041
    %v2154 = vpack.c.bf16 %v2144, %v2144
    %v2155 = vpack.c.bf16 %v2147, %v2147
    %v2157 = vsel %vm364, %v2150, 0
    %v2160 = vsel %vm364, %v2152, 0
    %2162 = vmatprep.subr.bf16.mxu0 0
    %2163 = vmatpush1.bf16.xpose.msra.mxu0 0
    %2164 = vmatprep.subr.bf16.mxu0 0
    %2165 = vmatpush1.bf16.xpose.msra.mxu0 0
    %2166 = vmatprep.subr.bf16.mxu0 0
    %2167 = vmatpush1.bf16.xpose.msra.mxu0 0
    %2168 = vmatprep.subr.bf16.mxu0 0
    %2169 = vmatpush1.bf16.xpose.msra.mxu0 0
    %2170 = vmatprep.subr.bf16.mxu0 0
    %2171 = vmatpush1.bf16.xpose.msra.mxu0 0
    %2172 = vmatprep.subr.bf16.mxu0 0
    %2173 = vmatpush1.bf16.xpose.msra.mxu0 0
    %2174 = vmatprep.subr.bf16.mxu0 0
    %2175 = vmatpush1.bf16.xpose.msra.mxu0 0
    %2176 = vmatprep.subr.bf16.mxu0 0
    %2177 = vmatpush1.bf16.xpose.msra.mxu0 %v2160
    %2178 = vmatprep.subr.bf16.mxu0 0
    %2179 = vmatpush2.bf16.xpose.msra.mxu0 0
    %2180 = vmatprep.subr.bf16.mxu0 0
    %2181 = vmatpush2.bf16.xpose.msra.mxu0 0
    %2182 = vmatprep.subr.bf16.mxu0 0
    %2183 = vmatpush2.bf16.xpose.msra.mxu0 0
    %2184 = vmatprep.subr.bf16.mxu0 0
    %2185 = vmatpush2.bf16.xpose.msra.mxu0 0
    %2186 = vmatprep.subr.bf16.mxu0 0
    %2187 = vmatpush2.bf16.xpose.msra.mxu0 0
    %2188 = vmatprep.subr.bf16.mxu0 0
    %2189 = vmatpush2.bf16.xpose.msra.mxu0 0
    %2190 = vmatprep.subr.bf16.mxu0 0
    %2191 = vmatpush2.bf16.xpose.msra.mxu0 0
    %2192 = vmatprep.subr.bf16.mxu0 0
    %2193 = vmatpush2.bf16.xpose.msra.mxu0 0
    %2194 = vmatprep.mubr.bf16.mxu0 0
    %2195 = vmatmul.mubr.bf16.gmra.mxu0 %v2157
    %v2196 = vpop.f32.mrf.mxu0
    %v2197 = vadd.f32 0.0, %v2196
    %v2198 = vpop.f32.mrf.mxu0
    %v2199 = vpop.f32.mrf.mxu0
    %v2200 = vpop.f32.mrf.mxu0
    %2201 = vdwg.mxu0
    %v2203 = vsel %vm364, %v2151, 0
    %v2206 = vsel %vm364, %v2153, 0
    %2208 = vmatprep.subr.bf16.mxu0 0
    %2209 = vmatpush1.bf16.xpose.msra.mxu0 0
    %2210 = vmatprep.subr.bf16.mxu0 0
    %2211 = vmatpush1.bf16.xpose.msra.mxu0 0
    %2212 = vmatprep.subr.bf16.mxu0 0
    %2213 = vmatpush1.bf16.xpose.msra.mxu0 0
    %2214 = vmatprep.subr.bf16.mxu0 0
    %2215 = vmatpush1.bf16.xpose.msra.mxu0 0
    %2216 = vmatprep.subr.bf16.mxu0 0
    %2217 = vmatpush1.bf16.xpose.msra.mxu0 0
    %2218 = vmatprep.subr.bf16.mxu0 0
    %2219 = vmatpush1.bf16.xpose.msra.mxu0 0
    %2220 = vmatprep.subr.bf16.mxu0 0
    %2221 = vmatpush1.bf16.xpose.msra.mxu0 0
    %2222 = vmatprep.subr.bf16.mxu0 0
    %2223 = vmatpush1.bf16.xpose.msra.mxu0 %v2206
    %2224 = vmatprep.subr.bf16.mxu0 0
    %2225 = vmatpush2.bf16.xpose.msra.mxu0 0
    %2226 = vmatprep.subr.bf16.mxu0 0
    %2227 = vmatpush2.bf16.xpose.msra.mxu0 0
    %2228 = vmatprep.subr.bf16.mxu0 0
    %2229 = vmatpush2.bf16.xpose.msra.mxu0 0
    %2230 = vmatprep.subr.bf16.mxu0 0
    %2231 = vmatpush2.bf16.xpose.msra.mxu0 0
    %2232 = vmatprep.subr.bf16.mxu0 0
    %2233 = vmatpush2.bf16.xpose.msra.mxu0 0
    %2234 = vmatprep.subr.bf16.mxu0 0
    %2235 = vmatpush2.bf16.xpose.msra.mxu0 0
    %2236 = vmatprep.subr.bf16.mxu0 0
    %2237 = vmatpush2.bf16.xpose.msra.mxu0 0
    %2238 = vmatprep.subr.bf16.mxu0 0
    %2239 = vmatpush2.bf16.xpose.msra.mxu0 0
    %2240 = vmatprep.mubr.bf16.mxu0 0
    %2241 = vmatmul.mubr.bf16.gmra.mxu0 %v2203
    %v2242 = vpop.f32.mrf.mxu0
    %v2243 = vadd.f32 0.0, %v2242
    %v2244 = vpop.f32.mrf.mxu0
    %v2245 = vpop.f32.mrf.mxu0
    %v2246 = vpop.f32.mrf.mxu0
    %2247 = vdwg.mxu0
    %v2248 = vmul.f32 %v2197, 0.17677669
    %v2249 = vmul.f32 %v2243, 0.17677669
    %v2250 = vsel %vm459, %v2248, -inf
    %2251 = vmax.xlane.f32.xlu0 %v2250
    %v2252 = vpop.xlane.xlu0 %2251
    %v2253 = vsel %vm459, %v2249, -inf
    %2254 = vmax.xlane.f32.xlu0 %v2253
    %v2255 = vpop.xlane.xlu0 %2254
    %v2256 = vsub.f32 %v2248, %v2252
    %v2257 = vsub.f32 %v2249, %v2255
    %v2258 = vmul.f32 %v2256, 1.442695
    %v2259 = vpow.pop %v2258
    %v2260 = vmul.f32 %v2257, 1.442695
    %v2261 = vpow.pop %v2260
    %v2262 = vsel %vm459, %v2259, 0.0
    %2263 = vadd.xlane.f32.xlu0 %v2262
    %v2264 = vpop.xlane.xlu0 %2263
    %v2265 = vsel %vm459, %v2261, 0.0
    %2266 = vadd.xlane.f32.xlu0 %v2265
    %v2267 = vpop.xlane.xlu0 %2266
    %v2268 = vrcp.pop %v2264
    %v2269 = vrcp.pop %v2267
    %v2270 = vmul.f32 %v2259, %v2268
    %v2271 = vmul.f32 %v2261, %v2269
    %v2272 = vpack.c.bf16 %v2270, %v2270
    %v2273 = vpack.c.bf16 %v2271, %v2271
    %v2275 = vsel %vm459, %v2272, 0
    %v2278 = vsel %vm487, %v2154, 0
    %2280 = vmatprep.subr.bf16.mxu0 0
    %2281 = vmatpush1.bf16.msra.mxu0 0
    %2282 = vmatprep.subr.bf16.mxu0 0
    %2283 = vmatpush1.bf16.msra.mxu0 0
    %2284 = vmatprep.subr.bf16.mxu0 0
    %2285 = vmatpush1.bf16.msra.mxu0 0
    %2286 = vmatprep.subr.bf16.mxu0 0
    %2287 = vmatpush1.bf16.msra.mxu0 0
    %2288 = vmatprep.subr.bf16.mxu0 0
    %2289 = vmatpush1.bf16.msra.mxu0 0
    %2290 = vmatprep.subr.bf16.mxu0 0
    %2291 = vmatpush1.bf16.msra.mxu0 0
    %2292 = vmatprep.subr.bf16.mxu0 0
    %2293 = vmatpush1.bf16.msra.mxu0 0
    %2294 = vmatprep.subr.bf16.mxu0 0
    %2295 = vmatpush1.bf16.msra.mxu0 %v2278
    %2296 = vmatprep.subr.bf16.mxu0 0
    %2297 = vmatpush2.bf16.msra.mxu0 0
    %2298 = vmatprep.subr.bf16.mxu0 0
    %2299 = vmatpush2.bf16.msra.mxu0 0
    %2300 = vmatprep.subr.bf16.mxu0 0
    %2301 = vmatpush2.bf16.msra.mxu0 0
    %2302 = vmatprep.subr.bf16.mxu0 0
    %2303 = vmatpush2.bf16.msra.mxu0 0
    %2304 = vmatprep.subr.bf16.mxu0 0
    %2305 = vmatpush2.bf16.msra.mxu0 0
    %2306 = vmatprep.subr.bf16.mxu0 0
    %2307 = vmatpush2.bf16.msra.mxu0 0
    %2308 = vmatprep.subr.bf16.mxu0 0
    %2309 = vmatpush2.bf16.msra.mxu0 0
    %2310 = vmatprep.subr.bf16.mxu0 0
    %2311 = vmatpush2.bf16.msra.mxu0 0
    %2312 = vmatprep.mubr.bf16.mxu0 0
    %2313 = vmatmul.mubr.bf16.gmra.mxu0 %v2275
    %v2314 = vpop.f32.mrf.mxu0
    %v2315 = vadd.f32 0.0, %v2314
    %v2316 = vpop.f32.mrf.mxu0
    %v2317 = vpop.f32.mrf.mxu0
    %v2318 = vpop.f32.mrf.mxu0
    %2319 = vdwg.mxu0
    %v2321 = vsel %vm459, %v2273, 0
    %v2324 = vsel %vm487, %v2155, 0
    %2326 = vmatprep.subr.bf16.mxu0 0
    %2327 = vmatpush1.bf16.msra.mxu0 0
    %2328 = vmatprep.subr.bf16.mxu0 0
    %2329 = vmatpush1.bf16.msra.mxu0 0
    %2330 = vmatprep.subr.bf16.mxu0 0
    %2331 = vmatpush1.bf16.msra.mxu0 0
    %2332 = vmatprep.subr.bf16.mxu0 0
    %2333 = vmatpush1.bf16.msra.mxu0 0
    %2334 = vmatprep.subr.bf16.mxu0 0
    %2335 = vmatpush1.bf16.msra.mxu0 0
    %2336 = vmatprep.subr.bf16.mxu0 0
    %2337 = vmatpush1.bf16.msra.mxu0 0
    %2338 = vmatprep.subr.bf16.mxu0 0
    %2339 = vmatpush1.bf16.msra.mxu0 0
    %2340 = vmatprep.subr.bf16.mxu0 0
    %2341 = vmatpush1.bf16.msra.mxu0 %v2324
    %2342 = vmatprep.subr.bf16.mxu0 0
    %2343 = vmatpush2.bf16.msra.mxu0 0
    %2344 = vmatprep.subr.bf16.mxu0 0
    %2345 = vmatpush2.bf16.msra.mxu0 0
    %2346 = vmatprep.subr.bf16.mxu0 0
    %2347 = vmatpush2.bf16.msra.mxu0 0
    %2348 = vmatprep.subr.bf16.mxu0 0
    %2349 = vmatpush2.bf16.msra.mxu0 0
    %2350 = vmatprep.subr.bf16.mxu0 0
    %2351 = vmatpush2.bf16.msra.mxu0 0
    %2352 = vmatprep.subr.bf16.mxu0 0
    %2353 = vmatpush2.bf16.msra.mxu0 0
    %2354 = vmatprep.subr.bf16.mxu0 0
    %2355 = vmatpush2.bf16.msra.mxu0 0
    %2356 = vmatprep.subr.bf16.mxu0 0
    %2357 = vmatpush2.bf16.msra.mxu0 0
    %2358 = vmatprep.mubr.bf16.mxu0 0
    %2359 = vmatmul.mubr.bf16.gmra.mxu0 %v2321
    %v2360 = vpop.f32.mrf.mxu0
    %v2361 = vadd.f32 0.0, %v2360
    %v2362 = vpop.f32.mrf.mxu0
    %v2363 = vpop.f32.mrf.mxu0
    %v2364 = vpop.f32.mrf.mxu0
    %2365 = vdwg.mxu0
    %v2366 = vpack.c.bf16 %v2361, %v2315
    %s2367 = scalar_lea.vmem %s4, 48
    %v2368 = vld [vmem:[%s2367] sm:$0xf]
    %v2369 = vld [vmem:[%s2367 + $0x4] sm:$0xf]
    %v2370 = vld [vmem:[%s2367 + $0x8] sm:$0xf]
    %v2371 = vld [vmem:[%s2367 + $0xc] sm:$0xf]
    %v2376 = vunpack.c.l.b16 %v2368
    %v2377 = vunpack.c.l.b16 %v2369
    %v2378 = vunpack.c.l.b16 %v2370
    %v2379 = vunpack.c.l.b16 %v2371
    %v2380 = vpack.c.b16 %v2377, %v2376
    %v2381 = vpack.c.b16 %v2379, %v2378
    %v2385 = vsel %vm364, %v2366, 0
    %2387 = vmatprep.subr.bf16.mxu0 0
    %2388 = vmatpush1.bf16.msra.mxu0 0
    %2389 = vmatprep.subr.bf16.mxu0 0
    %2390 = vmatpush1.bf16.msra.mxu0 0
    %2391 = vmatprep.subr.bf16.mxu0 0
    %2392 = vmatpush1.bf16.msra.mxu0 0
    %2393 = vmatprep.subr.bf16.mxu0 0
    %2394 = vmatpush1.bf16.msra.mxu0 0
    %2395 = vmatprep.subr.bf16.mxu0 0
    %2396 = vmatpush1.bf16.msra.mxu0 0
    %2397 = vmatprep.subr.bf16.mxu0 0
    %2398 = vmatpush1.bf16.msra.mxu0 0
    %2399 = vmatprep.subr.bf16.mxu0 0
    %2400 = vmatpush1.bf16.msra.mxu0 %v2381
    %2401 = vmatprep.subr.bf16.mxu0 0
    %2402 = vmatpush1.bf16.msra.mxu0 %v2380
    %2403 = vmatprep.subr.bf16.mxu0 0
    %2404 = vmatpush2.bf16.msra.mxu0 0
    %2405 = vmatprep.subr.bf16.mxu0 0
    %2406 = vmatpush2.bf16.msra.mxu0 0
    %2407 = vmatprep.subr.bf16.mxu0 0
    %2408 = vmatpush2.bf16.msra.mxu0 0
    %2409 = vmatprep.subr.bf16.mxu0 0
    %2410 = vmatpush2.bf16.msra.mxu0 0
    %2411 = vmatprep.subr.bf16.mxu0 0
    %2412 = vmatpush2.bf16.msra.mxu0 0
    %2413 = vmatprep.subr.bf16.mxu0 0
    %2414 = vmatpush2.bf16.msra.mxu0 0
    %2415 = vmatprep.subr.bf16.mxu0 0
    %2416 = vmatpush2.bf16.msra.mxu0 0
    %2417 = vmatprep.subr.bf16.mxu0 0
    %2418 = vmatpush2.bf16.msra.mxu0 0
    %2419 = vmatprep.mubr.bf16.mxu0 0
    %2420 = vmatmul.mubr.bf16.gmra.mxu0 %v2385
    %v2421 = vpop.f32.mrf.mxu0
    %v2422 = vadd.f32 0.0, %v2421
    %v2423 = vpop.f32.mrf.mxu0
    %v2424 = vpop.f32.mrf.mxu0
    %v2425 = vadd.f32 0.0, %v2424
    %v2426 = vpop.f32.mrf.mxu0
    %2427 = vdwg.mxu0
    %v2428 = vadd.f32 %v1830, %v2422
    %v2429 = vadd.f32 %v1831, %v2425
    %v2430 = vlaneseq
    %v2431 = vshrl.u32 %v2430, 7
    %v2432 = vsub.s32 0, %v2431
    %v2433 = vrot.slane %v34, %v2432
    %v2434 = vadd.f32 %v2428, %v2433
    %v2435 = vadd.f32 %v2429, %v2433
    %v2436 = vadd.f32 %v2434, %v40
    %v2437 = vadd.f32 %v2435, %v41
    %2438 = vadd.xlane.f32.xlu0 %v2436
    %v2439 = vpop.xlane.xlu0 %2438
    %2440 = vadd.xlane.f32.xlu0 %v2437
    %v2441 = vpop.xlane.xlu0 %2440
    %v2442 = vrcp.pop 128.0
    %v2443 = vmul.f32 %v2439, %v2442
    %v2444 = vmul.f32 %v2441, %v2442
    %v2445 = vsub.f32 %v2436, %v2443
    %v2446 = vsub.f32 %v2437, %v2444
    %v2447 = vmul.f32 %v2445, %v2445
    %v2448 = vmul.f32 %v2446, %v2446
    %2449 = vadd.xlane.f32.xlu0 %v2447
    %v2450 = vpop.xlane.xlu0 %2449
    %2451 = vadd.xlane.f32.xlu0 %v2448
    %v2452 = vpop.xlane.xlu0 %2451
    %v2453 = vmul.f32 %v2450, %v2442
    %v2454 = vmul.f32 %v2452, %v2442
    %v2455 = vadd.f32 %v2453, 1e-05
    %v2456 = vadd.f32 %v2454, 1e-05
    %v2457 = vrsqrt.pop %v2455
    %v2458 = vrsqrt.pop %v2456
    %v2459 = vmul.f32 %v2445, %v2457
    %v2460 = vmul.f32 %v2446, %v2458
    %v2461 = vlaneseq
    %v2462 = vshrl.u32 %v2461, 7
    %v2463 = vsub.s32 0, %v2462
    %v2464 = vrot.slane %v35, %v2463
    %v2465 = vmul.f32 %v2459, %v2464
    %v2466 = vmul.f32 %v2460, %v2464
    %v2467 = vlaneseq
    %v2468 = vshrl.u32 %v2467, 7
    %v2469 = vsub.s32 0, %v2468
    %v2470 = vrot.slane %v36, %v2469
    %v2471 = vadd.f32 %v2465, %v2470
    %v2472 = vadd.f32 %v2466, %v2470
    %v2473 = vpack.c.bf16 %v2472, %v2471
    %v2474 = vld [vmem:[%s5] sm:$0xff]
    %v2475 = vld [vmem:[%s5 + $0x8] sm:$0xff]
    %v2476 = vld [vmem:[%s5 + $0x10] sm:$0xff]
    %v2477 = vld [vmem:[%s5 + $0x18] sm:$0xff]
    %v2478 = vld [vmem:[%s5 + $0x20] sm:$0xff]
    %v2479 = vld [vmem:[%s5 + $0x28] sm:$0xff]
    %v2480 = vld [vmem:[%s5 + $0x30] sm:$0xff]
    %v2481 = vld [vmem:[%s5 + $0x38] sm:$0xff]
    %v2482 = vld [vmem:[%s5 + $0x40] sm:$0xff]
    %v2483 = vld [vmem:[%s5 + $0x48] sm:$0xff]
    %v2484 = vld [vmem:[%s5 + $0x50] sm:$0xff]
    %v2485 = vld [vmem:[%s5 + $0x58] sm:$0xff]
    %v2486 = vld [vmem:[%s5 + $0x60] sm:$0xff]
    %v2487 = vld [vmem:[%s5 + $0x68] sm:$0xff]
    %v2488 = vld [vmem:[%s5 + $0x70] sm:$0xff]
    %v2489 = vld [vmem:[%s5 + $0x78] sm:$0xff]
    %v2490 = vld [vmem:[%s7] sm:$0x3]
    %v2492 = vlaneseq
    %v2493 = vshrl.u32 %v2492, 7
    %v2494 = vsub.s32 0, %v2493
    %v2495 = vrot.slane %v2490, %v2494
    %v2496 = vlaneseq
    %v2497 = vshrl.u32 %v2496, 7
    %v2498 = vsub.s32 1, %v2497
    %v2499 = vrot.slane %v2490, %v2498
    %v2518 = vunpack.c.l.b16 %v2474
    %v2519 = vunpack.c.h.b16 %v2474
    %v2520 = vunpack.c.l.b16 %v2475
    %v2521 = vunpack.c.h.b16 %v2475
    %v2522 = vunpack.c.l.b16 %v2476
    %v2523 = vunpack.c.h.b16 %v2476
    %v2524 = vunpack.c.l.b16 %v2477
    %v2525 = vunpack.c.h.b16 %v2477
    %v2526 = vunpack.c.l.b16 %v2478
    %v2527 = vunpack.c.h.b16 %v2478
    %v2528 = vunpack.c.l.b16 %v2479
    %v2529 = vunpack.c.h.b16 %v2479
    %v2530 = vunpack.c.l.b16 %v2480
    %v2531 = vunpack.c.h.b16 %v2480
    %v2532 = vunpack.c.l.b16 %v2481
    %v2533 = vunpack.c.h.b16 %v2481
    %v2534 = vunpack.c.l.b16 %v2482
    %v2535 = vunpack.c.h.b16 %v2482
    %v2536 = vunpack.c.l.b16 %v2483
    %v2537 = vunpack.c.h.b16 %v2483
    %v2538 = vunpack.c.l.b16 %v2484
    %v2539 = vunpack.c.h.b16 %v2484
    %v2540 = vunpack.c.l.b16 %v2485
    %v2541 = vunpack.c.h.b16 %v2485
    %v2542 = vunpack.c.l.b16 %v2486
    %v2543 = vunpack.c.h.b16 %v2486
    %v2544 = vunpack.c.l.b16 %v2487
    %v2545 = vunpack.c.h.b16 %v2487
    %v2546 = vunpack.c.l.b16 %v2488
    %v2547 = vunpack.c.h.b16 %v2488
    %v2548 = vunpack.c.l.b16 %v2489
    %v2549 = vunpack.c.h.b16 %v2489
    %v2550 = vpack.c.b16 %v2520, %v2518
    %v2551 = vpack.c.b16 %v2521, %v2519
    %v2552 = vpack.c.b16 %v2524, %v2522
    %v2553 = vpack.c.b16 %v2525, %v2523
    %v2554 = vpack.c.b16 %v2528, %v2526
    %v2555 = vpack.c.b16 %v2529, %v2527
    %v2556 = vpack.c.b16 %v2532, %v2530
    %v2557 = vpack.c.b16 %v2533, %v2531
    %v2558 = vpack.c.b16 %v2536, %v2534
    %v2559 = vpack.c.b16 %v2537, %v2535
    %v2560 = vpack.c.b16 %v2540, %v2538
    %v2561 = vpack.c.b16 %v2541, %v2539
    %v2562 = vpack.c.b16 %v2544, %v2542
    %v2563 = vpack.c.b16 %v2545, %v2543
    %v2564 = vpack.c.b16 %v2548, %v2546
    %v2565 = vpack.c.b16 %v2549, %v2547
    %2582 = vmatprep.subr.bf16.mxu0 %v2565
    %2583 = vmatpush1.bf16.msra.mxu0 %v2564
    %2584 = vmatprep.subr.bf16.mxu0 %v2563
    %2585 = vmatpush1.bf16.msra.mxu0 %v2562
    %2586 = vmatprep.subr.bf16.mxu0 %v2561
    %2587 = vmatpush1.bf16.msra.mxu0 %v2560
    %2588 = vmatprep.subr.bf16.mxu0 %v2559
    %2589 = vmatpush1.bf16.msra.mxu0 %v2558
    %2590 = vmatprep.subr.bf16.mxu0 %v2557
    %2591 = vmatpush1.bf16.msra.mxu0 %v2556
    %2592 = vmatprep.subr.bf16.mxu0 %v2555
    %2593 = vmatpush1.bf16.msra.mxu0 %v2554
    %2594 = vmatprep.subr.bf16.mxu0 %v2553
    %2595 = vmatpush1.bf16.msra.mxu0 %v2552
    %2596 = vmatprep.subr.bf16.mxu0 %v2551
    %2597 = vmatpush1.bf16.msra.mxu0 %v2550
    %2598 = vmatprep.subr.bf16.mxu0 0
    %2599 = vmatpush2.bf16.msra.mxu0 0
    %2600 = vmatprep.subr.bf16.mxu0 0
    %2601 = vmatpush2.bf16.msra.mxu0 0
    %2602 = vmatprep.subr.bf16.mxu0 0
    %2603 = vmatpush2.bf16.msra.mxu0 0
    %2604 = vmatprep.subr.bf16.mxu0 0
    %2605 = vmatpush2.bf16.msra.mxu0 0
    %2606 = vmatprep.subr.bf16.mxu0 0
    %2607 = vmatpush2.bf16.msra.mxu0 0
    %2608 = vmatprep.subr.bf16.mxu0 0
    %2609 = vmatpush2.bf16.msra.mxu0 0
    %2610 = vmatprep.subr.bf16.mxu0 0
    %2611 = vmatpush2.bf16.msra.mxu0 0
    %2612 = vmatprep.subr.bf16.mxu0 0
    %2613 = vmatpush2.bf16.msra.mxu0 0
    %2614 = vmatprep.mubr.bf16.mxu0 0
    %2615 = vmatmul.mubr.bf16.gmra.mxu0 %v2473
    %v2616 = vpop.f32.mrf.mxu0
    %v2617 = vadd.f32 %v2495, %v2616
    %v2618 = vpop.f32.mrf.mxu0
    %v2619 = vadd.f32 %v2499, %v2618
    %v2620 = vpop.f32.mrf.mxu0
    %v2621 = vadd.f32 %v2495, %v2620
    %v2622 = vpop.f32.mrf.mxu0
    %v2623 = vadd.f32 %v2499, %v2622
    %2624 = vdwg.mxu0
    %v2625 = vmax.f32 %v2617, 0.0
    %v2626 = vmax.f32 %v2619, 0.0
    %v2627 = vmax.f32 %v2621, 0.0
    %v2628 = vmax.f32 %v2623, 0.0
    %v2629 = vpack.c.bf16 %v2627, %v2625
    %v2630 = vpack.c.bf16 %v2628, %v2626
    %v2631 = vld [vmem:[%s6] sm:$0xf]
    %v2632 = vld [vmem:[%s6 + $0x4] sm:$0xf]
    %v2633 = vld [vmem:[%s6 + $0x8] sm:$0xf]
    %v2634 = vld [vmem:[%s6 + $0xc] sm:$0xf]
    %v2635 = vld [vmem:[%s6 + $0x10] sm:$0xf]
    %v2636 = vld [vmem:[%s6 + $0x14] sm:$0xf]
    %v2637 = vld [vmem:[%s6 + $0x18] sm:$0xf]
    %v2638 = vld [vmem:[%s6 + $0x1c] sm:$0xf]
    %v2639 = vld [vmem:[%s6 + $0x20] sm:$0xf]
    %v2640 = vld [vmem:[%s6 + $0x24] sm:$0xf]
    %v2641 = vld [vmem:[%s6 + $0x28] sm:$0xf]
    %v2642 = vld [vmem:[%s6 + $0x2c] sm:$0xf]
    %v2643 = vld [vmem:[%s6 + $0x30] sm:$0xf]
    %v2644 = vld [vmem:[%s6 + $0x34] sm:$0xf]
    %v2645 = vld [vmem:[%s6 + $0x38] sm:$0xf]
    %v2646 = vld [vmem:[%s6 + $0x3c] sm:$0xf]
    %v2647 = vld [vmem:[%s6 + $0x40] sm:$0xf]
    %v2648 = vld [vmem:[%s6 + $0x44] sm:$0xf]
    %v2649 = vld [vmem:[%s6 + $0x48] sm:$0xf]
    %v2650 = vld [vmem:[%s6 + $0x4c] sm:$0xf]
    %v2651 = vld [vmem:[%s6 + $0x50] sm:$0xf]
    %v2652 = vld [vmem:[%s6 + $0x54] sm:$0xf]
    %v2653 = vld [vmem:[%s6 + $0x58] sm:$0xf]
    %v2654 = vld [vmem:[%s6 + $0x5c] sm:$0xf]
    %v2655 = vld [vmem:[%s6 + $0x60] sm:$0xf]
    %v2656 = vld [vmem:[%s6 + $0x64] sm:$0xf]
    %v2657 = vld [vmem:[%s6 + $0x68] sm:$0xf]
    %v2658 = vld [vmem:[%s6 + $0x6c] sm:$0xf]
    %v2659 = vld [vmem:[%s6 + $0x70] sm:$0xf]
    %v2660 = vld [vmem:[%s6 + $0x74] sm:$0xf]
    %v2661 = vld [vmem:[%s6 + $0x78] sm:$0xf]
    %v2662 = vld [vmem:[%s6 + $0x7c] sm:$0xf]
    %v2663 = vlaneseq
    %v2664 = vshrl.u32 %v2663, 7
    %v2665 = vsub.s32 0, %v2664
    %v2666 = vrot.slane %v37, %v2665
    %v2699 = vunpack.c.l.b16 %v2631
    %v2700 = vunpack.c.l.b16 %v2632
    %v2701 = vunpack.c.l.b16 %v2633
    %v2702 = vunpack.c.l.b16 %v2634
    %v2703 = vunpack.c.l.b16 %v2635
    %v2704 = vunpack.c.l.b16 %v2636
    %v2705 = vunpack.c.l.b16 %v2637
    %v2706 = vunpack.c.l.b16 %v2638
    %v2707 = vunpack.c.l.b16 %v2639
    %v2708 = vunpack.c.l.b16 %v2640
    %v2709 = vunpack.c.l.b16 %v2641
    %v2710 = vunpack.c.l.b16 %v2642
    %v2711 = vunpack.c.l.b16 %v2643
    %v2712 = vunpack.c.l.b16 %v2644
    %v2713 = vunpack.c.l.b16 %v2645
    %v2714 = vunpack.c.l.b16 %v2646
    %v2715 = vunpack.c.l.b16 %v2647
    %v2716 = vunpack.c.l.b16 %v2648
    %v2717 = vunpack.c.l.b16 %v2649
    %v2718 = vunpack.c.l.b16 %v2650
    %v2719 = vunpack.c.l.b16 %v2651
    %v2720 = vunpack.c.l.b16 %v2652
    %v2721 = vunpack.c.l.b16 %v2653
    %v2722 = vunpack.c.l.b16 %v2654
    %v2723 = vunpack.c.l.b16 %v2655
    %v2724 = vunpack.c.l.b16 %v2656
    %v2725 = vunpack.c.l.b16 %v2657
    %v2726 = vunpack.c.l.b16 %v2658
    %v2727 = vunpack.c.l.b16 %v2659
    %v2728 = vunpack.c.l.b16 %v2660
    %v2729 = vunpack.c.l.b16 %v2661
    %v2730 = vunpack.c.l.b16 %v2662
    %v2731 = vpack.c.b16 %v2700, %v2699
    %v2732 = vpack.c.b16 %v2702, %v2701
    %v2733 = vpack.c.b16 %v2704, %v2703
    %v2734 = vpack.c.b16 %v2706, %v2705
    %v2735 = vpack.c.b16 %v2708, %v2707
    %v2736 = vpack.c.b16 %v2710, %v2709
    %v2737 = vpack.c.b16 %v2712, %v2711
    %v2738 = vpack.c.b16 %v2714, %v2713
    %v2739 = vpack.c.b16 %v2716, %v2715
    %v2740 = vpack.c.b16 %v2718, %v2717
    %v2741 = vpack.c.b16 %v2720, %v2719
    %v2742 = vpack.c.b16 %v2722, %v2721
    %v2743 = vpack.c.b16 %v2724, %v2723
    %v2744 = vpack.c.b16 %v2726, %v2725
    %v2745 = vpack.c.b16 %v2728, %v2727
    %v2746 = vpack.c.b16 %v2730, %v2729
    %2763 = vmatprep.subr.bf16.mxu0 0
    %2764 = vmatpush1.bf16.msra.mxu0 %v2738
    %2765 = vmatprep.subr.bf16.mxu0 0
    %2766 = vmatpush1.bf16.msra.mxu0 %v2737
    %2767 = vmatprep.subr.bf16.mxu0 0
    %2768 = vmatpush1.bf16.msra.mxu0 %v2736
    %2769 = vmatprep.subr.bf16.mxu0 0
    %2770 = vmatpush1.bf16.msra.mxu0 %v2735
    %2771 = vmatprep.subr.bf16.mxu0 0
    %2772 = vmatpush1.bf16.msra.mxu0 %v2734
    %2773 = vmatprep.subr.bf16.mxu0 0
    %2774 = vmatpush1.bf16.msra.mxu0 %v2733
    %2775 = vmatprep.subr.bf16.mxu0 0
    %2776 = vmatpush1.bf16.msra.mxu0 %v2732
    %2777 = vmatprep.subr.bf16.mxu0 0
    %2778 = vmatpush1.bf16.msra.mxu0 %v2731
    %2779 = vmatprep.subr.bf16.mxu0 0
    %2780 = vmatpush2.bf16.msra.mxu0 %v2746
    %2781 = vmatprep.subr.bf16.mxu0 0
    %2782 = vmatpush2.bf16.msra.mxu0 %v2745
    %2783 = vmatprep.subr.bf16.mxu0 0
    %2784 = vmatpush2.bf16.msra.mxu0 %v2744
    %2785 = vmatprep.subr.bf16.mxu0 0
    %2786 = vmatpush2.bf16.msra.mxu0 %v2743
    %2787 = vmatprep.subr.bf16.mxu0 0
    %2788 = vmatpush2.bf16.msra.mxu0 %v2742
    %2789 = vmatprep.subr.bf16.mxu0 0
    %2790 = vmatpush2.bf16.msra.mxu0 %v2741
    %2791 = vmatprep.subr.bf16.mxu0 0
    %2792 = vmatpush2.bf16.msra.mxu0 %v2740
    %2793 = vmatprep.subr.bf16.mxu0 0
    %2794 = vmatpush2.bf16.msra.mxu0 %v2739
    %2795 = vmatprep.mubr.bf16.mxu0 %v2630
    %2796 = vmatmul.mubr.bf16.gmra.mxu0 %v2629
    %v2797 = vpop.f32.mrf.mxu0
    %v2798 = vadd.f32 %v2666, %v2797
    %v2799 = vpop.f32.mrf.mxu0
    %v2800 = vpop.f32.mrf.mxu0
    %v2801 = vadd.f32 %v2666, %v2800
    %v2802 = vpop.f32.mrf.mxu0
    %2803 = vdwg.mxu0
    %v2804 = vadd.f32 %v2798, %v2471
    %v2805 = vadd.f32 %v2801, %v2472
    %2806 = vadd.xlane.f32.xlu0 %v2804
    %v2807 = vpop.xlane.xlu0 %2806
    %2808 = vadd.xlane.f32.xlu0 %v2805
    %v2809 = vpop.xlane.xlu0 %2808
    %v2810 = vmul.f32 %v2807, %v2442
    %v2811 = vmul.f32 %v2809, %v2442
    %v2812 = vsub.f32 %v2804, %v2810
    %v2813 = vsub.f32 %v2805, %v2811
    %v2814 = vmul.f32 %v2812, %v2812
    %v2815 = vmul.f32 %v2813, %v2813
    %2816 = vadd.xlane.f32.xlu0 %v2814
    %v2817 = vpop.xlane.xlu0 %2816
    %2818 = vadd.xlane.f32.xlu0 %v2815
    %v2819 = vpop.xlane.xlu0 %2818
    %v2820 = vmul.f32 %v2817, %v2442
    %v2821 = vmul.f32 %v2819, %v2442
    %v2822 = vadd.f32 %v2820, 1e-05
    %v2823 = vadd.f32 %v2821, 1e-05
    %v2824 = vrsqrt.pop %v2822
    %v2825 = vrsqrt.pop %v2823
    %v2826 = vmul.f32 %v2812, %v2824
    %v2827 = vmul.f32 %v2813, %v2825
    %v2828 = vlaneseq
    %v2829 = vshrl.u32 %v2828, 7
    %v2830 = vsub.s32 0, %v2829
    %v2831 = vrot.slane %v38, %v2830
    %v2832 = vmul.f32 %v2826, %v2831
    %v2833 = vmul.f32 %v2827, %v2831
    %v2834 = vlaneseq
    %v2835 = vshrl.u32 %v2834, 7
    %v2836 = vsub.s32 0, %v2835
    %v2837 = vrot.slane %v39, %v2836
    %v2838 = vadd.f32 %v2832, %v2837
    %v2839 = vadd.f32 %v2833, %v2837
    %2840 = vst [vmem:[#allocation2] sm:$0xff] %v2838
    %2841 = vst [vmem:[#allocation2 + $0x8] sm:$0xff] %v2839
    // Predicated region
    $region38: #{tpu_custom_call.1} parent=1 // pred_check
      _
    $region39: #{tpu_custom_call.1} parent=1 // pred_check_branch
      %2843 = sbr.rel (0) target = $region41
    $region40: #{tpu_custom_call.1} parent=1 // pred_region
      %s2845 = ssub.s32 256, 256
      %2846 = vsyncadd [#allocation3], %s2845
      %s2847 = sshll.u32 [#allocation2], 4
      %s2848 = int_to_ptr.vmem [resolvable:$true] %s2847
      %2853 = dma.vmem_to_hbm [thread:$0]  %s2848, 256, %s9, [#allocation3], 128, 128, 8
    $region41: #{tpu_custom_call.1} parent=1 // pred_fallthru
      _
    // Predicated region
    $region42: #{tpu_custom_call.1} parent=1 // pred_check
      _
    $region43: #{tpu_custom_call.1} parent=1 // pred_check_branch
      %2855 = sbr.rel (0) target = $region45
    $region44: #{tpu_custom_call.1} parent=1 // pred_region
      %2856 = dma.done [#allocation3], 256
    $region45: #{tpu_custom_call.1} parent=1 // pred_fallthru
      _
    %2857 = vsyncpa [#allocation3], 1

</llo_original>
